<compile_context>
chip_gen: v7x
topology: tpu7x:2x2x1
jax: 0.10.0
libtpu: 0.0.40
codegen_flags: <defaults>
</compile_context>

<pallas_src>
import jax
import jax.numpy as jnp
from jax import lax
from jax.experimental import pallas as pl
from jax.experimental.pallas import tpu as pltpu


def _vmem_spec():
    return pl.BlockSpec(memory_space=pltpu.MemorySpace.VMEM)


# ----------------------------------------------------------------------------
# Fused kernel: bidirectional GRU over both sentences (stacked on batch) + sum
# of final hiddens + MLP head.
# ----------------------------------------------------------------------------
def snli_rnn_kernel(emb_ref, h0_ref, wih_ref, whh_ref, bx_ref, bhn_ref,
                    w1a_ref, w1b_ref, b1_ref, w2_ref, b2_ref, out_ref):
    TB, _E = emb_ref.shape          # (T*BB, E), bf16
    _, BB, H = h0_ref.shape         # (2, BB, H) with BB = 2*B
    T = TB // BB
    B = out_ref.shape[0]

    emb = emb_ref[...]              # (T*BB, E) bf16

    # ---- hoisted input projection: one big matmul per (direction, gate) -----
    # gx[d][g]: (T*BB, H) f32 with b_ih (and b_hh for r/z gates) folded in.
    gx = [[jnp.dot(emb, wih_ref[d, g],
                   preferred_element_type=jnp.float32) + bx_ref[d, g]
           for g in range(3)]
          for d in range(2)]

    # loop-invariant recurrent weights / biases: read once, reuse every step.
    whh = [[whh_ref[d, g] for g in range(3)] for d in range(2)]
    bhn = [jnp.broadcast_to(bhn_ref[d], (BB, H)) for d in range(2)]

    def gru_step(h, g_r, g_z, g_n, w, b_hn):
        # PyTorch GRU:
        #   r = sigmoid(W_ir x + b_ir + W_hr h + b_hr)
        #   z = sigmoid(W_iz x + b_iz + W_hz h + b_hz)
        #   n = tanh  (W_in x + b_in + r * (W_hn h + b_hn))
        #   h' = (1 - z) * n + z * h
        a_r = g_r + jnp.dot(h, w[0], preferred_element_type=jnp.float32)
        a_z = g_z + jnp.dot(h, w[1], preferred_element_type=jnp.float32)
        h_n = jnp.dot(h, w[2], preferred_element_type=jnp.float32) + b_hn
        r = jax.nn.sigmoid(a_r)
        z = jax.nn.sigmoid(a_z)
        n = jnp.tanh(g_n + r * h_n)
        return (1.0 - z) * n + z * h

    h_f = h0_ref[0]                 # (BB, H) f32
    h_b = h0_ref[1]

    # Fully unrolled time loop; fwd and bwd interleaved each step for ILP.
    for t in range(T):
        tb = T - 1 - t
        rf = slice(t * BB, (t + 1) * BB)
        rb = slice(tb * BB, (tb + 1) * BB)
        h_f = gru_step(h_f, gx[0][0][rf], gx[0][1][rf], gx[0][2][rf],
                       whh[0], bhn[0])
        h_b = gru_step(h_b, gx[1][0][rb], gx[1][1][rb], gx[1][2][rb],
                       whh[1], bhn[1])

    # torch.sum(h_n, dim=0) for a 1-layer bidirectional GRU.
    h_sum = h_f + h_b               # (BB, H); rows [0:B] = sent1, [B:2B] = sent2

    # ---- fused MLP head: relu(cat(h1, h2) @ W1.T + b1) @ W2.T + b2 ----------
    h1 = h_sum[:B]
    h2 = h_sum[B:]
    z1 = jnp.maximum(
        jnp.dot(h1, w1a_ref[...], preferred_element_type=jnp.float32)
        + jnp.dot(h2, w1b_ref[...], preferred_element_type=jnp.float32)
        + b1_ref[...], 0.0)
    out_ref[...] = (jnp.dot(z1, w2_ref[...], preferred_element_type=jnp.float32)
                    + b2_ref[...]).astype(out_ref.dtype)


def snli_rnn_pallas(emb2d, h0, wih_t, whh_t, bx, bhn,
                    w1a, w1b, b1, w2, b2, batch, num_classes):
    return pl.pallas_call(
        snli_rnn_kernel,
        out_shape=jax.ShapeDtypeStruct((batch, num_classes), jnp.float32),
        in_specs=[_vmem_spec()] * 11,
        out_specs=_vmem_spec(),
        compiler_params=pltpu.CompilerParams(
            vmem_limit_bytes=32 * 1024 * 1024),
    )(emb2d, h0, wih_t, whh_t, bx, bhn, w1a, w1b, b1, w2, b2)


# ----------------------------------------------------------------------------
# Parameters (deterministic, PyTorch-like uniform init) + kernel-ready layouts.
# ----------------------------------------------------------------------------
def init_params(key, vocab, emb_dim, hidden, num_classes, pad_idx=0):
    ks = jax.random.split(key, 9)

    def u(k, shape, bound):
        return jax.random.uniform(k, shape, jnp.float32, -bound, bound)

    emb = jax.random.normal(ks[0], (vocab, emb_dim), jnp.float32)
    emb = emb.at[pad_idx].set(0.0)

    H = hidden
    kg = 1.0 / float(hidden) ** 0.5
    w_ih = u(ks[1], (2, 3 * H, emb_dim), kg)   # [fwd, bwd], gate order [r,z,n]
    w_hh = u(ks[2], (2, 3 * H, H), kg)
    b_ih = u(ks[3], (2, 3 * H), kg)
    b_hh = u(ks[4], (2, 3 * H), kg)

    k1 = 1.0 / float(2 * H) ** 0.5
    w1 = u(ks[5], (H, 2 * H), k1)              # Linear(2H -> H)
    b1 = u(ks[6], (H,), k1)
    k2 = 1.0 / float(H) ** 0.5
    w2 = u(ks[7], (num_classes, H), k2)        # Linear(H -> C)
    b2 = u(ks[8], (num_classes,), k2)

    # --- kernel-friendly layouts (pre-transposed, per-gate split) ---
    # W_ih: (2,3H,E) -> (2,3,E,H)  (so kernel does x @ W.T without relayout)
    wih_t = jnp.transpose(w_ih.reshape(2, 3, H, emb_dim),
                          (0, 1, 3, 2)).astype(jnp.bfloat16)
    # W_hh: (2,3H,H) -> (2,3,H,H) transposed
    whh_t = jnp.transpose(w_hh.reshape(2, 3, H, H), (0, 1, 3, 2))
    bih_g = b_ih.reshape(2, 3, 1, H)
    bhh_g = b_hh.reshape(2, 3, 1, H)
    # fold b_hh for r/z gates into the hoisted input-projection bias;
    # b_hn must stay inside the r * (W_hn h + b_hn) term.
    bx = bih_g.at[:, 0:2].add(bhh_g[:, 0:2])   # (2, 3, 1, H)
    bhn = bhh_g[:, 2]                          # (2, 1, H)

    return dict(
        embedding=emb,
        wih_t=wih_t, whh_t=whh_t, bx=bx, bhn=bhn,
        w1a=w1[:, :H].T, w1b=w1[:, H:].T, b1=b1.reshape(1, H),
        w2=w2.T, b2=b2.reshape(1, num_classes),
        hidden_size=H, num_classes=num_classes,
    )


# ----------------------------------------------------------------------------
# Forward pass matching RNN.forward(x1, lengths1, x2, lengths2).
# torch.randn h0 replaced by a deterministic jax.random.normal draw.
# ----------------------------------------------------------------------------
def rnn_forward(params, x1, lengths1, x2, lengths2, rng):
    del lengths1, lengths2  # unused in the reference forward as well
    B, T = x1.shape
    H = params['hidden_size']
    E = params['embedding'].shape[1]

    k1, k2 = jax.random.split(rng)
    h0_1 = jax.random.normal(k1, (2, B, H), jnp.float32)
    h0_2 = jax.random.normal(k2, (2, B, H), jnp.float32)

    # Fuse both sentences on the batch axis: rows [0:B]=sent1, [B:2B]=sent2.
    x_all = jnp.concatenate([x1, x2], axis=0)          # (2B, T)
    h0 = jnp.concatenate([h0_1, h0_2], axis=1)         # (2, 2B, H)

    # Gather directly in time-major order (transposing the tiny int index
    # matrix, not the gathered float tensor), flatten for the big matmul,
    # cast to bf16 for the MXU (accumulation stays f32 in-kernel).
    emb_tbe = params['embedding'][x_all.T]             # (T, 2B, E)
    emb2d = emb_tbe.reshape(T * 2 * B, E).astype(jnp.bfloat16)

    return snli_rnn_pallas(emb2d, h0,
                           params['wih_t'], params['whh_t'],
                           params['bx'], params['bhn'],
                           params['w1a'], params['w1b'], params['b1'],
                           params['w2'], params['b2'],
                           B, params['num_classes'])


if __name__ == "__main__":
    VOCAB, EMB_DIM, HIDDEN, NUM_CLASSES = 50, 32, 32, 3
    BATCH, SEQ, PAD_IDX = 2, 8, 0

    key = jax.random.PRNGKey(0)
    kp, kx1, kx2, kh = jax.random.split(key, 4)

    params = init_params(kp, VOCAB, EMB_DIM, HIDDEN, NUM_CLASSES, PAD_IDX)

    x1 = jax.random.randint(kx1, (BATCH, SEQ), 1, VOCAB, dtype=jnp.int32)
    x2 = jax.random.randint(kx2, (BATCH, SEQ), 1, VOCAB, dtype=jnp.int32)
    lengths1 = jnp.full((BATCH,), SEQ, jnp.int32)
    lengths2 = jnp.full((BATCH,), SEQ, jnp.int32)

    logits = rnn_forward(params, x1, lengths1, x2, lengths2, kh)
    jax.block_until_ready(logits)
    assert logits.shape == (BATCH, NUM_CLASSES)
    assert bool(jnp.all(jnp.isfinite(logits)))
    print("KERNEL_OK")
</pallas_src>

<mosaic_0001>
module attributes {stable_mosaic.version = 11 : i64} {
  func.func @snli_rnn_kernel(%arg0: memref<32x32xbf16, #tpu.memory_space<vmem>>, %arg1: memref<2x4x32xf32, #tpu.memory_space<vmem>>, %arg2: memref<2x3x32x32xbf16, #tpu.memory_space<vmem>>, %arg3: memref<2x3x32x32xf32, #tpu.memory_space<vmem>>, %arg4: memref<2x3x1x32xf32, #tpu.memory_space<vmem>>, %arg5: memref<2x1x32xf32, #tpu.memory_space<vmem>>, %arg6: memref<32x32xf32, #tpu.memory_space<vmem>>, %arg7: memref<32x32xf32, #tpu.memory_space<vmem>>, %arg8: memref<1x32xf32, #tpu.memory_space<vmem>>, %arg9: memref<32x3xf32, #tpu.memory_space<vmem>>, %arg10: memref<1x3xf32, #tpu.memory_space<vmem>>, %arg11: memref<2x3xf32, #tpu.memory_space<vmem>>) attributes {dimension_semantics = [], scalar_prefetch = 0 : i64, scratch_operands = 0 : i64, tpu.core_type = #tpu.core_type<tc>} {
    %c0 = arith.constant 0 : index
    %c0_0 = arith.constant 0 : index
    %0 = vector.load %arg0[%c0, %c0_0] : memref<32x32xbf16, #tpu.memory_space<vmem>>, vector<32x32xbf16>
    %c0_1 = arith.constant 0 : index
    %c0_2 = arith.constant 0 : index
    %c0_3 = arith.constant 0 : index
    %c0_4 = arith.constant 0 : index
    %1 = vector.load %arg2[%c0_1, %c0_2, %c0_3, %c0_4] : memref<2x3x32x32xbf16, #tpu.memory_space<vmem>>, vector<1x1x32x32xbf16>
    %2 = vector.shape_cast %1 : vector<1x1x32x32xbf16> to vector<32x32xbf16>
    %cst = arith.constant dense<0.000000e+00> : vector<32x32xf32>
    %3 = tpu.matmul %0, %2, %cst {dimension_numbers = #tpu.dot_dimension_numbers<[1], [0], [0], [1], [0, 0, 1, 1], [], []>} : vector<32x32xbf16>, vector<32x32xbf16>, vector<32x32xf32> -> vector<32x32xf32>
    %c0_5 = arith.constant 0 : index
    %c0_6 = arith.constant 0 : index
    %c0_7 = arith.constant 0 : index
    %c0_8 = arith.constant 0 : index
    %4 = vector.load %arg4[%c0_5, %c0_6, %c0_7, %c0_8] : memref<2x3x1x32xf32, #tpu.memory_space<vmem>>, vector<1x1x1x32xf32>
    %5 = vector.shape_cast %4 : vector<1x1x1x32xf32> to vector<1x32xf32>
    %6 = vector.broadcast %5 : vector<1x32xf32> to vector<32x32xf32>
    %7 = arith.addf %3, %6 : vector<32x32xf32>
    %c0_9 = arith.constant 0 : index
    %c1 = arith.constant 1 : index
    %c0_10 = arith.constant 0 : index
    %c0_11 = arith.constant 0 : index
    %8 = vector.load %arg2[%c0_9, %c1, %c0_10, %c0_11] : memref<2x3x32x32xbf16, #tpu.memory_space<vmem>>, vector<1x1x32x32xbf16>
    %9 = vector.shape_cast %8 : vector<1x1x32x32xbf16> to vector<32x32xbf16>
    %cst_12 = arith.constant dense<0.000000e+00> : vector<32x32xf32>
    %10 = tpu.matmul %0, %9, %cst_12 {dimension_numbers = #tpu.dot_dimension_numbers<[1], [0], [0], [1], [0, 0, 1, 1], [], []>} : vector<32x32xbf16>, vector<32x32xbf16>, vector<32x32xf32> -> vector<32x32xf32>
    %c0_13 = arith.constant 0 : index
    %c1_14 = arith.constant 1 : index
    %c0_15 = arith.constant 0 : index
    %c0_16 = arith.constant 0 : index
    %11 = vector.load %arg4[%c0_13, %c1_14, %c0_15, %c0_16] : memref<2x3x1x32xf32, #tpu.memory_space<vmem>>, vector<1x1x1x32xf32>
    %12 = vector.shape_cast %11 : vector<1x1x1x32xf32> to vector<1x32xf32>
    %13 = vector.broadcast %12 : vector<1x32xf32> to vector<32x32xf32>
    %14 = arith.addf %10, %13 : vector<32x32xf32>
    %c0_17 = arith.constant 0 : index
    %c2 = arith.constant 2 : index
    %c0_18 = arith.constant 0 : index
    %c0_19 = arith.constant 0 : index
    %15 = vector.load %arg2[%c0_17, %c2, %c0_18, %c0_19] : memref<2x3x32x32xbf16, #tpu.memory_space<vmem>>, vector<1x1x32x32xbf16>
    %16 = vector.shape_cast %15 : vector<1x1x32x32xbf16> to vector<32x32xbf16>
    %cst_20 = arith.constant dense<0.000000e+00> : vector<32x32xf32>
    %17 = tpu.matmul %0, %16, %cst_20 {dimension_numbers = #tpu.dot_dimension_numbers<[1], [0], [0], [1], [0, 0, 1, 1], [], []>} : vector<32x32xbf16>, vector<32x32xbf16>, vector<32x32xf32> -> vector<32x32xf32>
    %c0_21 = arith.constant 0 : index
    %c2_22 = arith.constant 2 : index
    %c0_23 = arith.constant 0 : index
    %c0_24 = arith.constant 0 : index
    %18 = vector.load %arg4[%c0_21, %c2_22, %c0_23, %c0_24] : memref<2x3x1x32xf32, #tpu.memory_space<vmem>>, vector<1x1x1x32xf32>
    %19 = vector.shape_cast %18 : vector<1x1x1x32xf32> to vector<1x32xf32>
    %20 = vector.broadcast %19 : vector<1x32xf32> to vector<32x32xf32>
    %21 = arith.addf %17, %20 : vector<32x32xf32>
    %c1_25 = arith.constant 1 : index
    %c0_26 = arith.constant 0 : index
    %c0_27 = arith.constant 0 : index
    %c0_28 = arith.constant 0 : index
    %22 = vector.load %arg2[%c1_25, %c0_26, %c0_27, %c0_28] : memref<2x3x32x32xbf16, #tpu.memory_space<vmem>>, vector<1x1x32x32xbf16>
    %23 = vector.shape_cast %22 : vector<1x1x32x32xbf16> to vector<32x32xbf16>
    %cst_29 = arith.constant dense<0.000000e+00> : vector<32x32xf32>
    %24 = tpu.matmul %0, %23, %cst_29 {dimension_numbers = #tpu.dot_dimension_numbers<[1], [0], [0], [1], [0, 0, 1, 1], [], []>} : vector<32x32xbf16>, vector<32x32xbf16>, vector<32x32xf32> -> vector<32x32xf32>
    %c1_30 = arith.constant 1 : index
    %c0_31 = arith.constant 0 : index
    %c0_32 = arith.constant 0 : index
    %c0_33 = arith.constant 0 : index
    %25 = vector.load %arg4[%c1_30, %c0_31, %c0_32, %c0_33] : memref<2x3x1x32xf32, #tpu.memory_space<vmem>>, vector<1x1x1x32xf32>
    %26 = vector.shape_cast %25 : vector<1x1x1x32xf32> to vector<1x32xf32>
    %27 = vector.broadcast %26 : vector<1x32xf32> to vector<32x32xf32>
    %28 = arith.addf %24, %27 : vector<32x32xf32>
    %c1_34 = arith.constant 1 : index
    %c1_35 = arith.constant 1 : index
    %c0_36 = arith.constant 0 : index
    %c0_37 = arith.constant 0 : index
    %29 = vector.load %arg2[%c1_34, %c1_35, %c0_36, %c0_37] : memref<2x3x32x32xbf16, #tpu.memory_space<vmem>>, vector<1x1x32x32xbf16>
    %30 = vector.shape_cast %29 : vector<1x1x32x32xbf16> to vector<32x32xbf16>
    %cst_38 = arith.constant dense<0.000000e+00> : vector<32x32xf32>
    %31 = tpu.matmul %0, %30, %cst_38 {dimension_numbers = #tpu.dot_dimension_numbers<[1], [0], [0], [1], [0, 0, 1, 1], [], []>} : vector<32x32xbf16>, vector<32x32xbf16>, vector<32x32xf32> -> vector<32x32xf32>
    %c1_39 = arith.constant 1 : index
    %c1_40 = arith.constant 1 : index
    %c0_41 = arith.constant 0 : index
    %c0_42 = arith.constant 0 : index
    %32 = vector.load %arg4[%c1_39, %c1_40, %c0_41, %c0_42] : memref<2x3x1x32xf32, #tpu.memory_space<vmem>>, vector<1x1x1x32xf32>
    %33 = vector.shape_cast %32 : vector<1x1x1x32xf32> to vector<1x32xf32>
    %34 = vector.broadcast %33 : vector<1x32xf32> to vector<32x32xf32>
    %35 = arith.addf %31, %34 : vector<32x32xf32>
    %c1_43 = arith.constant 1 : index
    %c2_44 = arith.constant 2 : index
    %c0_45 = arith.constant 0 : index
    %c0_46 = arith.constant 0 : index
    %36 = vector.load %arg2[%c1_43, %c2_44, %c0_45, %c0_46] : memref<2x3x32x32xbf16, #tpu.memory_space<vmem>>, vector<1x1x32x32xbf16>
    %37 = vector.shape_cast %36 : vector<1x1x32x32xbf16> to vector<32x32xbf16>
    %cst_47 = arith.constant dense<0.000000e+00> : vector<32x32xf32>
    %38 = tpu.matmul %0, %37, %cst_47 {dimension_numbers = #tpu.dot_dimension_numbers<[1], [0], [0], [1], [0, 0, 1, 1], [], []>} : vector<32x32xbf16>, vector<32x32xbf16>, vector<32x32xf32> -> vector<32x32xf32>
    %c1_48 = arith.constant 1 : index
    %c2_49 = arith.constant 2 : index
    %c0_50 = arith.constant 0 : index
    %c0_51 = arith.constant 0 : index
    %39 = vector.load %arg4[%c1_48, %c2_49, %c0_50, %c0_51] : memref<2x3x1x32xf32, #tpu.memory_space<vmem>>, vector<1x1x1x32xf32>
    %40 = vector.shape_cast %39 : vector<1x1x1x32xf32> to vector<1x32xf32>
    %41 = vector.broadcast %40 : vector<1x32xf32> to vector<32x32xf32>
    %42 = arith.addf %38, %41 : vector<32x32xf32>
    %c0_52 = arith.constant 0 : index
    %c0_53 = arith.constant 0 : index
    %c0_54 = arith.constant 0 : index
    %c0_55 = arith.constant 0 : index
    %43 = vector.load %arg3[%c0_52, %c0_53, %c0_54, %c0_55] : memref<2x3x32x32xf32, #tpu.memory_space<vmem>>, vector<1x1x32x32xf32>
    %44 = vector.shape_cast %43 : vector<1x1x32x32xf32> to vector<32x32xf32>
    %c0_56 = arith.constant 0 : index
    %c1_57 = arith.constant 1 : index
    %c0_58 = arith.constant 0 : index
    %c0_59 = arith.constant 0 : index
    %45 = vector.load %arg3[%c0_56, %c1_57, %c0_58, %c0_59] : memref<2x3x32x32xf32, #tpu.memory_space<vmem>>, vector<1x1x32x32xf32>
    %46 = vector.shape_cast %45 : vector<1x1x32x32xf32> to vector<32x32xf32>
    %c0_60 = arith.constant 0 : index
    %c2_61 = arith.constant 2 : index
    %c0_62 = arith.constant 0 : index
    %c0_63 = arith.constant 0 : index
    %47 = vector.load %arg3[%c0_60, %c2_61, %c0_62, %c0_63] : memref<2x3x32x32xf32, #tpu.memory_space<vmem>>, vector<1x1x32x32xf32>
    %48 = vector.shape_cast %47 : vector<1x1x32x32xf32> to vector<32x32xf32>
    %c1_64 = arith.constant 1 : index
    %c0_65 = arith.constant 0 : index
    %c0_66 = arith.constant 0 : index
    %c0_67 = arith.constant 0 : index
    %49 = vector.load %arg3[%c1_64, %c0_65, %c0_66, %c0_67] : memref<2x3x32x32xf32, #tpu.memory_space<vmem>>, vector<1x1x32x32xf32>
    %50 = vector.shape_cast %49 : vector<1x1x32x32xf32> to vector<32x32xf32>
    %c1_68 = arith.constant 1 : index
    %c1_69 = arith.constant 1 : index
    %c0_70 = arith.constant 0 : index
    %c0_71 = arith.constant 0 : index
    %51 = vector.load %arg3[%c1_68, %c1_69, %c0_70, %c0_71] : memref<2x3x32x32xf32, #tpu.memory_space<vmem>>, vector<1x1x32x32xf32>
    %52 = vector.shape_cast %51 : vector<1x1x32x32xf32> to vector<32x32xf32>
    %c1_72 = arith.constant 1 : index
    %c2_73 = arith.constant 2 : index
    %c0_74 = arith.constant 0 : index
    %c0_75 = arith.constant 0 : index
    %53 = vector.load %arg3[%c1_72, %c2_73, %c0_74, %c0_75] : memref<2x3x32x32xf32, #tpu.memory_space<vmem>>, vector<1x1x32x32xf32>
    %54 = vector.shape_cast %53 : vector<1x1x32x32xf32> to vector<32x32xf32>
    %c0_76 = arith.constant 0 : index
    %c0_77 = arith.constant 0 : index
    %c0_78 = arith.constant 0 : index
    %55 = vector.load %arg5[%c0_76, %c0_77, %c0_78] : memref<2x1x32xf32, #tpu.memory_space<vmem>>, vector<1x1x32xf32>
    %56 = vector.shape_cast %55 : vector<1x1x32xf32> to vector<1x32xf32>
    %57 = vector.shape_cast %56 : vector<1x32xf32> to vector<1x32xf32>
    %58 = vector.broadcast %57 : vector<1x32xf32> to vector<4x32xf32>
    %c1_79 = arith.constant 1 : index
    %c0_80 = arith.constant 0 : index
    %c0_81 = arith.constant 0 : index
    %59 = vector.load %arg5[%c1_79, %c0_80, %c0_81] : memref<2x1x32xf32, #tpu.memory_space<vmem>>, vector<1x1x32xf32>
    %60 = vector.shape_cast %59 : vector<1x1x32xf32> to vector<1x32xf32>
    %61 = vector.shape_cast %60 : vector<1x32xf32> to vector<1x32xf32>
    %62 = vector.broadcast %61 : vector<1x32xf32> to vector<4x32xf32>
    %c0_82 = arith.constant 0 : index
    %c0_83 = arith.constant 0 : index
    %c0_84 = arith.constant 0 : index
    %63 = vector.load %arg1[%c0_82, %c0_83, %c0_84] : memref<2x4x32xf32, #tpu.memory_space<vmem>>, vector<1x4x32xf32>
    %64 = vector.shape_cast %63 : vector<1x4x32xf32> to vector<4x32xf32>
    %c1_85 = arith.constant 1 : index
    %c0_86 = arith.constant 0 : index
    %c0_87 = arith.constant 0 : index
    %65 = vector.load %arg1[%c1_85, %c0_86, %c0_87] : memref<2x4x32xf32, #tpu.memory_space<vmem>>, vector<1x4x32xf32>
    %66 = vector.shape_cast %65 : vector<1x4x32xf32> to vector<4x32xf32>
    %67 = vector.extract_strided_slice %7 {offsets = [0, 0], sizes = [4, 32], strides = [1, 1]} : vector<32x32xf32> to vector<4x32xf32>
    %68 = vector.extract_strided_slice %14 {offsets = [0, 0], sizes = [4, 32], strides = [1, 1]} : vector<32x32xf32> to vector<4x32xf32>
    %69 = vector.extract_strided_slice %21 {offsets = [0, 0], sizes = [4, 32], strides = [1, 1]} : vector<32x32xf32> to vector<4x32xf32>
    %cst_88 = arith.constant dense<0.000000e+00> : vector<4x32xf32>
    %70 = tpu.matmul %64, %44, %cst_88 {dimension_numbers = #tpu.dot_dimension_numbers<[1], [0], [0], [1], [0, 0, 1, 1], [], []>} : vector<4x32xf32>, vector<32x32xf32>, vector<4x32xf32> -> vector<4x32xf32>
    %71 = arith.addf %67, %70 : vector<4x32xf32>
    %cst_89 = arith.constant dense<0.000000e+00> : vector<4x32xf32>
    %72 = tpu.matmul %64, %46, %cst_89 {dimension_numbers = #tpu.dot_dimension_numbers<[1], [0], [0], [1], [0, 0, 1, 1], [], []>} : vector<4x32xf32>, vector<32x32xf32>, vector<4x32xf32> -> vector<4x32xf32>
    %73 = arith.addf %68, %72 : vector<4x32xf32>
    %cst_90 = arith.constant dense<0.000000e+00> : vector<4x32xf32>
    %74 = tpu.matmul %64, %48, %cst_90 {dimension_numbers = #tpu.dot_dimension_numbers<[1], [0], [0], [1], [0, 0, 1, 1], [], []>} : vector<4x32xf32>, vector<32x32xf32>, vector<4x32xf32> -> vector<4x32xf32>
    %75 = arith.addf %74, %58 : vector<4x32xf32>
    %76 = arith.negf %71 : vector<4x32xf32>
    %77 = math.exp %76 : vector<4x32xf32>
    %cst_91 = arith.constant 1.000000e+00 : f32
    %78 = vector.broadcast %cst_91 : f32 to vector<4x32xf32>
    %79 = arith.addf %78, %77 : vector<4x32xf32>
    %80 = arith.divf %78, %79 : vector<4x32xf32>
    %81 = arith.negf %73 : vector<4x32xf32>
    %82 = math.exp %81 : vector<4x32xf32>
    %cst_92 = arith.constant 1.000000e+00 : f32
    %83 = vector.broadcast %cst_92 : f32 to vector<4x32xf32>
    %84 = arith.addf %83, %82 : vector<4x32xf32>
    %85 = arith.divf %83, %84 : vector<4x32xf32>
    %86 = arith.mulf %80, %75 : vector<4x32xf32>
    %87 = arith.addf %69, %86 : vector<4x32xf32>
    %88 = math.tanh %87 : vector<4x32xf32>
    %cst_93 = arith.constant 1.000000e+00 : f32
    %89 = vector.broadcast %cst_93 : f32 to vector<4x32xf32>
    %90 = arith.subf %89, %85 : vector<4x32xf32>
    %91 = arith.mulf %90, %88 : vector<4x32xf32>
    %92 = arith.mulf %85, %64 : vector<4x32xf32>
    %93 = arith.addf %91, %92 : vector<4x32xf32>
    %94 = vector.extract_strided_slice %28 {offsets = [28, 0], sizes = [4, 32], strides = [1, 1]} : vector<32x32xf32> to vector<4x32xf32>
    %95 = vector.extract_strided_slice %35 {offsets = [28, 0], sizes = [4, 32], strides = [1, 1]} : vector<32x32xf32> to vector<4x32xf32>
    %96 = vector.extract_strided_slice %42 {offsets = [28, 0], sizes = [4, 32], strides = [1, 1]} : vector<32x32xf32> to vector<4x32xf32>
    %cst_94 = arith.constant dense<0.000000e+00> : vector<4x32xf32>
    %97 = tpu.matmul %66, %50, %cst_94 {dimension_numbers = #tpu.dot_dimension_numbers<[1], [0], [0], [1], [0, 0, 1, 1], [], []>} : vector<4x32xf32>, vector<32x32xf32>, vector<4x32xf32> -> vector<4x32xf32>
    %98 = arith.addf %94, %97 : vector<4x32xf32>
    %cst_95 = arith.constant dense<0.000000e+00> : vector<4x32xf32>
    %99 = tpu.matmul %66, %52, %cst_95 {dimension_numbers = #tpu.dot_dimension_numbers<[1], [0], [0], [1], [0, 0, 1, 1], [], []>} : vector<4x32xf32>, vector<32x32xf32>, vector<4x32xf32> -> vector<4x32xf32>
    %100 = arith.addf %95, %99 : vector<4x32xf32>
    %cst_96 = arith.constant dense<0.000000e+00> : vector<4x32xf32>
    %101 = tpu.matmul %66, %54, %cst_96 {dimension_numbers = #tpu.dot_dimension_numbers<[1], [0], [0], [1], [0, 0, 1, 1], [], []>} : vector<4x32xf32>, vector<32x32xf32>, vector<4x32xf32> -> vector<4x32xf32>
    %102 = arith.addf %101, %62 : vector<4x32xf32>
    %103 = arith.negf %98 : vector<4x32xf32>
    %104 = math.exp %103 : vector<4x32xf32>
    %cst_97 = arith.constant 1.000000e+00 : f32
    %105 = vector.broadcast %cst_97 : f32 to vector<4x32xf32>
    %106 = arith.addf %105, %104 : vector<4x32xf32>
    %107 = arith.divf %105, %106 : vector<4x32xf32>
    %108 = arith.negf %100 : vector<4x32xf32>
    %109 = math.exp %108 : vector<4x32xf32>
    %cst_98 = arith.constant 1.000000e+00 : f32
    %110 = vector.broadcast %cst_98 : f32 to vector<4x32xf32>
    %111 = arith.addf %110, %109 : vector<4x32xf32>
    %112 = arith.divf %110, %111 : vector<4x32xf32>
    %113 = arith.mulf %107, %102 : vector<4x32xf32>
    %114 = arith.addf %96, %113 : vector<4x32xf32>
    %115 = math.tanh %114 : vector<4x32xf32>
    %cst_99 = arith.constant 1.000000e+00 : f32
    %116 = vector.broadcast %cst_99 : f32 to vector<4x32xf32>
    %117 = arith.subf %116, %112 : vector<4x32xf32>
    %118 = arith.mulf %117, %115 : vector<4x32xf32>
    %119 = arith.mulf %112, %66 : vector<4x32xf32>
    %120 = arith.addf %118, %119 : vector<4x32xf32>
    %121 = vector.extract_strided_slice %7 {offsets = [4, 0], sizes = [4, 32], strides = [1, 1]} : vector<32x32xf32> to vector<4x32xf32>
    %122 = vector.extract_strided_slice %14 {offsets = [4, 0], sizes = [4, 32], strides = [1, 1]} : vector<32x32xf32> to vector<4x32xf32>
    %123 = vector.extract_strided_slice %21 {offsets = [4, 0], sizes = [4, 32], strides = [1, 1]} : vector<32x32xf32> to vector<4x32xf32>
    %cst_100 = arith.constant dense<0.000000e+00> : vector<4x32xf32>
    %124 = tpu.matmul %93, %44, %cst_100 {dimension_numbers = #tpu.dot_dimension_numbers<[1], [0], [0], [1], [0, 0, 1, 1], [], []>} : vector<4x32xf32>, vector<32x32xf32>, vector<4x32xf32> -> vector<4x32xf32>
    %125 = arith.addf %121, %124 : vector<4x32xf32>
    %cst_101 = arith.constant dense<0.000000e+00> : vector<4x32xf32>
    %126 = tpu.matmul %93, %46, %cst_101 {dimension_numbers = #tpu.dot_dimension_numbers<[1], [0], [0], [1], [0, 0, 1, 1], [], []>} : vector<4x32xf32>, vector<32x32xf32>, vector<4x32xf32> -> vector<4x32xf32>
    %127 = arith.addf %122, %126 : vector<4x32xf32>
    %cst_102 = arith.constant dense<0.000000e+00> : vector<4x32xf32>
    %128 = tpu.matmul %93, %48, %cst_102 {dimension_numbers = #tpu.dot_dimension_numbers<[1], [0], [0], [1], [0, 0, 1, 1], [], []>} : vector<4x32xf32>, vector<32x32xf32>, vector<4x32xf32> -> vector<4x32xf32>
    %129 = arith.addf %128, %58 : vector<4x32xf32>
    %130 = arith.negf %125 : vector<4x32xf32>
    %131 = math.exp %130 : vector<4x32xf32>
    %cst_103 = arith.constant 1.000000e+00 : f32
    %132 = vector.broadcast %cst_103 : f32 to vector<4x32xf32>
    %133 = arith.addf %132, %131 : vector<4x32xf32>
    %134 = arith.divf %132, %133 : vector<4x32xf32>
    %135 = arith.negf %127 : vector<4x32xf32>
    %136 = math.exp %135 : vector<4x32xf32>
    %cst_104 = arith.constant 1.000000e+00 : f32
    %137 = vector.broadcast %cst_104 : f32 to vector<4x32xf32>
    %138 = arith.addf %137, %136 : vector<4x32xf32>
    %139 = arith.divf %137, %138 : vector<4x32xf32>
    %140 = arith.mulf %134, %129 : vector<4x32xf32>
    %141 = arith.addf %123, %140 : vector<4x32xf32>
    %142 = math.tanh %141 : vector<4x32xf32>
    %cst_105 = arith.constant 1.000000e+00 : f32
    %143 = vector.broadcast %cst_105 : f32 to vector<4x32xf32>
    %144 = arith.subf %143, %139 : vector<4x32xf32>
    %145 = arith.mulf %144, %142 : vector<4x32xf32>
    %146 = arith.mulf %139, %93 : vector<4x32xf32>
    %147 = arith.addf %145, %146 : vector<4x32xf32>
    %148 = vector.extract_strided_slice %28 {offsets = [24, 0], sizes = [4, 32], strides = [1, 1]} : vector<32x32xf32> to vector<4x32xf32>
    %149 = vector.extract_strided_slice %35 {offsets = [24, 0], sizes = [4, 32], strides = [1, 1]} : vector<32x32xf32> to vector<4x32xf32>
    %150 = vector.extract_strided_slice %42 {offsets = [24, 0], sizes = [4, 32], strides = [1, 1]} : vector<32x32xf32> to vector<4x32xf32>
    %cst_106 = arith.constant dense<0.000000e+00> : vector<4x32xf32>
    %151 = tpu.matmul %120, %50, %cst_106 {dimension_numbers = #tpu.dot_dimension_numbers<[1], [0], [0], [1], [0, 0, 1, 1], [], []>} : vector<4x32xf32>, vector<32x32xf32>, vector<4x32xf32> -> vector<4x32xf32>
    %152 = arith.addf %148, %151 : vector<4x32xf32>
    %cst_107 = arith.constant dense<0.000000e+00> : vector<4x32xf32>
    %153 = tpu.matmul %120, %52, %cst_107 {dimension_numbers = #tpu.dot_dimension_numbers<[1], [0], [0], [1], [0, 0, 1, 1], [], []>} : vector<4x32xf32>, vector<32x32xf32>, vector<4x32xf32> -> vector<4x32xf32>
    %154 = arith.addf %149, %153 : vector<4x32xf32>
    %cst_108 = arith.constant dense<0.000000e+00> : vector<4x32xf32>
    %155 = tpu.matmul %120, %54, %cst_108 {dimension_numbers = #tpu.dot_dimension_numbers<[1], [0], [0], [1], [0, 0, 1, 1], [], []>} : vector<4x32xf32>, vector<32x32xf32>, vector<4x32xf32> -> vector<4x32xf32>
    %156 = arith.addf %155, %62 : vector<4x32xf32>
    %157 = arith.negf %152 : vector<4x32xf32>
    %158 = math.exp %157 : vector<4x32xf32>
    %cst_109 = arith.constant 1.000000e+00 : f32
    %159 = vector.broadcast %cst_109 : f32 to vector<4x32xf32>
    %160 = arith.addf %159, %158 : vector<4x32xf32>
    %161 = arith.divf %159, %160 : vector<4x32xf32>
    %162 = arith.negf %154 : vector<4x32xf32>
    %163 = math.exp %162 : vector<4x32xf32>
    %cst_110 = arith.constant 1.000000e+00 : f32
    %164 = vector.broadcast %cst_110 : f32 to vector<4x32xf32>
    %165 = arith.addf %164, %163 : vector<4x32xf32>
    %166 = arith.divf %164, %165 : vector<4x32xf32>
    %167 = arith.mulf %161, %156 : vector<4x32xf32>
    %168 = arith.addf %150, %167 : vector<4x32xf32>
    %169 = math.tanh %168 : vector<4x32xf32>
    %cst_111 = arith.constant 1.000000e+00 : f32
    %170 = vector.broadcast %cst_111 : f32 to vector<4x32xf32>
    %171 = arith.subf %170, %166 : vector<4x32xf32>
    %172 = arith.mulf %171, %169 : vector<4x32xf32>
    %173 = arith.mulf %166, %120 : vector<4x32xf32>
    %174 = arith.addf %172, %173 : vector<4x32xf32>
    %175 = vector.extract_strided_slice %7 {offsets = [8, 0], sizes = [4, 32], strides = [1, 1]} : vector<32x32xf32> to vector<4x32xf32>
    %176 = vector.extract_strided_slice %14 {offsets = [8, 0], sizes = [4, 32], strides = [1, 1]} : vector<32x32xf32> to vector<4x32xf32>
    %177 = vector.extract_strided_slice %21 {offsets = [8, 0], sizes = [4, 32], strides = [1, 1]} : vector<32x32xf32> to vector<4x32xf32>
    %cst_112 = arith.constant dense<0.000000e+00> : vector<4x32xf32>
    %178 = tpu.matmul %147, %44, %cst_112 {dimension_numbers = #tpu.dot_dimension_numbers<[1], [0], [0], [1], [0, 0, 1, 1], [], []>} : vector<4x32xf32>, vector<32x32xf32>, vector<4x32xf32> -> vector<4x32xf32>
    %179 = arith.addf %175, %178 : vector<4x32xf32>
    %cst_113 = arith.constant dense<0.000000e+00> : vector<4x32xf32>
    %180 = tpu.matmul %147, %46, %cst_113 {dimension_numbers = #tpu.dot_dimension_numbers<[1], [0], [0], [1], [0, 0, 1, 1], [], []>} : vector<4x32xf32>, vector<32x32xf32>, vector<4x32xf32> -> vector<4x32xf32>
    %181 = arith.addf %176, %180 : vector<4x32xf32>
    %cst_114 = arith.constant dense<0.000000e+00> : vector<4x32xf32>
    %182 = tpu.matmul %147, %48, %cst_114 {dimension_numbers = #tpu.dot_dimension_numbers<[1], [0], [0], [1], [0, 0, 1, 1], [], []>} : vector<4x32xf32>, vector<32x32xf32>, vector<4x32xf32> -> vector<4x32xf32>
    %183 = arith.addf %182, %58 : vector<4x32xf32>
    %184 = arith.negf %179 : vector<4x32xf32>
    %185 = math.exp %184 : vector<4x32xf32>
    %cst_115 = arith.constant 1.000000e+00 : f32
    %186 = vector.broadcast %cst_115 : f32 to vector<4x32xf32>
    %187 = arith.addf %186, %185 : vector<4x32xf32>
    %188 = arith.divf %186, %187 : vector<4x32xf32>
    %189 = arith.negf %181 : vector<4x32xf32>
    %190 = math.exp %189 : vector<4x32xf32>
    %cst_116 = arith.constant 1.000000e+00 : f32
    %191 = vector.broadcast %cst_116 : f32 to vector<4x32xf32>
    %192 = arith.addf %191, %190 : vector<4x32xf32>
    %193 = arith.divf %191, %192 : vector<4x32xf32>
    %194 = arith.mulf %188, %183 : vector<4x32xf32>
    %195 = arith.addf %177, %194 : vector<4x32xf32>
    %196 = math.tanh %195 : vector<4x32xf32>
    %cst_117 = arith.constant 1.000000e+00 : f32
    %197 = vector.broadcast %cst_117 : f32 to vector<4x32xf32>
    %198 = arith.subf %197, %193 : vector<4x32xf32>
    %199 = arith.mulf %198, %196 : vector<4x32xf32>
    %200 = arith.mulf %193, %147 : vector<4x32xf32>
    %201 = arith.addf %199, %200 : vector<4x32xf32>
    %202 = vector.extract_strided_slice %28 {offsets = [20, 0], sizes = [4, 32], strides = [1, 1]} : vector<32x32xf32> to vector<4x32xf32>
    %203 = vector.extract_strided_slice %35 {offsets = [20, 0], sizes = [4, 32], strides = [1, 1]} : vector<32x32xf32> to vector<4x32xf32>
    %204 = vector.extract_strided_slice %42 {offsets = [20, 0], sizes = [4, 32], strides = [1, 1]} : vector<32x32xf32> to vector<4x32xf32>
    %cst_118 = arith.constant dense<0.000000e+00> : vector<4x32xf32>
    %205 = tpu.matmul %174, %50, %cst_118 {dimension_numbers = #tpu.dot_dimension_numbers<[1], [0], [0], [1], [0, 0, 1, 1], [], []>} : vector<4x32xf32>, vector<32x32xf32>, vector<4x32xf32> -> vector<4x32xf32>
    %206 = arith.addf %202, %205 : vector<4x32xf32>
    %cst_119 = arith.constant dense<0.000000e+00> : vector<4x32xf32>
    %207 = tpu.matmul %174, %52, %cst_119 {dimension_numbers = #tpu.dot_dimension_numbers<[1], [0], [0], [1], [0, 0, 1, 1], [], []>} : vector<4x32xf32>, vector<32x32xf32>, vector<4x32xf32> -> vector<4x32xf32>
    %208 = arith.addf %203, %207 : vector<4x32xf32>
    %cst_120 = arith.constant dense<0.000000e+00> : vector<4x32xf32>
    %209 = tpu.matmul %174, %54, %cst_120 {dimension_numbers = #tpu.dot_dimension_numbers<[1], [0], [0], [1], [0, 0, 1, 1], [], []>} : vector<4x32xf32>, vector<32x32xf32>, vector<4x32xf32> -> vector<4x32xf32>
    %210 = arith.addf %209, %62 : vector<4x32xf32>
    %211 = arith.negf %206 : vector<4x32xf32>
    %212 = math.exp %211 : vector<4x32xf32>
    %cst_121 = arith.constant 1.000000e+00 : f32
    %213 = vector.broadcast %cst_121 : f32 to vector<4x32xf32>
    %214 = arith.addf %213, %212 : vector<4x32xf32>
    %215 = arith.divf %213, %214 : vector<4x32xf32>
    %216 = arith.negf %208 : vector<4x32xf32>
    %217 = math.exp %216 : vector<4x32xf32>
    %cst_122 = arith.constant 1.000000e+00 : f32
    %218 = vector.broadcast %cst_122 : f32 to vector<4x32xf32>
    %219 = arith.addf %218, %217 : vector<4x32xf32>
    %220 = arith.divf %218, %219 : vector<4x32xf32>
    %221 = arith.mulf %215, %210 : vector<4x32xf32>
    %222 = arith.addf %204, %221 : vector<4x32xf32>
    %223 = math.tanh %222 : vector<4x32xf32>
    %cst_123 = arith.constant 1.000000e+00 : f32
    %224 = vector.broadcast %cst_123 : f32 to vector<4x32xf32>
    %225 = arith.subf %224, %220 : vector<4x32xf32>
    %226 = arith.mulf %225, %223 : vector<4x32xf32>
    %227 = arith.mulf %220, %174 : vector<4x32xf32>
    %228 = arith.addf %226, %227 : vector<4x32xf32>
    %229 = vector.extract_strided_slice %7 {offsets = [12, 0], sizes = [4, 32], strides = [1, 1]} : vector<32x32xf32> to vector<4x32xf32>
    %230 = vector.extract_strided_slice %14 {offsets = [12, 0], sizes = [4, 32], strides = [1, 1]} : vector<32x32xf32> to vector<4x32xf32>
    %231 = vector.extract_strided_slice %21 {offsets = [12, 0], sizes = [4, 32], strides = [1, 1]} : vector<32x32xf32> to vector<4x32xf32>
    %cst_124 = arith.constant dense<0.000000e+00> : vector<4x32xf32>
    %232 = tpu.matmul %201, %44, %cst_124 {dimension_numbers = #tpu.dot_dimension_numbers<[1], [0], [0], [1], [0, 0, 1, 1], [], []>} : vector<4x32xf32>, vector<32x32xf32>, vector<4x32xf32> -> vector<4x32xf32>
    %233 = arith.addf %229, %232 : vector<4x32xf32>
    %cst_125 = arith.constant dense<0.000000e+00> : vector<4x32xf32>
    %234 = tpu.matmul %201, %46, %cst_125 {dimension_numbers = #tpu.dot_dimension_numbers<[1], [0], [0], [1], [0, 0, 1, 1], [], []>} : vector<4x32xf32>, vector<32x32xf32>, vector<4x32xf32> -> vector<4x32xf32>
    %235 = arith.addf %230, %234 : vector<4x32xf32>
    %cst_126 = arith.constant dense<0.000000e+00> : vector<4x32xf32>
    %236 = tpu.matmul %201, %48, %cst_126 {dimension_numbers = #tpu.dot_dimension_numbers<[1], [0], [0], [1], [0, 0, 1, 1], [], []>} : vector<4x32xf32>, vector<32x32xf32>, vector<4x32xf32> -> vector<4x32xf32>
    %237 = arith.addf %236, %58 : vector<4x32xf32>
    %238 = arith.negf %233 : vector<4x32xf32>
    %239 = math.exp %238 : vector<4x32xf32>
    %cst_127 = arith.constant 1.000000e+00 : f32
    %240 = vector.broadcast %cst_127 : f32 to vector<4x32xf32>
    %241 = arith.addf %240, %239 : vector<4x32xf32>
    %242 = arith.divf %240, %241 : vector<4x32xf32>
    %243 = arith.negf %235 : vector<4x32xf32>
    %244 = math.exp %243 : vector<4x32xf32>
    %cst_128 = arith.constant 1.000000e+00 : f32
    %245 = vector.broadcast %cst_128 : f32 to vector<4x32xf32>
    %246 = arith.addf %245, %244 : vector<4x32xf32>
    %247 = arith.divf %245, %246 : vector<4x32xf32>
    %248 = arith.mulf %242, %237 : vector<4x32xf32>
    %249 = arith.addf %231, %248 : vector<4x32xf32>
    %250 = math.tanh %249 : vector<4x32xf32>
    %cst_129 = arith.constant 1.000000e+00 : f32
    %251 = vector.broadcast %cst_129 : f32 to vector<4x32xf32>
    %252 = arith.subf %251, %247 : vector<4x32xf32>
    %253 = arith.mulf %252, %250 : vector<4x32xf32>
    %254 = arith.mulf %247, %201 : vector<4x32xf32>
    %255 = arith.addf %253, %254 : vector<4x32xf32>
    %256 = vector.extract_strided_slice %28 {offsets = [16, 0], sizes = [4, 32], strides = [1, 1]} : vector<32x32xf32> to vector<4x32xf32>
    %257 = vector.extract_strided_slice %35 {offsets = [16, 0], sizes = [4, 32], strides = [1, 1]} : vector<32x32xf32> to vector<4x32xf32>
    %258 = vector.extract_strided_slice %42 {offsets = [16, 0], sizes = [4, 32], strides = [1, 1]} : vector<32x32xf32> to vector<4x32xf32>
    %cst_130 = arith.constant dense<0.000000e+00> : vector<4x32xf32>
    %259 = tpu.matmul %228, %50, %cst_130 {dimension_numbers = #tpu.dot_dimension_numbers<[1], [0], [0], [1], [0, 0, 1, 1], [], []>} : vector<4x32xf32>, vector<32x32xf32>, vector<4x32xf32> -> vector<4x32xf32>
    %260 = arith.addf %256, %259 : vector<4x32xf32>
    %cst_131 = arith.constant dense<0.000000e+00> : vector<4x32xf32>
    %261 = tpu.matmul %228, %52, %cst_131 {dimension_numbers = #tpu.dot_dimension_numbers<[1], [0], [0], [1], [0, 0, 1, 1], [], []>} : vector<4x32xf32>, vector<32x32xf32>, vector<4x32xf32> -> vector<4x32xf32>
    %262 = arith.addf %257, %261 : vector<4x32xf32>
    %cst_132 = arith.constant dense<0.000000e+00> : vector<4x32xf32>
    %263 = tpu.matmul %228, %54, %cst_132 {dimension_numbers = #tpu.dot_dimension_numbers<[1], [0], [0], [1], [0, 0, 1, 1], [], []>} : vector<4x32xf32>, vector<32x32xf32>, vector<4x32xf32> -> vector<4x32xf32>
    %264 = arith.addf %263, %62 : vector<4x32xf32>
    %265 = arith.negf %260 : vector<4x32xf32>
    %266 = math.exp %265 : vector<4x32xf32>
    %cst_133 = arith.constant 1.000000e+00 : f32
    %267 = vector.broadcast %cst_133 : f32 to vector<4x32xf32>
    %268 = arith.addf %267, %266 : vector<4x32xf32>
    %269 = arith.divf %267, %268 : vector<4x32xf32>
    %270 = arith.negf %262 : vector<4x32xf32>
    %271 = math.exp %270 : vector<4x32xf32>
    %cst_134 = arith.constant 1.000000e+00 : f32
    %272 = vector.broadcast %cst_134 : f32 to vector<4x32xf32>
    %273 = arith.addf %272, %271 : vector<4x32xf32>
    %274 = arith.divf %272, %273 : vector<4x32xf32>
    %275 = arith.mulf %269, %264 : vector<4x32xf32>
    %276 = arith.addf %258, %275 : vector<4x32xf32>
    %277 = math.tanh %276 : vector<4x32xf32>
    %cst_135 = arith.constant 1.000000e+00 : f32
    %278 = vector.broadcast %cst_135 : f32 to vector<4x32xf32>
    %279 = arith.subf %278, %274 : vector<4x32xf32>
    %280 = arith.mulf %279, %277 : vector<4x32xf32>
    %281 = arith.mulf %274, %228 : vector<4x32xf32>
    %282 = arith.addf %280, %281 : vector<4x32xf32>
    %283 = vector.extract_strided_slice %7 {offsets = [16, 0], sizes = [4, 32], strides = [1, 1]} : vector<32x32xf32> to vector<4x32xf32>
    %284 = vector.extract_strided_slice %14 {offsets = [16, 0], sizes = [4, 32], strides = [1, 1]} : vector<32x32xf32> to vector<4x32xf32>
    %285 = vector.extract_strided_slice %21 {offsets = [16, 0], sizes = [4, 32], strides = [1, 1]} : vector<32x32xf32> to vector<4x32xf32>
    %cst_136 = arith.constant dense<0.000000e+00> : vector<4x32xf32>
    %286 = tpu.matmul %255, %44, %cst_136 {dimension_numbers = #tpu.dot_dimension_numbers<[1], [0], [0], [1], [0, 0, 1, 1], [], []>} : vector<4x32xf32>, vector<32x32xf32>, vector<4x32xf32> -> vector<4x32xf32>
    %287 = arith.addf %283, %286 : vector<4x32xf32>
    %cst_137 = arith.constant dense<0.000000e+00> : vector<4x32xf32>
    %288 = tpu.matmul %255, %46, %cst_137 {dimension_numbers = #tpu.dot_dimension_numbers<[1], [0], [0], [1], [0, 0, 1, 1], [], []>} : vector<4x32xf32>, vector<32x32xf32>, vector<4x32xf32> -> vector<4x32xf32>
    %289 = arith.addf %284, %288 : vector<4x32xf32>
    %cst_138 = arith.constant dense<0.000000e+00> : vector<4x32xf32>
    %290 = tpu.matmul %255, %48, %cst_138 {dimension_numbers = #tpu.dot_dimension_numbers<[1], [0], [0], [1], [0, 0, 1, 1], [], []>} : vector<4x32xf32>, vector<32x32xf32>, vector<4x32xf32> -> vector<4x32xf32>
    %291 = arith.addf %290, %58 : vector<4x32xf32>
    %292 = arith.negf %287 : vector<4x32xf32>
    %293 = math.exp %292 : vector<4x32xf32>
    %cst_139 = arith.constant 1.000000e+00 : f32
    %294 = vector.broadcast %cst_139 : f32 to vector<4x32xf32>
    %295 = arith.addf %294, %293 : vector<4x32xf32>
    %296 = arith.divf %294, %295 : vector<4x32xf32>
    %297 = arith.negf %289 : vector<4x32xf32>
    %298 = math.exp %297 : vector<4x32xf32>
    %cst_140 = arith.constant 1.000000e+00 : f32
    %299 = vector.broadcast %cst_140 : f32 to vector<4x32xf32>
    %300 = arith.addf %299, %298 : vector<4x32xf32>
    %301 = arith.divf %299, %300 : vector<4x32xf32>
    %302 = arith.mulf %296, %291 : vector<4x32xf32>
    %303 = arith.addf %285, %302 : vector<4x32xf32>
    %304 = math.tanh %303 : vector<4x32xf32>
    %cst_141 = arith.constant 1.000000e+00 : f32
    %305 = vector.broadcast %cst_141 : f32 to vector<4x32xf32>
    %306 = arith.subf %305, %301 : vector<4x32xf32>
    %307 = arith.mulf %306, %304 : vector<4x32xf32>
    %308 = arith.mulf %301, %255 : vector<4x32xf32>
    %309 = arith.addf %307, %308 : vector<4x32xf32>
    %310 = vector.extract_strided_slice %28 {offsets = [12, 0], sizes = [4, 32], strides = [1, 1]} : vector<32x32xf32> to vector<4x32xf32>
    %311 = vector.extract_strided_slice %35 {offsets = [12, 0], sizes = [4, 32], strides = [1, 1]} : vector<32x32xf32> to vector<4x32xf32>
    %312 = vector.extract_strided_slice %42 {offsets = [12, 0], sizes = [4, 32], strides = [1, 1]} : vector<32x32xf32> to vector<4x32xf32>
    %cst_142 = arith.constant dense<0.000000e+00> : vector<4x32xf32>
    %313 = tpu.matmul %282, %50, %cst_142 {dimension_numbers = #tpu.dot_dimension_numbers<[1], [0], [0], [1], [0, 0, 1, 1], [], []>} : vector<4x32xf32>, vector<32x32xf32>, vector<4x32xf32> -> vector<4x32xf32>
    %314 = arith.addf %310, %313 : vector<4x32xf32>
    %cst_143 = arith.constant dense<0.000000e+00> : vector<4x32xf32>
    %315 = tpu.matmul %282, %52, %cst_143 {dimension_numbers = #tpu.dot_dimension_numbers<[1], [0], [0], [1], [0, 0, 1, 1], [], []>} : vector<4x32xf32>, vector<32x32xf32>, vector<4x32xf32> -> vector<4x32xf32>
    %316 = arith.addf %311, %315 : vector<4x32xf32>
    %cst_144 = arith.constant dense<0.000000e+00> : vector<4x32xf32>
    %317 = tpu.matmul %282, %54, %cst_144 {dimension_numbers = #tpu.dot_dimension_numbers<[1], [0], [0], [1], [0, 0, 1, 1], [], []>} : vector<4x32xf32>, vector<32x32xf32>, vector<4x32xf32> -> vector<4x32xf32>
    %318 = arith.addf %317, %62 : vector<4x32xf32>
    %319 = arith.negf %314 : vector<4x32xf32>
    %320 = math.exp %319 : vector<4x32xf32>
    %cst_145 = arith.constant 1.000000e+00 : f32
    %321 = vector.broadcast %cst_145 : f32 to vector<4x32xf32>
    %322 = arith.addf %321, %320 : vector<4x32xf32>
    %323 = arith.divf %321, %322 : vector<4x32xf32>
    %324 = arith.negf %316 : vector<4x32xf32>
    %325 = math.exp %324 : vector<4x32xf32>
    %cst_146 = arith.constant 1.000000e+00 : f32
    %326 = vector.broadcast %cst_146 : f32 to vector<4x32xf32>
    %327 = arith.addf %326, %325 : vector<4x32xf32>
    %328 = arith.divf %326, %327 : vector<4x32xf32>
    %329 = arith.mulf %323, %318 : vector<4x32xf32>
    %330 = arith.addf %312, %329 : vector<4x32xf32>
    %331 = math.tanh %330 : vector<4x32xf32>
    %cst_147 = arith.constant 1.000000e+00 : f32
    %332 = vector.broadcast %cst_147 : f32 to vector<4x32xf32>
    %333 = arith.subf %332, %328 : vector<4x32xf32>
    %334 = arith.mulf %333, %331 : vector<4x32xf32>
    %335 = arith.mulf %328, %282 : vector<4x32xf32>
    %336 = arith.addf %334, %335 : vector<4x32xf32>
    %337 = vector.extract_strided_slice %7 {offsets = [20, 0], sizes = [4, 32], strides = [1, 1]} : vector<32x32xf32> to vector<4x32xf32>
    %338 = vector.extract_strided_slice %14 {offsets = [20, 0], sizes = [4, 32], strides = [1, 1]} : vector<32x32xf32> to vector<4x32xf32>
    %339 = vector.extract_strided_slice %21 {offsets = [20, 0], sizes = [4, 32], strides = [1, 1]} : vector<32x32xf32> to vector<4x32xf32>
    %cst_148 = arith.constant dense<0.000000e+00> : vector<4x32xf32>
    %340 = tpu.matmul %309, %44, %cst_148 {dimension_numbers = #tpu.dot_dimension_numbers<[1], [0], [0], [1], [0, 0, 1, 1], [], []>} : vector<4x32xf32>, vector<32x32xf32>, vector<4x32xf32> -> vector<4x32xf32>
    %341 = arith.addf %337, %340 : vector<4x32xf32>
    %cst_149 = arith.constant dense<0.000000e+00> : vector<4x32xf32>
    %342 = tpu.matmul %309, %46, %cst_149 {dimension_numbers = #tpu.dot_dimension_numbers<[1], [0], [0], [1], [0, 0, 1, 1], [], []>} : vector<4x32xf32>, vector<32x32xf32>, vector<4x32xf32> -> vector<4x32xf32>
    %343 = arith.addf %338, %342 : vector<4x32xf32>
    %cst_150 = arith.constant dense<0.000000e+00> : vector<4x32xf32>
    %344 = tpu.matmul %309, %48, %cst_150 {dimension_numbers = #tpu.dot_dimension_numbers<[1], [0], [0], [1], [0, 0, 1, 1], [], []>} : vector<4x32xf32>, vector<32x32xf32>, vector<4x32xf32> -> vector<4x32xf32>
    %345 = arith.addf %344, %58 : vector<4x32xf32>
    %346 = arith.negf %341 : vector<4x32xf32>
    %347 = math.exp %346 : vector<4x32xf32>
    %cst_151 = arith.constant 1.000000e+00 : f32
    %348 = vector.broadcast %cst_151 : f32 to vector<4x32xf32>
    %349 = arith.addf %348, %347 : vector<4x32xf32>
    %350 = arith.divf %348, %349 : vector<4x32xf32>
    %351 = arith.negf %343 : vector<4x32xf32>
    %352 = math.exp %351 : vector<4x32xf32>
    %cst_152 = arith.constant 1.000000e+00 : f32
    %353 = vector.broadcast %cst_152 : f32 to vector<4x32xf32>
    %354 = arith.addf %353, %352 : vector<4x32xf32>
    %355 = arith.divf %353, %354 : vector<4x32xf32>
    %356 = arith.mulf %350, %345 : vector<4x32xf32>
    %357 = arith.addf %339, %356 : vector<4x32xf32>
    %358 = math.tanh %357 : vector<4x32xf32>
    %cst_153 = arith.constant 1.000000e+00 : f32
    %359 = vector.broadcast %cst_153 : f32 to vector<4x32xf32>
    %360 = arith.subf %359, %355 : vector<4x32xf32>
    %361 = arith.mulf %360, %358 : vector<4x32xf32>
    %362 = arith.mulf %355, %309 : vector<4x32xf32>
    %363 = arith.addf %361, %362 : vector<4x32xf32>
    %364 = vector.extract_strided_slice %28 {offsets = [8, 0], sizes = [4, 32], strides = [1, 1]} : vector<32x32xf32> to vector<4x32xf32>
    %365 = vector.extract_strided_slice %35 {offsets = [8, 0], sizes = [4, 32], strides = [1, 1]} : vector<32x32xf32> to vector<4x32xf32>
    %366 = vector.extract_strided_slice %42 {offsets = [8, 0], sizes = [4, 32], strides = [1, 1]} : vector<32x32xf32> to vector<4x32xf32>
    %cst_154 = arith.constant dense<0.000000e+00> : vector<4x32xf32>
    %367 = tpu.matmul %336, %50, %cst_154 {dimension_numbers = #tpu.dot_dimension_numbers<[1], [0], [0], [1], [0, 0, 1, 1], [], []>} : vector<4x32xf32>, vector<32x32xf32>, vector<4x32xf32> -> vector<4x32xf32>
    %368 = arith.addf %364, %367 : vector<4x32xf32>
    %cst_155 = arith.constant dense<0.000000e+00> : vector<4x32xf32>
    %369 = tpu.matmul %336, %52, %cst_155 {dimension_numbers = #tpu.dot_dimension_numbers<[1], [0], [0], [1], [0, 0, 1, 1], [], []>} : vector<4x32xf32>, vector<32x32xf32>, vector<4x32xf32> -> vector<4x32xf32>
    %370 = arith.addf %365, %369 : vector<4x32xf32>
    %cst_156 = arith.constant dense<0.000000e+00> : vector<4x32xf32>
    %371 = tpu.matmul %336, %54, %cst_156 {dimension_numbers = #tpu.dot_dimension_numbers<[1], [0], [0], [1], [0, 0, 1, 1], [], []>} : vector<4x32xf32>, vector<32x32xf32>, vector<4x32xf32> -> vector<4x32xf32>
    %372 = arith.addf %371, %62 : vector<4x32xf32>
    %373 = arith.negf %368 : vector<4x32xf32>
    %374 = math.exp %373 : vector<4x32xf32>
    %cst_157 = arith.constant 1.000000e+00 : f32
    %375 = vector.broadcast %cst_157 : f32 to vector<4x32xf32>
    %376 = arith.addf %375, %374 : vector<4x32xf32>
    %377 = arith.divf %375, %376 : vector<4x32xf32>
    %378 = arith.negf %370 : vector<4x32xf32>
    %379 = math.exp %378 : vector<4x32xf32>
    %cst_158 = arith.constant 1.000000e+00 : f32
    %380 = vector.broadcast %cst_158 : f32 to vector<4x32xf32>
    %381 = arith.addf %380, %379 : vector<4x32xf32>
    %382 = arith.divf %380, %381 : vector<4x32xf32>
    %383 = arith.mulf %377, %372 : vector<4x32xf32>
    %384 = arith.addf %366, %383 : vector<4x32xf32>
    %385 = math.tanh %384 : vector<4x32xf32>
    %cst_159 = arith.constant 1.000000e+00 : f32
    %386 = vector.broadcast %cst_159 : f32 to vector<4x32xf32>
    %387 = arith.subf %386, %382 : vector<4x32xf32>
    %388 = arith.mulf %387, %385 : vector<4x32xf32>
    %389 = arith.mulf %382, %336 : vector<4x32xf32>
    %390 = arith.addf %388, %389 : vector<4x32xf32>
    %391 = vector.extract_strided_slice %7 {offsets = [24, 0], sizes = [4, 32], strides = [1, 1]} : vector<32x32xf32> to vector<4x32xf32>
    %392 = vector.extract_strided_slice %14 {offsets = [24, 0], sizes = [4, 32], strides = [1, 1]} : vector<32x32xf32> to vector<4x32xf32>
    %393 = vector.extract_strided_slice %21 {offsets = [24, 0], sizes = [4, 32], strides = [1, 1]} : vector<32x32xf32> to vector<4x32xf32>
    %cst_160 = arith.constant dense<0.000000e+00> : vector<4x32xf32>
    %394 = tpu.matmul %363, %44, %cst_160 {dimension_numbers = #tpu.dot_dimension_numbers<[1], [0], [0], [1], [0, 0, 1, 1], [], []>} : vector<4x32xf32>, vector<32x32xf32>, vector<4x32xf32> -> vector<4x32xf32>
    %395 = arith.addf %391, %394 : vector<4x32xf32>
    %cst_161 = arith.constant dense<0.000000e+00> : vector<4x32xf32>
    %396 = tpu.matmul %363, %46, %cst_161 {dimension_numbers = #tpu.dot_dimension_numbers<[1], [0], [0], [1], [0, 0, 1, 1], [], []>} : vector<4x32xf32>, vector<32x32xf32>, vector<4x32xf32> -> vector<4x32xf32>
    %397 = arith.addf %392, %396 : vector<4x32xf32>
    %cst_162 = arith.constant dense<0.000000e+00> : vector<4x32xf32>
    %398 = tpu.matmul %363, %48, %cst_162 {dimension_numbers = #tpu.dot_dimension_numbers<[1], [0], [0], [1], [0, 0, 1, 1], [], []>} : vector<4x32xf32>, vector<32x32xf32>, vector<4x32xf32> -> vector<4x32xf32>
    %399 = arith.addf %398, %58 : vector<4x32xf32>
    %400 = arith.negf %395 : vector<4x32xf32>
    %401 = math.exp %400 : vector<4x32xf32>
    %cst_163 = arith.constant 1.000000e+00 : f32
    %402 = vector.broadcast %cst_163 : f32 to vector<4x32xf32>
    %403 = arith.addf %402, %401 : vector<4x32xf32>
    %404 = arith.divf %402, %403 : vector<4x32xf32>
    %405 = arith.negf %397 : vector<4x32xf32>
    %406 = math.exp %405 : vector<4x32xf32>
    %cst_164 = arith.constant 1.000000e+00 : f32
    %407 = vector.broadcast %cst_164 : f32 to vector<4x32xf32>
    %408 = arith.addf %407, %406 : vector<4x32xf32>
    %409 = arith.divf %407, %408 : vector<4x32xf32>
    %410 = arith.mulf %404, %399 : vector<4x32xf32>
    %411 = arith.addf %393, %410 : vector<4x32xf32>
    %412 = math.tanh %411 : vector<4x32xf32>
    %cst_165 = arith.constant 1.000000e+00 : f32
    %413 = vector.broadcast %cst_165 : f32 to vector<4x32xf32>
    %414 = arith.subf %413, %409 : vector<4x32xf32>
    %415 = arith.mulf %414, %412 : vector<4x32xf32>
    %416 = arith.mulf %409, %363 : vector<4x32xf32>
    %417 = arith.addf %415, %416 : vector<4x32xf32>
    %418 = vector.extract_strided_slice %28 {offsets = [4, 0], sizes = [4, 32], strides = [1, 1]} : vector<32x32xf32> to vector<4x32xf32>
    %419 = vector.extract_strided_slice %35 {offsets = [4, 0], sizes = [4, 32], strides = [1, 1]} : vector<32x32xf32> to vector<4x32xf32>
    %420 = vector.extract_strided_slice %42 {offsets = [4, 0], sizes = [4, 32], strides = [1, 1]} : vector<32x32xf32> to vector<4x32xf32>
    %cst_166 = arith.constant dense<0.000000e+00> : vector<4x32xf32>
    %421 = tpu.matmul %390, %50, %cst_166 {dimension_numbers = #tpu.dot_dimension_numbers<[1], [0], [0], [1], [0, 0, 1, 1], [], []>} : vector<4x32xf32>, vector<32x32xf32>, vector<4x32xf32> -> vector<4x32xf32>
    %422 = arith.addf %418, %421 : vector<4x32xf32>
    %cst_167 = arith.constant dense<0.000000e+00> : vector<4x32xf32>
    %423 = tpu.matmul %390, %52, %cst_167 {dimension_numbers = #tpu.dot_dimension_numbers<[1], [0], [0], [1], [0, 0, 1, 1], [], []>} : vector<4x32xf32>, vector<32x32xf32>, vector<4x32xf32> -> vector<4x32xf32>
    %424 = arith.addf %419, %423 : vector<4x32xf32>
    %cst_168 = arith.constant dense<0.000000e+00> : vector<4x32xf32>
    %425 = tpu.matmul %390, %54, %cst_168 {dimension_numbers = #tpu.dot_dimension_numbers<[1], [0], [0], [1], [0, 0, 1, 1], [], []>} : vector<4x32xf32>, vector<32x32xf32>, vector<4x32xf32> -> vector<4x32xf32>
    %426 = arith.addf %425, %62 : vector<4x32xf32>
    %427 = arith.negf %422 : vector<4x32xf32>
    %428 = math.exp %427 : vector<4x32xf32>
    %cst_169 = arith.constant 1.000000e+00 : f32
    %429 = vector.broadcast %cst_169 : f32 to vector<4x32xf32>
    %430 = arith.addf %429, %428 : vector<4x32xf32>
    %431 = arith.divf %429, %430 : vector<4x32xf32>
    %432 = arith.negf %424 : vector<4x32xf32>
    %433 = math.exp %432 : vector<4x32xf32>
    %cst_170 = arith.constant 1.000000e+00 : f32
    %434 = vector.broadcast %cst_170 : f32 to vector<4x32xf32>
    %435 = arith.addf %434, %433 : vector<4x32xf32>
    %436 = arith.divf %434, %435 : vector<4x32xf32>
    %437 = arith.mulf %431, %426 : vector<4x32xf32>
    %438 = arith.addf %420, %437 : vector<4x32xf32>
    %439 = math.tanh %438 : vector<4x32xf32>
    %cst_171 = arith.constant 1.000000e+00 : f32
    %440 = vector.broadcast %cst_171 : f32 to vector<4x32xf32>
    %441 = arith.subf %440, %436 : vector<4x32xf32>
    %442 = arith.mulf %441, %439 : vector<4x32xf32>
    %443 = arith.mulf %436, %390 : vector<4x32xf32>
    %444 = arith.addf %442, %443 : vector<4x32xf32>
    %445 = vector.extract_strided_slice %7 {offsets = [28, 0], sizes = [4, 32], strides = [1, 1]} : vector<32x32xf32> to vector<4x32xf32>
    %446 = vector.extract_strided_slice %14 {offsets = [28, 0], sizes = [4, 32], strides = [1, 1]} : vector<32x32xf32> to vector<4x32xf32>
    %447 = vector.extract_strided_slice %21 {offsets = [28, 0], sizes = [4, 32], strides = [1, 1]} : vector<32x32xf32> to vector<4x32xf32>
    %cst_172 = arith.constant dense<0.000000e+00> : vector<4x32xf32>
    %448 = tpu.matmul %417, %44, %cst_172 {dimension_numbers = #tpu.dot_dimension_numbers<[1], [0], [0], [1], [0, 0, 1, 1], [], []>} : vector<4x32xf32>, vector<32x32xf32>, vector<4x32xf32> -> vector<4x32xf32>
    %449 = arith.addf %445, %448 : vector<4x32xf32>
    %cst_173 = arith.constant dense<0.000000e+00> : vector<4x32xf32>
    %450 = tpu.matmul %417, %46, %cst_173 {dimension_numbers = #tpu.dot_dimension_numbers<[1], [0], [0], [1], [0, 0, 1, 1], [], []>} : vector<4x32xf32>, vector<32x32xf32>, vector<4x32xf32> -> vector<4x32xf32>
    %451 = arith.addf %446, %450 : vector<4x32xf32>
    %cst_174 = arith.constant dense<0.000000e+00> : vector<4x32xf32>
    %452 = tpu.matmul %417, %48, %cst_174 {dimension_numbers = #tpu.dot_dimension_numbers<[1], [0], [0], [1], [0, 0, 1, 1], [], []>} : vector<4x32xf32>, vector<32x32xf32>, vector<4x32xf32> -> vector<4x32xf32>
    %453 = arith.addf %452, %58 : vector<4x32xf32>
    %454 = arith.negf %449 : vector<4x32xf32>
    %455 = math.exp %454 : vector<4x32xf32>
    %cst_175 = arith.constant 1.000000e+00 : f32
    %456 = vector.broadcast %cst_175 : f32 to vector<4x32xf32>
    %457 = arith.addf %456, %455 : vector<4x32xf32>
    %458 = arith.divf %456, %457 : vector<4x32xf32>
    %459 = arith.negf %451 : vector<4x32xf32>
    %460 = math.exp %459 : vector<4x32xf32>
    %cst_176 = arith.constant 1.000000e+00 : f32
    %461 = vector.broadcast %cst_176 : f32 to vector<4x32xf32>
    %462 = arith.addf %461, %460 : vector<4x32xf32>
    %463 = arith.divf %461, %462 : vector<4x32xf32>
    %464 = arith.mulf %458, %453 : vector<4x32xf32>
    %465 = arith.addf %447, %464 : vector<4x32xf32>
    %466 = math.tanh %465 : vector<4x32xf32>
    %cst_177 = arith.constant 1.000000e+00 : f32
    %467 = vector.broadcast %cst_177 : f32 to vector<4x32xf32>
    %468 = arith.subf %467, %463 : vector<4x32xf32>
    %469 = arith.mulf %468, %466 : vector<4x32xf32>
    %470 = arith.mulf %463, %417 : vector<4x32xf32>
    %471 = arith.addf %469, %470 : vector<4x32xf32>
    %472 = vector.extract_strided_slice %28 {offsets = [0, 0], sizes = [4, 32], strides = [1, 1]} : vector<32x32xf32> to vector<4x32xf32>
    %473 = vector.extract_strided_slice %35 {offsets = [0, 0], sizes = [4, 32], strides = [1, 1]} : vector<32x32xf32> to vector<4x32xf32>
    %474 = vector.extract_strided_slice %42 {offsets = [0, 0], sizes = [4, 32], strides = [1, 1]} : vector<32x32xf32> to vector<4x32xf32>
    %cst_178 = arith.constant dense<0.000000e+00> : vector<4x32xf32>
    %475 = tpu.matmul %444, %50, %cst_178 {dimension_numbers = #tpu.dot_dimension_numbers<[1], [0], [0], [1], [0, 0, 1, 1], [], []>} : vector<4x32xf32>, vector<32x32xf32>, vector<4x32xf32> -> vector<4x32xf32>
    %476 = arith.addf %472, %475 : vector<4x32xf32>
    %cst_179 = arith.constant dense<0.000000e+00> : vector<4x32xf32>
    %477 = tpu.matmul %444, %52, %cst_179 {dimension_numbers = #tpu.dot_dimension_numbers<[1], [0], [0], [1], [0, 0, 1, 1], [], []>} : vector<4x32xf32>, vector<32x32xf32>, vector<4x32xf32> -> vector<4x32xf32>
    %478 = arith.addf %473, %477 : vector<4x32xf32>
    %cst_180 = arith.constant dense<0.000000e+00> : vector<4x32xf32>
    %479 = tpu.matmul %444, %54, %cst_180 {dimension_numbers = #tpu.dot_dimension_numbers<[1], [0], [0], [1], [0, 0, 1, 1], [], []>} : vector<4x32xf32>, vector<32x32xf32>, vector<4x32xf32> -> vector<4x32xf32>
    %480 = arith.addf %479, %62 : vector<4x32xf32>
    %481 = arith.negf %476 : vector<4x32xf32>
    %482 = math.exp %481 : vector<4x32xf32>
    %cst_181 = arith.constant 1.000000e+00 : f32
    %483 = vector.broadcast %cst_181 : f32 to vector<4x32xf32>
    %484 = arith.addf %483, %482 : vector<4x32xf32>
    %485 = arith.divf %483, %484 : vector<4x32xf32>
    %486 = arith.negf %478 : vector<4x32xf32>
    %487 = math.exp %486 : vector<4x32xf32>
    %cst_182 = arith.constant 1.000000e+00 : f32
    %488 = vector.broadcast %cst_182 : f32 to vector<4x32xf32>
    %489 = arith.addf %488, %487 : vector<4x32xf32>
    %490 = arith.divf %488, %489 : vector<4x32xf32>
    %491 = arith.mulf %485, %480 : vector<4x32xf32>
    %492 = arith.addf %474, %491 : vector<4x32xf32>
    %493 = math.tanh %492 : vector<4x32xf32>
    %cst_183 = arith.constant 1.000000e+00 : f32
    %494 = vector.broadcast %cst_183 : f32 to vector<4x32xf32>
    %495 = arith.subf %494, %490 : vector<4x32xf32>
    %496 = arith.mulf %495, %493 : vector<4x32xf32>
    %497 = arith.mulf %490, %444 : vector<4x32xf32>
    %498 = arith.addf %496, %497 : vector<4x32xf32>
    %499 = arith.addf %471, %498 : vector<4x32xf32>
    %500 = vector.extract_strided_slice %499 {offsets = [0, 0], sizes = [2, 32], strides = [1, 1]} : vector<4x32xf32> to vector<2x32xf32>
    %501 = vector.extract_strided_slice %499 {offsets = [2, 0], sizes = [2, 32], strides = [1, 1]} : vector<4x32xf32> to vector<2x32xf32>
    %c0_184 = arith.constant 0 : index
    %c0_185 = arith.constant 0 : index
    %502 = vector.load %arg6[%c0_184, %c0_185] : memref<32x32xf32, #tpu.memory_space<vmem>>, vector<32x32xf32>
    %cst_186 = arith.constant dense<0.000000e+00> : vector<2x32xf32>
    %503 = tpu.matmul %500, %502, %cst_186 {dimension_numbers = #tpu.dot_dimension_numbers<[1], [0], [0], [1], [0, 0, 1, 1], [], []>} : vector<2x32xf32>, vector<32x32xf32>, vector<2x32xf32> -> vector<2x32xf32>
    %c0_187 = arith.constant 0 : index
    %c0_188 = arith.constant 0 : index
    %504 = vector.load %arg7[%c0_187, %c0_188] : memref<32x32xf32, #tpu.memory_space<vmem>>, vector<32x32xf32>
    %cst_189 = arith.constant dense<0.000000e+00> : vector<2x32xf32>
    %505 = tpu.matmul %501, %504, %cst_189 {dimension_numbers = #tpu.dot_dimension_numbers<[1], [0], [0], [1], [0, 0, 1, 1], [], []>} : vector<2x32xf32>, vector<32x32xf32>, vector<2x32xf32> -> vector<2x32xf32>
    %506 = arith.addf %503, %505 : vector<2x32xf32>
    %c0_190 = arith.constant 0 : index
    %c0_191 = arith.constant 0 : index
    %507 = vector.load %arg8[%c0_190, %c0_191] : memref<1x32xf32, #tpu.memory_space<vmem>>, vector<1x32xf32>
    %508 = vector.broadcast %507 : vector<1x32xf32> to vector<2x32xf32>
    %509 = arith.addf %506, %508 : vector<2x32xf32>
    %cst_192 = arith.constant 0.000000e+00 : f32
    %510 = vector.broadcast %cst_192 : f32 to vector<2x32xf32>
    %511 = arith.maximumf %509, %510 : vector<2x32xf32>
    %c0_193 = arith.constant 0 : index
    %c0_194 = arith.constant 0 : index
    %512 = vector.load %arg9[%c0_193, %c0_194] : memref<32x3xf32, #tpu.memory_space<vmem>>, vector<32x3xf32>
    %cst_195 = arith.constant dense<0.000000e+00> : vector<2x3xf32>
    %513 = tpu.matmul %511, %512, %cst_195 {dimension_numbers = #tpu.dot_dimension_numbers<[1], [0], [0], [1], [0, 0, 1, 1], [], []>} : vector<2x32xf32>, vector<32x3xf32>, vector<2x3xf32> -> vector<2x3xf32>
    %c0_196 = arith.constant 0 : index
    %c0_197 = arith.constant 0 : index
    %514 = vector.load %arg10[%c0_196, %c0_197] : memref<1x3xf32, #tpu.memory_space<vmem>>, vector<1x3xf32>
    %515 = vector.broadcast %514 : vector<1x3xf32> to vector<2x3xf32>
    %516 = arith.addf %513, %515 : vector<2x3xf32>
    %c0_198 = arith.constant 0 : index
    %c0_199 = arith.constant 0 : index
    %517 = vector.load %arg11[%c0_198, %c0_199] : memref<2x3xf32, #tpu.memory_space<vmem>>, vector<2x3xf32>
    tpu.vector_store %arg11[%c0_198, %c0_199], %516 {strides = array<i32>} : memref<2x3xf32, #tpu.memory_space<vmem>>, vector<2x3xf32>,
    return
  }
}

</mosaic_0001>

<llo_original>
// kernel: tpu_custom_call.1
$region0: #{tpu_custom_call.1}
  #allocation0 [shape = 'u32[]', space=smem, size = 0x4, offset = 0x4, fixed_abs, tag = 'smem constant byte address 0x4 - core index']
  #allocation1 [shape = 'u32[144,128]{1,0:T(1,128)}', space=vmem, size = 0x12000, scoped, tag = 'internal scratch']
  %s0 = inlined_call_operand.vmem [shape: bf16[32,32], index: 0, kind: input, shape index: {}]
  %s1 = inlined_call_operand.vmem [shape: f32[2,4,32], index: 1, kind: input, shape index: {}]
  %s2 = inlined_call_operand.hbm [shape: bf16[2,3,32,32], index: 2, kind: input, shape index: {}]
  %s3 = inlined_call_operand.hbm [shape: f32[2,3,32,32], index: 3, kind: input, shape index: {}]
  %s4 = inlined_call_operand.hbm [shape: f32[2,3,1,32], index: 4, kind: input, shape index: {}]
  %s5 = inlined_call_operand.vmem [shape: f32[2,1,32], index: 5, kind: input, shape index: {}]
  %s6 = inlined_call_operand.vmem [shape: f32[32,32], index: 6, kind: input, shape index: {}]
  %s7 = inlined_call_operand.hbm [shape: f32[32,32], index: 7, kind: input, shape index: {}]
  %s8 = inlined_call_operand.vmem [shape: f32[1,32], index: 8, kind: input, shape index: {}]
  %s9 = inlined_call_operand.vmem [shape: f32[32,3], index: 9, kind: input, shape index: {}]
  %s10 = inlined_call_operand.vmem [shape: f32[1,3], index: 10, kind: input, shape index: {}]
  %s11 = inlined_call_operand.hbm [shape: f32[2,3], index: 11, kind: output, shape index: {}]
  %s12 = sld [smem:[#allocation0]]
  $region70: #{tpu_custom_call.1} parent=0
    _
  %s14 = ssub.s32 1, %s12
  %s15 = scalar_select 0, %s14, %s12
  $region1: #{tpu_custom_call.1} parent=0
    #allocation2 [shape = 'u8[49152]{0}', space=vmem, size = 0xc000, scoped, tag = 'input window, operand 2, single buffered']
    #allocation3 [shape = 's32[1]{0}', space=sflag, size = 0x4, scoped, tag = 'scoped memory for tpu_custom_call.1']
    #allocation4 [shape = 's32[1]{0}', space=sflag, size = 0x4, scoped, tag = 'scoped memory for tpu_custom_call.1']
    #allocation5 [shape = 'u8[98304]{0}', space=vmem, size = 0x18000, scoped, tag = 'input window, operand 3, single buffered']
    #allocation6 [shape = 's32[1]{0}', space=sflag, size = 0x4, scoped, tag = 'scoped memory for tpu_custom_call.1']
    #allocation7 [shape = 'u8[3072]{0}', space=vmem, size = 0xc00, scoped, tag = 'input window, operand 4, single buffered']
    #allocation8 [shape = 'u8[16384]{0}', space=vmem, size = 0x4000, scoped, tag = 'input window, operand 7, single buffered']
    #allocation9 [shape = 's32[1]{0}', space=sflag, size = 0x4, scoped, tag = 'scoped memory for tpu_custom_call.1']
    #allocation10 [shape = 'u8[1024]{0}', space=vmem, size = 0x400, scoped, tag = 'output window, operand 0, single buffered']
    %16 = vsyncpa [#allocation3], 0
    %17 = vsyncpa [#allocation6], 0
    %18 = vsyncpa [#allocation9], 0
    %19 = vsyncpa [#allocation4], 0
    // Predicated region
    $region2: #{tpu_custom_call.1} parent=1 // pred_check
      _
    $region3: #{tpu_custom_call.1} parent=1 // pred_check_branch
      %21 = sbr.rel (0) target = $region5
    $region4: #{tpu_custom_call.1} parent=1 // pred_region
      _
    $region5: #{tpu_custom_call.1} parent=1 // pred_fallthru
      _
    // Predicated region
    $region6: #{tpu_custom_call.1} parent=1 // pred_check
      _
    $region7: #{tpu_custom_call.1} parent=1 // pred_check_branch
      %23 = sbr.rel (0) target = $region9
    $region8: #{tpu_custom_call.1} parent=1 // pred_region
      _
    $region9: #{tpu_custom_call.1} parent=1 // pred_fallthru
      _
    // Predicated region
    $region10: #{tpu_custom_call.1} parent=1 // pred_check
      _
    $region11: #{tpu_custom_call.1} parent=1 // pred_check_branch
      %25 = sbr.rel (0) target = $region13
    $region12: #{tpu_custom_call.1} parent=1 // pred_region
      %s27 = ssub.s32 1536, 1536
      %28 = vsyncadd [#allocation3], %s27
      %s29 = sshll.u32 [#allocation2], 4
      %s30 = int_to_ptr.vmem [resolvable:$true] %s29
      %35 = dma.hbm_to_vmem [thread:$0]  %s2, 1536, %s30, [#allocation3], 64, 64, 4
    $region13: #{tpu_custom_call.1} parent=1 // pred_fallthru
      _
    // Predicated region
    $region14: #{tpu_custom_call.1} parent=1 // pred_check
      _
    $region15: #{tpu_custom_call.1} parent=1 // pred_check_branch
      %37 = sbr.rel (0) target = $region17
    $region16: #{tpu_custom_call.1} parent=1 // pred_region
      %s39 = ssub.s32 3072, 3072
      %40 = vsyncadd [#allocation6], %s39
      %s41 = sshll.u32 [#allocation5], 4
      %s42 = int_to_ptr.vmem [resolvable:$true] %s41
      %47 = dma.hbm_to_vmem [thread:$0]  %s3, 3072, %s42, [#allocation6], 128, 128, 8
    $region17: #{tpu_custom_call.1} parent=1 // pred_fallthru
      _
    // Predicated region
    $region18: #{tpu_custom_call.1} parent=1 // pred_check
      _
    $region19: #{tpu_custom_call.1} parent=1 // pred_check_branch
      %49 = sbr.rel (0) target = $region21
    $region20: #{tpu_custom_call.1} parent=1 // pred_region
      %s51 = ssub.s32 96, 96
      %52 = vsyncadd [#allocation6], %s51
      %s53 = sshll.u32 [#allocation7], 4
      %s54 = int_to_ptr.vmem [resolvable:$true] %s53
      %59 = dma.hbm_to_vmem [thread:$0]  %s4, 96, %s54, [#allocation6], 16, 16, 1
    $region21: #{tpu_custom_call.1} parent=1 // pred_fallthru
      _
    // Predicated region
    $region22: #{tpu_custom_call.1} parent=1 // pred_check
      _
    $region23: #{tpu_custom_call.1} parent=1 // pred_check_branch
      %61 = sbr.rel (0) target = $region25
    $region24: #{tpu_custom_call.1} parent=1 // pred_region
      _
    $region25: #{tpu_custom_call.1} parent=1 // pred_fallthru
      _
    // Predicated region
    $region26: #{tpu_custom_call.1} parent=1 // pred_check
      _
    $region27: #{tpu_custom_call.1} parent=1 // pred_check_branch
      %63 = sbr.rel (0) target = $region29
    $region28: #{tpu_custom_call.1} parent=1 // pred_region
      _
    $region29: #{tpu_custom_call.1} parent=1 // pred_fallthru
      _
    // Predicated region
    $region30: #{tpu_custom_call.1} parent=1 // pred_check
      _
    $region31: #{tpu_custom_call.1} parent=1 // pred_check_branch
      %65 = sbr.rel (0) target = $region33
    $region32: #{tpu_custom_call.1} parent=1 // pred_region
      %s67 = ssub.s32 512, 512
      %68 = vsyncadd [#allocation9], %s67
      %s69 = sshll.u32 [#allocation8], 4
      %s70 = int_to_ptr.vmem [resolvable:$true] %s69
      %75 = dma.hbm_to_vmem [thread:$0]  %s7, 512, %s70, [#allocation9], 128, 128, 8
    $region33: #{tpu_custom_call.1} parent=1 // pred_fallthru
      _
    // Predicated region
    $region34: #{tpu_custom_call.1} parent=1 // pred_check
      _
    $region35: #{tpu_custom_call.1} parent=1 // pred_check_branch
      %77 = sbr.rel (0) target = $region37
    $region36: #{tpu_custom_call.1} parent=1 // pred_region
      _
    $region37: #{tpu_custom_call.1} parent=1 // pred_fallthru
      _
    // Predicated region
    $region38: #{tpu_custom_call.1} parent=1 // pred_check
      _
    $region39: #{tpu_custom_call.1} parent=1 // pred_check_branch
      %79 = sbr.rel (0) target = $region41
    $region40: #{tpu_custom_call.1} parent=1 // pred_region
      _
    $region41: #{tpu_custom_call.1} parent=1 // pred_fallthru
      _
    // Predicated region
    $region42: #{tpu_custom_call.1} parent=1 // pred_check
      _
    $region43: #{tpu_custom_call.1} parent=1 // pred_check_branch
      %81 = sbr.rel (0) target = $region45
    $region44: #{tpu_custom_call.1} parent=1 // pred_region
      _
    $region45: #{tpu_custom_call.1} parent=1 // pred_fallthru
      _
    // Predicated region
    $region46: #{tpu_custom_call.1} parent=1 // pred_check
      _
    $region47: #{tpu_custom_call.1} parent=1 // pred_check_branch
      %83 = sbr.rel (0) target = $region49
    $region48: #{tpu_custom_call.1} parent=1 // pred_region
      %84 = dma.done [#allocation3], 1536
    $region49: #{tpu_custom_call.1} parent=1 // pred_fallthru
      _
    // Predicated region
    $region50: #{tpu_custom_call.1} parent=1 // pred_check
      _
    $region51: #{tpu_custom_call.1} parent=1 // pred_check_branch
      %86 = sbr.rel (0) target = $region53
    $region52: #{tpu_custom_call.1} parent=1 // pred_region
      %87 = dma.done [#allocation6], 3072
    $region53: #{tpu_custom_call.1} parent=1 // pred_fallthru
      _
    // Predicated region
    $region54: #{tpu_custom_call.1} parent=1 // pred_check
      _
    $region55: #{tpu_custom_call.1} parent=1 // pred_check_branch
      %89 = sbr.rel (0) target = $region57
    $region56: #{tpu_custom_call.1} parent=1 // pred_region
      %90 = dma.done [#allocation6], 96
    $region57: #{tpu_custom_call.1} parent=1 // pred_fallthru
      _
    // Predicated region
    $region58: #{tpu_custom_call.1} parent=1 // pred_check
      _
    $region59: #{tpu_custom_call.1} parent=1 // pred_check_branch
      %92 = sbr.rel (0) target = $region61
    $region60: #{tpu_custom_call.1} parent=1 // pred_region
      %93 = dma.done [#allocation9], 512
    $region61: #{tpu_custom_call.1} parent=1 // pred_fallthru
      _
    %v95 = vld [vmem:[%s0] sm:$0xf]
    %v96 = vld [vmem:[%s0 + $0x4] sm:$0xf]
    %v97 = vld [vmem:[%s0 + $0x8] sm:$0xf]
    %v98 = vld [vmem:[%s0 + $0xc] sm:$0xf]
    %v99 = vld [vmem:[#allocation2] sm:$0xf]
    %v100 = vld [vmem:[#allocation2 + $0x4] sm:$0xf]
    %v101 = vld [vmem:[#allocation2 + $0x8] sm:$0xf]
    %v102 = vld [vmem:[#allocation2 + $0xc] sm:$0xf]
    %v103 = vld [vmem:[#allocation7] sm:$0x1]
    %v105 = vlaneseq
    %v106 = vshrl.u32 %v105, 7
    %v107 = vsub.s32 0, %v106
    %v108 = vrot.slane %v103, %v107
    %v114 = vunpack.c.l.b16 %v95
    %v115 = vunpack.c.l.b16 %v96
    %v116 = vunpack.c.l.b16 %v97
    %v117 = vunpack.c.l.b16 %v98
    %v118 = vpack.c.b16 %v115, %v114
    %v119 = vpack.c.b16 %v117, %v116
    %v124 = vunpack.c.l.b16 %v99
    %v125 = vunpack.c.l.b16 %v100
    %v126 = vunpack.c.l.b16 %v101
    %v127 = vunpack.c.l.b16 %v102
    %v128 = vpack.c.b16 %v125, %v124
    %v129 = vpack.c.b16 %v127, %v126
    %vm132 = vcmask 261120
    %v134 = vsel %vm132, %v118, 0
    %v137 = vsel %vm132, %v119, 0
    %139 = vmatprep.subr.bf16.mxu0 0
    %140 = vmatpush1.bf16.msra.mxu0 %v128
    %141 = vmatprep.subr.bf16.mxu0 0
    %142 = vmatpush1.bf16.msra.mxu0 %v129
    %143 = vmatprep.subr.bf16.mxu0 0
    %144 = vmatpush1.bf16.msra.mxu0 0
    %145 = vmatprep.subr.bf16.mxu0 0
    %146 = vmatpush1.bf16.msra.mxu0 0
    %147 = vmatprep.subr.bf16.mxu0 0
    %148 = vmatpush1.bf16.msra.mxu0 0
    %149 = vmatprep.subr.bf16.mxu0 0
    %150 = vmatpush1.bf16.msra.mxu0 0
    %151 = vmatprep.subr.bf16.mxu0 0
    %152 = vmatpush1.bf16.msra.mxu0 0
    %153 = vmatprep.subr.bf16.mxu0 0
    %154 = vmatpush1.bf16.msra.mxu0 0
    %155 = vmatprep.subr.bf16.mxu0 0
    %156 = vmatpush1.bf16.msra.mxu0 0
    %157 = vmatprep.subr.bf16.mxu0 0
    %158 = vmatpush1.bf16.msra.mxu0 0
    %159 = vmatprep.subr.bf16.mxu0 0
    %160 = vmatpush1.bf16.msra.mxu0 0
    %161 = vmatprep.subr.bf16.mxu0 0
    %162 = vmatpush1.bf16.msra.mxu0 0
    %163 = vmatprep.subr.bf16.mxu0 0
    %164 = vmatpush1.bf16.msra.mxu0 0
    %165 = vmatprep.subr.bf16.mxu0 0
    %166 = vmatpush1.bf16.msra.mxu0 0
    %167 = vmatprep.subr.bf16.mxu0 0
    %168 = vmatpush1.bf16.msra.mxu0 0
    %169 = vmatprep.subr.bf16.mxu0 0
    %170 = vmatpush1.bf16.msra.mxu0 0
    %171 = vmatprep.mubr.bf16.mxu0 0
    %172 = vmatmul.mubr.bf16.gmra.mrb[0].mxu0 %v134
    %v173 = vpop.f32.mrb[0].mxu0
    %v174 = vadd.f32 %v108, %v173
    %v175 = vpop.f32.mrb[0].mxu0
    %v176 = vpop.f32.mrb[0].mxu0
    %v177 = vadd.f32 %v108, %v176
    %v178 = vpop.f32.mrb[0].mxu0
    %179 = vmatprep.mubr.bf16.mxu0 0
    %180 = vmatmul.mubr.bf16.gmra.mrb[0].mxu0 %v137
    %v181 = vpop.f32.mrb[0].mxu0
    %v182 = vadd.f32 %v108, %v181
    %v183 = vpop.f32.mrb[0].mxu0
    %v184 = vpop.f32.mrb[0].mxu0
    %v185 = vadd.f32 %v108, %v184
    %v186 = vpop.f32.mrb[0].mxu0
    %187 = vdwg.mxu0
    %s188 = scalar_lea.vmem [#allocation2], 16
    %v189 = vld [vmem:[%s188] sm:$0xf]
    %v190 = vld [vmem:[%s188 + $0x4] sm:$0xf]
    %v191 = vld [vmem:[%s188 + $0x8] sm:$0xf]
    %v192 = vld [vmem:[%s188 + $0xc] sm:$0xf]
    %s193 = scalar_lea.vmem [#allocation7], 1
    %v194 = vld [vmem:[%s193] sm:$0x1]
    %v196 = vlaneseq
    %v197 = vshrl.u32 %v196, 7
    %v198 = vsub.s32 0, %v197
    %v199 = vrot.slane %v194, %v198
    %v205 = vunpack.c.l.b16 %v189
    %v206 = vunpack.c.l.b16 %v190
    %v207 = vunpack.c.l.b16 %v191
    %v208 = vunpack.c.l.b16 %v192
    %v209 = vpack.c.b16 %v206, %v205
    %v210 = vpack.c.b16 %v208, %v207
    %213 = vmatprep.subr.bf16.mxu0 0
    %214 = vmatpush1.bf16.msra.mxu0 %v209
    %215 = vmatprep.subr.bf16.mxu0 0
    %216 = vmatpush1.bf16.msra.mxu0 %v210
    %217 = vmatprep.subr.bf16.mxu0 0
    %218 = vmatpush1.bf16.msra.mxu0 0
    %219 = vmatprep.subr.bf16.mxu0 0
    %220 = vmatpush1.bf16.msra.mxu0 0
    %221 = vmatprep.subr.bf16.mxu0 0
    %222 = vmatpush1.bf16.msra.mxu0 0
    %223 = vmatprep.subr.bf16.mxu0 0
    %224 = vmatpush1.bf16.msra.mxu0 0
    %225 = vmatprep.subr.bf16.mxu0 0
    %226 = vmatpush1.bf16.msra.mxu0 0
    %227 = vmatprep.subr.bf16.mxu0 0
    %228 = vmatpush1.bf16.msra.mxu0 0
    %229 = vmatprep.subr.bf16.mxu0 0
    %230 = vmatpush1.bf16.msra.mxu0 0
    %231 = vmatprep.subr.bf16.mxu0 0
    %232 = vmatpush1.bf16.msra.mxu0 0
    %233 = vmatprep.subr.bf16.mxu0 0
    %234 = vmatpush1.bf16.msra.mxu0 0
    %235 = vmatprep.subr.bf16.mxu0 0
    %236 = vmatpush1.bf16.msra.mxu0 0
    %237 = vmatprep.subr.bf16.mxu0 0
    %238 = vmatpush1.bf16.msra.mxu0 0
    %239 = vmatprep.subr.bf16.mxu0 0
    %240 = vmatpush1.bf16.msra.mxu0 0
    %241 = vmatprep.subr.bf16.mxu0 0
    %242 = vmatpush1.bf16.msra.mxu0 0
    %243 = vmatprep.subr.bf16.mxu0 0
    %244 = vmatpush1.bf16.msra.mxu0 0
    %245 = vmatprep.mubr.bf16.mxu0 0
    %246 = vmatmul.mubr.bf16.gmra.mrb[0].mxu0 %v134
    %v247 = vpop.f32.mrb[0].mxu0
    %v248 = vadd.f32 %v199, %v247
    %v249 = vpop.f32.mrb[0].mxu0
    %v250 = vpop.f32.mrb[0].mxu0
    %v251 = vadd.f32 %v199, %v250
    %v252 = vpop.f32.mrb[0].mxu0
    %253 = vmatprep.mubr.bf16.mxu0 0
    %254 = vmatmul.mubr.bf16.gmra.mrb[0].mxu0 %v137
    %v255 = vpop.f32.mrb[0].mxu0
    %v256 = vadd.f32 %v199, %v255
    %v257 = vpop.f32.mrb[0].mxu0
    %v258 = vpop.f32.mrb[0].mxu0
    %v259 = vadd.f32 %v199, %v258
    %v260 = vpop.f32.mrb[0].mxu0
    %261 = vdwg.mxu0
    %s262 = scalar_lea.vmem [#allocation2], 32
    %v263 = vld [vmem:[%s262] sm:$0xf]
    %v264 = vld [vmem:[%s262 + $0x4] sm:$0xf]
    %v265 = vld [vmem:[%s262 + $0x8] sm:$0xf]
    %v266 = vld [vmem:[%s262 + $0xc] sm:$0xf]
    %s267 = scalar_lea.vmem [#allocation7], 2
    %v268 = vld [vmem:[%s267] sm:$0x1]
    %v270 = vlaneseq
    %v271 = vshrl.u32 %v270, 7
    %v272 = vsub.s32 0, %v271
    %v273 = vrot.slane %v268, %v272
    %v279 = vunpack.c.l.b16 %v263
    %v280 = vunpack.c.l.b16 %v264
    %v281 = vunpack.c.l.b16 %v265
    %v282 = vunpack.c.l.b16 %v266
    %v283 = vpack.c.b16 %v280, %v279
    %v284 = vpack.c.b16 %v282, %v281
    %287 = vmatprep.subr.bf16.mxu0 0
    %288 = vmatpush1.bf16.msra.mxu0 %v283
    %289 = vmatprep.subr.bf16.mxu0 0
    %290 = vmatpush1.bf16.msra.mxu0 %v284
    %291 = vmatprep.subr.bf16.mxu0 0
    %292 = vmatpush1.bf16.msra.mxu0 0
    %293 = vmatprep.subr.bf16.mxu0 0
    %294 = vmatpush1.bf16.msra.mxu0 0
    %295 = vmatprep.subr.bf16.mxu0 0
    %296 = vmatpush1.bf16.msra.mxu0 0
    %297 = vmatprep.subr.bf16.mxu0 0
    %298 = vmatpush1.bf16.msra.mxu0 0
    %299 = vmatprep.subr.bf16.mxu0 0
    %300 = vmatpush1.bf16.msra.mxu0 0
    %301 = vmatprep.subr.bf16.mxu0 0
    %302 = vmatpush1.bf16.msra.mxu0 0
    %303 = vmatprep.subr.bf16.mxu0 0
    %304 = vmatpush1.bf16.msra.mxu0 0
    %305 = vmatprep.subr.bf16.mxu0 0
    %306 = vmatpush1.bf16.msra.mxu0 0
    %307 = vmatprep.subr.bf16.mxu0 0
    %308 = vmatpush1.bf16.msra.mxu0 0
    %309 = vmatprep.subr.bf16.mxu0 0
    %310 = vmatpush1.bf16.msra.mxu0 0
    %311 = vmatprep.subr.bf16.mxu0 0
    %312 = vmatpush1.bf16.msra.mxu0 0
    %313 = vmatprep.subr.bf16.mxu0 0
    %314 = vmatpush1.bf16.msra.mxu0 0
    %315 = vmatprep.subr.bf16.mxu0 0
    %316 = vmatpush1.bf16.msra.mxu0 0
    %317 = vmatprep.subr.bf16.mxu0 0
    %318 = vmatpush1.bf16.msra.mxu0 0
    %319 = vmatprep.mubr.bf16.mxu0 0
    %320 = vmatmul.mubr.bf16.gmra.mrb[0].mxu0 %v134
    %v321 = vpop.f32.mrb[0].mxu0
    %v322 = vadd.f32 %v273, %v321
    %v323 = vpop.f32.mrb[0].mxu0
    %v324 = vpop.f32.mrb[0].mxu0
    %v325 = vadd.f32 %v273, %v324
    %v326 = vpop.f32.mrb[0].mxu0
    %327 = vmatprep.mubr.bf16.mxu0 0
    %328 = vmatmul.mubr.bf16.gmra.mrb[0].mxu0 %v137
    %v329 = vpop.f32.mrb[0].mxu0
    %v330 = vadd.f32 %v273, %v329
    %v331 = vpop.f32.mrb[0].mxu0
    %v332 = vpop.f32.mrb[0].mxu0
    %v333 = vadd.f32 %v273, %v332
    %v334 = vpop.f32.mrb[0].mxu0
    %335 = vdwg.mxu0
    %s336 = scalar_lea.vmem [#allocation2], 48
    %v337 = vld [vmem:[%s336] sm:$0xf]
    %v338 = vld [vmem:[%s336 + $0x4] sm:$0xf]
    %v339 = vld [vmem:[%s336 + $0x8] sm:$0xf]
    %v340 = vld [vmem:[%s336 + $0xc] sm:$0xf]
    %s341 = scalar_lea.vmem [#allocation7], 3
    %v342 = vld [vmem:[%s341] sm:$0x1]
    %v344 = vlaneseq
    %v345 = vshrl.u32 %v344, 7
    %v346 = vsub.s32 0, %v345
    %v347 = vrot.slane %v342, %v346
    %v353 = vunpack.c.l.b16 %v337
    %v354 = vunpack.c.l.b16 %v338
    %v355 = vunpack.c.l.b16 %v339
    %v356 = vunpack.c.l.b16 %v340
    %v357 = vpack.c.b16 %v354, %v353
    %v358 = vpack.c.b16 %v356, %v355
    %361 = vmatprep.subr.bf16.mxu0 0
    %362 = vmatpush1.bf16.msra.mxu0 %v357
    %363 = vmatprep.subr.bf16.mxu0 0
    %364 = vmatpush1.bf16.msra.mxu0 %v358
    %365 = vmatprep.subr.bf16.mxu0 0
    %366 = vmatpush1.bf16.msra.mxu0 0
    %367 = vmatprep.subr.bf16.mxu0 0
    %368 = vmatpush1.bf16.msra.mxu0 0
    %369 = vmatprep.subr.bf16.mxu0 0
    %370 = vmatpush1.bf16.msra.mxu0 0
    %371 = vmatprep.subr.bf16.mxu0 0
    %372 = vmatpush1.bf16.msra.mxu0 0
    %373 = vmatprep.subr.bf16.mxu0 0
    %374 = vmatpush1.bf16.msra.mxu0 0
    %375 = vmatprep.subr.bf16.mxu0 0
    %376 = vmatpush1.bf16.msra.mxu0 0
    %377 = vmatprep.subr.bf16.mxu0 0
    %378 = vmatpush1.bf16.msra.mxu0 0
    %379 = vmatprep.subr.bf16.mxu0 0
    %380 = vmatpush1.bf16.msra.mxu0 0
    %381 = vmatprep.subr.bf16.mxu0 0
    %382 = vmatpush1.bf16.msra.mxu0 0
    %383 = vmatprep.subr.bf16.mxu0 0
    %384 = vmatpush1.bf16.msra.mxu0 0
    %385 = vmatprep.subr.bf16.mxu0 0
    %386 = vmatpush1.bf16.msra.mxu0 0
    %387 = vmatprep.subr.bf16.mxu0 0
    %388 = vmatpush1.bf16.msra.mxu0 0
    %389 = vmatprep.subr.bf16.mxu0 0
    %390 = vmatpush1.bf16.msra.mxu0 0
    %391 = vmatprep.subr.bf16.mxu0 0
    %392 = vmatpush1.bf16.msra.mxu0 0
    %393 = vmatprep.mubr.bf16.mxu0 0
    %394 = vmatmul.mubr.bf16.gmra.mrb[0].mxu0 %v134
    %v395 = vpop.f32.mrb[0].mxu0
    %v396 = vadd.f32 %v347, %v395
    %v397 = vpop.f32.mrb[0].mxu0
    %v398 = vpop.f32.mrb[0].mxu0
    %v399 = vadd.f32 %v347, %v398
    %v400 = vpop.f32.mrb[0].mxu0
    %401 = vmatprep.mubr.bf16.mxu0 0
    %402 = vmatmul.mubr.bf16.gmra.mrb[0].mxu0 %v137
    %v403 = vpop.f32.mrb[0].mxu0
    %v404 = vadd.f32 %v347, %v403
    %v405 = vpop.f32.mrb[0].mxu0
    %v406 = vpop.f32.mrb[0].mxu0
    %v407 = vadd.f32 %v347, %v406
    %v408 = vpop.f32.mrb[0].mxu0
    %409 = vdwg.mxu0
    %s410 = scalar_lea.vmem [#allocation2], 64
    %v411 = vld [vmem:[%s410] sm:$0xf]
    %v412 = vld [vmem:[%s410 + $0x4] sm:$0xf]
    %v413 = vld [vmem:[%s410 + $0x8] sm:$0xf]
    %v414 = vld [vmem:[%s410 + $0xc] sm:$0xf]
    %s415 = scalar_lea.vmem [#allocation7], 4
    %v416 = vld [vmem:[%s415] sm:$0x1]
    %v418 = vlaneseq
    %v419 = vshrl.u32 %v418, 7
    %v420 = vsub.s32 0, %v419
    %v421 = vrot.slane %v416, %v420
    %v427 = vunpack.c.l.b16 %v411
    %v428 = vunpack.c.l.b16 %v412
    %v429 = vunpack.c.l.b16 %v413
    %v430 = vunpack.c.l.b16 %v414
    %v431 = vpack.c.b16 %v428, %v427
    %v432 = vpack.c.b16 %v430, %v429
    %435 = vmatprep.subr.bf16.mxu0 0
    %436 = vmatpush1.bf16.msra.mxu0 %v431
    %437 = vmatprep.subr.bf16.mxu0 0
    %438 = vmatpush1.bf16.msra.mxu0 %v432
    %439 = vmatprep.subr.bf16.mxu0 0
    %440 = vmatpush1.bf16.msra.mxu0 0
    %441 = vmatprep.subr.bf16.mxu0 0
    %442 = vmatpush1.bf16.msra.mxu0 0
    %443 = vmatprep.subr.bf16.mxu0 0
    %444 = vmatpush1.bf16.msra.mxu0 0
    %445 = vmatprep.subr.bf16.mxu0 0
    %446 = vmatpush1.bf16.msra.mxu0 0
    %447 = vmatprep.subr.bf16.mxu0 0
    %448 = vmatpush1.bf16.msra.mxu0 0
    %449 = vmatprep.subr.bf16.mxu0 0
    %450 = vmatpush1.bf16.msra.mxu0 0
    %451 = vmatprep.subr.bf16.mxu0 0
    %452 = vmatpush1.bf16.msra.mxu0 0
    %453 = vmatprep.subr.bf16.mxu0 0
    %454 = vmatpush1.bf16.msra.mxu0 0
    %455 = vmatprep.subr.bf16.mxu0 0
    %456 = vmatpush1.bf16.msra.mxu0 0
    %457 = vmatprep.subr.bf16.mxu0 0
    %458 = vmatpush1.bf16.msra.mxu0 0
    %459 = vmatprep.subr.bf16.mxu0 0
    %460 = vmatpush1.bf16.msra.mxu0 0
    %461 = vmatprep.subr.bf16.mxu0 0
    %462 = vmatpush1.bf16.msra.mxu0 0
    %463 = vmatprep.subr.bf16.mxu0 0
    %464 = vmatpush1.bf16.msra.mxu0 0
    %465 = vmatprep.subr.bf16.mxu0 0
    %466 = vmatpush1.bf16.msra.mxu0 0
    %467 = vmatprep.mubr.bf16.mxu0 0
    %468 = vmatmul.mubr.bf16.gmra.mrb[0].mxu0 %v134
    %v469 = vpop.f32.mrb[0].mxu0
    %v470 = vadd.f32 %v421, %v469
    %v471 = vpop.f32.mrb[0].mxu0
    %v472 = vpop.f32.mrb[0].mxu0
    %v473 = vadd.f32 %v421, %v472
    %v474 = vpop.f32.mrb[0].mxu0
    %475 = vmatprep.mubr.bf16.mxu0 0
    %476 = vmatmul.mubr.bf16.gmra.mrb[0].mxu0 %v137
    %v477 = vpop.f32.mrb[0].mxu0
    %v478 = vadd.f32 %v421, %v477
    %v479 = vpop.f32.mrb[0].mxu0
    %v480 = vpop.f32.mrb[0].mxu0
    %v481 = vadd.f32 %v421, %v480
    %v482 = vpop.f32.mrb[0].mxu0
    %483 = vdwg.mxu0
    %s484 = scalar_lea.vmem [#allocation2], 80
    %v485 = vld [vmem:[%s484] sm:$0xf]
    %v486 = vld [vmem:[%s484 + $0x4] sm:$0xf]
    %v487 = vld [vmem:[%s484 + $0x8] sm:$0xf]
    %v488 = vld [vmem:[%s484 + $0xc] sm:$0xf]
    %s489 = scalar_lea.vmem [#allocation7], 5
    %v490 = vld [vmem:[%s489] sm:$0x1]
    %v492 = vlaneseq
    %v493 = vshrl.u32 %v492, 7
    %v494 = vsub.s32 0, %v493
    %v495 = vrot.slane %v490, %v494
    %v501 = vunpack.c.l.b16 %v485
    %v502 = vunpack.c.l.b16 %v486
    %v503 = vunpack.c.l.b16 %v487
    %v504 = vunpack.c.l.b16 %v488
    %v505 = vpack.c.b16 %v502, %v501
    %v506 = vpack.c.b16 %v504, %v503
    %509 = vmatprep.subr.bf16.mxu0 0
    %510 = vmatpush1.bf16.msra.mxu0 %v505
    %511 = vmatprep.subr.bf16.mxu0 0
    %512 = vmatpush1.bf16.msra.mxu0 %v506
    %513 = vmatprep.subr.bf16.mxu0 0
    %514 = vmatpush1.bf16.msra.mxu0 0
    %515 = vmatprep.subr.bf16.mxu0 0
    %516 = vmatpush1.bf16.msra.mxu0 0
    %517 = vmatprep.subr.bf16.mxu0 0
    %518 = vmatpush1.bf16.msra.mxu0 0
    %519 = vmatprep.subr.bf16.mxu0 0
    %520 = vmatpush1.bf16.msra.mxu0 0
    %521 = vmatprep.subr.bf16.mxu0 0
    %522 = vmatpush1.bf16.msra.mxu0 0
    %523 = vmatprep.subr.bf16.mxu0 0
    %524 = vmatpush1.bf16.msra.mxu0 0
    %525 = vmatprep.subr.bf16.mxu0 0
    %526 = vmatpush1.bf16.msra.mxu0 0
    %527 = vmatprep.subr.bf16.mxu0 0
    %528 = vmatpush1.bf16.msra.mxu0 0
    %529 = vmatprep.subr.bf16.mxu0 0
    %530 = vmatpush1.bf16.msra.mxu0 0
    %531 = vmatprep.subr.bf16.mxu0 0
    %532 = vmatpush1.bf16.msra.mxu0 0
    %533 = vmatprep.subr.bf16.mxu0 0
    %534 = vmatpush1.bf16.msra.mxu0 0
    %535 = vmatprep.subr.bf16.mxu0 0
    %536 = vmatpush1.bf16.msra.mxu0 0
    %537 = vmatprep.subr.bf16.mxu0 0
    %538 = vmatpush1.bf16.msra.mxu0 0
    %539 = vmatprep.subr.bf16.mxu0 0
    %540 = vmatpush1.bf16.msra.mxu0 0
    %541 = vmatprep.mubr.bf16.mxu0 0
    %542 = vmatmul.mubr.bf16.gmra.mrb[0].mxu0 %v134
    %v543 = vpop.f32.mrb[0].mxu0
    %v544 = vadd.f32 %v495, %v543
    %v545 = vpop.f32.mrb[0].mxu0
    %v546 = vpop.f32.mrb[0].mxu0
    %v547 = vadd.f32 %v495, %v546
    %v548 = vpop.f32.mrb[0].mxu0
    %549 = vmatprep.mubr.bf16.mxu0 0
    %550 = vmatmul.mubr.bf16.gmra.mrb[0].mxu0 %v137
    %v551 = vpop.f32.mrb[0].mxu0
    %v552 = vadd.f32 %v495, %v551
    %v553 = vpop.f32.mrb[0].mxu0
    %v554 = vpop.f32.mrb[0].mxu0
    %v555 = vadd.f32 %v495, %v554
    %v556 = vpop.f32.mrb[0].mxu0
    %557 = vdwg.mxu0
    %v558 = vld [vmem:[#allocation5] sm:$0xff]
    %v559 = vld [vmem:[#allocation5 + $0x8] sm:$0xff]
    %v560 = vld [vmem:[#allocation5 + $0x10] sm:$0xff]
    %v561 = vld [vmem:[#allocation5 + $0x18] sm:$0xff]
    %s562 = scalar_lea.vmem [#allocation5], 32
    %v563 = vld [vmem:[%s562] sm:$0xff]
    %v564 = vld [vmem:[%s562 + $0x8] sm:$0xff]
    %v565 = vld [vmem:[%s562 + $0x10] sm:$0xff]
    %v566 = vld [vmem:[%s562 + $0x18] sm:$0xff]
    %s567 = scalar_lea.vmem [#allocation5], 64
    %v568 = vld [vmem:[%s567] sm:$0xff]
    %v569 = vld [vmem:[%s567 + $0x8] sm:$0xff]
    %v570 = vld [vmem:[%s567 + $0x10] sm:$0xff]
    %v571 = vld [vmem:[%s567 + $0x18] sm:$0xff]
    %s572 = scalar_lea.vmem [#allocation5], 96
    %v573 = vld [vmem:[%s572] sm:$0xff]
    %v574 = vld [vmem:[%s572 + $0x8] sm:$0xff]
    %v575 = vld [vmem:[%s572 + $0x10] sm:$0xff]
    %v576 = vld [vmem:[%s572 + $0x18] sm:$0xff]
    %s577 = scalar_lea.vmem [#allocation5], 128
    %v578 = vld [vmem:[%s577] sm:$0xff]
    %v579 = vld [vmem:[%s577 + $0x8] sm:$0xff]
    %v580 = vld [vmem:[%s577 + $0x10] sm:$0xff]
    %v581 = vld [vmem:[%s577 + $0x18] sm:$0xff]
    %s582 = scalar_lea.vmem [#allocation5], 160
    %v583 = vld [vmem:[%s582] sm:$0xff]
    %v584 = vld [vmem:[%s582 + $0x8] sm:$0xff]
    %v585 = vld [vmem:[%s582 + $0x10] sm:$0xff]
    %v586 = vld [vmem:[%s582 + $0x18] sm:$0xff]
    %v587 = vld [vmem:[%s5] sm:$0x1]
    %v589 = vlaneseq
    %v590 = vshrl.u32 %v589, 7
    %v591 = vsub.s32 0, %v590
    %v592 = vrot.slane %v587, %v591
    %s594 = scalar_lea.vmem %s5, 1
    %v595 = vld [vmem:[%s594] sm:$0x1]
    %v597 = vlaneseq
    %v598 = vshrl.u32 %v597, 7
    %v599 = vsub.s32 0, %v598
    %v600 = vrot.slane %v595, %v599
    %v602 = vld [vmem:[%s1] sm:$0xf]
    %s603 = scalar_lea.vmem %s1, 4
    %v604 = vld [vmem:[%s603] sm:$0xf]
    %v606 = vsel %vm132, %v602, 0
    %608 = vmatprep.subr.mxu0 0.0
    %609 = vmatpush1.msra.mxu0 %v558
    %610 = vmatprep.subr.mxu0 0.0
    %611 = vmatpush1.msra.mxu0 %v559
    %612 = vmatprep.subr.mxu0 0.0
    %613 = vmatpush1.msra.mxu0 %v560
    %614 = vmatprep.subr.mxu0 0.0
    %615 = vmatpush1.msra.mxu0 %v561
    %616 = vmatprep.subr.mxu0 0.0
    %617 = vmatpush1.msra.mxu0 0.0
    %618 = vmatprep.subr.mxu0 0.0
    %619 = vmatpush1.msra.mxu0 0.0
    %620 = vmatprep.subr.mxu0 0.0
    %621 = vmatpush1.msra.mxu0 0.0
    %622 = vmatprep.subr.mxu0 0.0
    %623 = vmatpush1.msra.mxu0 0.0
    %624 = vmatprep.subr.mxu0 0.0
    %625 = vmatpush1.msra.mxu0 0.0
    %626 = vmatprep.subr.mxu0 0.0
    %627 = vmatpush1.msra.mxu0 0.0
    %628 = vmatprep.subr.mxu0 0.0
    %629 = vmatpush1.msra.mxu0 0.0
    %630 = vmatprep.subr.mxu0 0.0
    %631 = vmatpush1.msra.mxu0 0.0
    %632 = vmatprep.subr.mxu0 0.0
    %633 = vmatpush1.msra.mxu0 0.0
    %634 = vmatprep.subr.mxu0 0.0
    %635 = vmatpush1.msra.mxu0 0.0
    %636 = vmatprep.subr.mxu0 0.0
    %637 = vmatpush1.msra.mxu0 0.0
    %638 = vmatprep.subr.mxu0 0.0
    %639 = vmatpush1.msra.mxu0 0.0
    %640 = vmatprep.subr.mxu0 0.0
    %641 = vmatpush1.msra.mxu0 0.0
    %642 = vmatprep.subr.mxu0 0.0
    %643 = vmatpush1.msra.mxu0 0.0
    %644 = vmatprep.subr.mxu0 0.0
    %645 = vmatpush1.msra.mxu0 0.0
    %646 = vmatprep.subr.mxu0 0.0
    %647 = vmatpush1.msra.mxu0 0.0
    %648 = vmatprep.subr.mxu0 0.0
    %649 = vmatpush1.msra.mxu0 0.0
    %650 = vmatprep.subr.mxu0 0.0
    %651 = vmatpush1.msra.mxu0 0.0
    %652 = vmatprep.subr.mxu0 0.0
    %653 = vmatpush1.msra.mxu0 0.0
    %654 = vmatprep.subr.mxu0 0.0
    %655 = vmatpush1.msra.mxu0 0.0
    %656 = vmatprep.subr.mxu0 0.0
    %657 = vmatpush1.msra.mxu0 0.0
    %658 = vmatprep.subr.mxu0 0.0
    %659 = vmatpush1.msra.mxu0 0.0
    %660 = vmatprep.subr.mxu0 0.0
    %661 = vmatpush1.msra.mxu0 0.0
    %662 = vmatprep.subr.mxu0 0.0
    %663 = vmatpush1.msra.mxu0 0.0
    %664 = vmatprep.subr.mxu0 0.0
    %665 = vmatpush1.msra.mxu0 0.0
    %666 = vmatprep.subr.mxu0 0.0
    %667 = vmatpush1.msra.mxu0 0.0
    %668 = vmatprep.subr.mxu0 0.0
    %669 = vmatpush1.msra.mxu0 0.0
    %670 = vmatprep.subr.mxu0 0.0
    %671 = vmatpush1.msra.mxu0 0.0
    %672 = vmatprep.mubr.f32.mxu0 0.0
    %673 = vmatmul.mubr.f32.gmra.mrb[0].mxu0 %v606
    %v674 = vpop.f32.mrb[0].mxu0
    %v675 = vadd.f32 0.0, %v674
    %v676 = vpop.f32.mrb[0].mxu0
    %677 = vdwg.mxu0
    %v678 = vadd.f32 %v174, %v675
    %679 = vmatprep.subr.mxu0 0.0
    %680 = vmatpush1.msra.mxu0 %v563
    %681 = vmatprep.subr.mxu0 0.0
    %682 = vmatpush1.msra.mxu0 %v564
    %683 = vmatprep.subr.mxu0 0.0
    %684 = vmatpush1.msra.mxu0 %v565
    %685 = vmatprep.subr.mxu0 0.0
    %686 = vmatpush1.msra.mxu0 %v566
    %687 = vmatprep.subr.mxu0 0.0
    %688 = vmatpush1.msra.mxu0 0.0
    %689 = vmatprep.subr.mxu0 0.0
    %690 = vmatpush1.msra.mxu0 0.0
    %691 = vmatprep.subr.mxu0 0.0
    %692 = vmatpush1.msra.mxu0 0.0
    %693 = vmatprep.subr.mxu0 0.0
    %694 = vmatpush1.msra.mxu0 0.0
    %695 = vmatprep.subr.mxu0 0.0
    %696 = vmatpush1.msra.mxu0 0.0
    %697 = vmatprep.subr.mxu0 0.0
    %698 = vmatpush1.msra.mxu0 0.0
    %699 = vmatprep.subr.mxu0 0.0
    %700 = vmatpush1.msra.mxu0 0.0
    %701 = vmatprep.subr.mxu0 0.0
    %702 = vmatpush1.msra.mxu0 0.0
    %703 = vmatprep.subr.mxu0 0.0
    %704 = vmatpush1.msra.mxu0 0.0
    %705 = vmatprep.subr.mxu0 0.0
    %706 = vmatpush1.msra.mxu0 0.0
    %707 = vmatprep.subr.mxu0 0.0
    %708 = vmatpush1.msra.mxu0 0.0
    %709 = vmatprep.subr.mxu0 0.0
    %710 = vmatpush1.msra.mxu0 0.0
    %711 = vmatprep.subr.mxu0 0.0
    %712 = vmatpush1.msra.mxu0 0.0
    %713 = vmatprep.subr.mxu0 0.0
    %714 = vmatpush1.msra.mxu0 0.0
    %715 = vmatprep.subr.mxu0 0.0
    %716 = vmatpush1.msra.mxu0 0.0
    %717 = vmatprep.subr.mxu0 0.0
    %718 = vmatpush1.msra.mxu0 0.0
    %719 = vmatprep.subr.mxu0 0.0
    %720 = vmatpush1.msra.mxu0 0.0
    %721 = vmatprep.subr.mxu0 0.0
    %722 = vmatpush1.msra.mxu0 0.0
    %723 = vmatprep.subr.mxu0 0.0
    %724 = vmatpush1.msra.mxu0 0.0
    %725 = vmatprep.subr.mxu0 0.0
    %726 = vmatpush1.msra.mxu0 0.0
    %727 = vmatprep.subr.mxu0 0.0
    %728 = vmatpush1.msra.mxu0 0.0
    %729 = vmatprep.subr.mxu0 0.0
    %730 = vmatpush1.msra.mxu0 0.0
    %731 = vmatprep.subr.mxu0 0.0
    %732 = vmatpush1.msra.mxu0 0.0
    %733 = vmatprep.subr.mxu0 0.0
    %734 = vmatpush1.msra.mxu0 0.0
    %735 = vmatprep.subr.mxu0 0.0
    %736 = vmatpush1.msra.mxu0 0.0
    %737 = vmatprep.subr.mxu0 0.0
    %738 = vmatpush1.msra.mxu0 0.0
    %739 = vmatprep.subr.mxu0 0.0
    %740 = vmatpush1.msra.mxu0 0.0
    %741 = vmatprep.subr.mxu0 0.0
    %742 = vmatpush1.msra.mxu0 0.0
    %743 = vmatprep.mubr.f32.mxu0 0.0
    %744 = vmatmul.mubr.f32.gmra.mrb[0].mxu0 %v606
    %v745 = vpop.f32.mrb[0].mxu0
    %v746 = vadd.f32 0.0, %v745
    %v747 = vpop.f32.mrb[0].mxu0
    %748 = vdwg.mxu0
    %v749 = vadd.f32 %v248, %v746
    %750 = vmatprep.subr.mxu0 0.0
    %751 = vmatpush1.msra.mxu0 %v568
    %752 = vmatprep.subr.mxu0 0.0
    %753 = vmatpush1.msra.mxu0 %v569
    %754 = vmatprep.subr.mxu0 0.0
    %755 = vmatpush1.msra.mxu0 %v570
    %756 = vmatprep.subr.mxu0 0.0
    %757 = vmatpush1.msra.mxu0 %v571
    %758 = vmatprep.subr.mxu0 0.0
    %759 = vmatpush1.msra.mxu0 0.0
    %760 = vmatprep.subr.mxu0 0.0
    %761 = vmatpush1.msra.mxu0 0.0
    %762 = vmatprep.subr.mxu0 0.0
    %763 = vmatpush1.msra.mxu0 0.0
    %764 = vmatprep.subr.mxu0 0.0
    %765 = vmatpush1.msra.mxu0 0.0
    %766 = vmatprep.subr.mxu0 0.0
    %767 = vmatpush1.msra.mxu0 0.0
    %768 = vmatprep.subr.mxu0 0.0
    %769 = vmatpush1.msra.mxu0 0.0
    %770 = vmatprep.subr.mxu0 0.0
    %771 = vmatpush1.msra.mxu0 0.0
    %772 = vmatprep.subr.mxu0 0.0
    %773 = vmatpush1.msra.mxu0 0.0
    %774 = vmatprep.subr.mxu0 0.0
    %775 = vmatpush1.msra.mxu0 0.0
    %776 = vmatprep.subr.mxu0 0.0
    %777 = vmatpush1.msra.mxu0 0.0
    %778 = vmatprep.subr.mxu0 0.0
    %779 = vmatpush1.msra.mxu0 0.0
    %780 = vmatprep.subr.mxu0 0.0
    %781 = vmatpush1.msra.mxu0 0.0
    %782 = vmatprep.subr.mxu0 0.0
    %783 = vmatpush1.msra.mxu0 0.0
    %784 = vmatprep.subr.mxu0 0.0
    %785 = vmatpush1.msra.mxu0 0.0
    %786 = vmatprep.subr.mxu0 0.0
    %787 = vmatpush1.msra.mxu0 0.0
    %788 = vmatprep.subr.mxu0 0.0
    %789 = vmatpush1.msra.mxu0 0.0
    %790 = vmatprep.subr.mxu0 0.0
    %791 = vmatpush1.msra.mxu0 0.0
    %792 = vmatprep.subr.mxu0 0.0
    %793 = vmatpush1.msra.mxu0 0.0
    %794 = vmatprep.subr.mxu0 0.0
    %795 = vmatpush1.msra.mxu0 0.0
    %796 = vmatprep.subr.mxu0 0.0
    %797 = vmatpush1.msra.mxu0 0.0
    %798 = vmatprep.subr.mxu0 0.0
    %799 = vmatpush1.msra.mxu0 0.0
    %800 = vmatprep.subr.mxu0 0.0
    %801 = vmatpush1.msra.mxu0 0.0
    %802 = vmatprep.subr.mxu0 0.0
    %803 = vmatpush1.msra.mxu0 0.0
    %804 = vmatprep.subr.mxu0 0.0
    %805 = vmatpush1.msra.mxu0 0.0
    %806 = vmatprep.subr.mxu0 0.0
    %807 = vmatpush1.msra.mxu0 0.0
    %808 = vmatprep.subr.mxu0 0.0
    %809 = vmatpush1.msra.mxu0 0.0
    %810 = vmatprep.subr.mxu0 0.0
    %811 = vmatpush1.msra.mxu0 0.0
    %812 = vmatprep.subr.mxu0 0.0
    %813 = vmatpush1.msra.mxu0 0.0
    %814 = vmatprep.mubr.f32.mxu0 0.0
    %815 = vmatmul.mubr.f32.gmra.mrb[0].mxu0 %v606
    %v816 = vpop.f32.mrb[0].mxu0
    %v817 = vadd.f32 %v592, %v816
    %v818 = vpop.f32.mrb[0].mxu0
    %819 = vdwg.mxu0
    %v820 = vxor.u32 %v678, 2147483648
    %v821 = vmul.f32 %v820, 1.442695
    %v822 = vpow.pop %v821
    %v823 = vadd.f32 %v822, 1.0
    %v824 = vrcp.pop %v823
    %v825 = vmul.f32 1.0, %v824
    %v826 = vxor.u32 %v749, 2147483648
    %v827 = vmul.f32 %v826, 1.442695
    %v828 = vpow.pop %v827
    %v829 = vadd.f32 %v828, 1.0
    %v830 = vrcp.pop %v829
    %v831 = vmul.f32 1.0, %v830
    %v832 = vmul.f32 %v825, %v817
    %v833 = vadd.f32 %v322, %v832
    %v834 = vtanh.pop %v833
    %v835 = vsub.f32 1.0, %v831
    %v836 = vmul.f32 %v835, %v834
    %v837 = vmul.f32 %v831, %v602
    %v838 = vadd.f32 %v836, %v837
    %v840 = vsel %vm132, %v604, 0
    %842 = vmatprep.subr.mxu0 0.0
    %843 = vmatpush1.msra.mxu0 %v573
    %844 = vmatprep.subr.mxu0 0.0
    %845 = vmatpush1.msra.mxu0 %v574
    %846 = vmatprep.subr.mxu0 0.0
    %847 = vmatpush1.msra.mxu0 %v575
    %848 = vmatprep.subr.mxu0 0.0
    %849 = vmatpush1.msra.mxu0 %v576
    %850 = vmatprep.subr.mxu0 0.0
    %851 = vmatpush1.msra.mxu0 0.0
    %852 = vmatprep.subr.mxu0 0.0
    %853 = vmatpush1.msra.mxu0 0.0
    %854 = vmatprep.subr.mxu0 0.0
    %855 = vmatpush1.msra.mxu0 0.0
    %856 = vmatprep.subr.mxu0 0.0
    %857 = vmatpush1.msra.mxu0 0.0
    %858 = vmatprep.subr.mxu0 0.0
    %859 = vmatpush1.msra.mxu0 0.0
    %860 = vmatprep.subr.mxu0 0.0
    %861 = vmatpush1.msra.mxu0 0.0
    %862 = vmatprep.subr.mxu0 0.0
    %863 = vmatpush1.msra.mxu0 0.0
    %864 = vmatprep.subr.mxu0 0.0
    %865 = vmatpush1.msra.mxu0 0.0
    %866 = vmatprep.subr.mxu0 0.0
    %867 = vmatpush1.msra.mxu0 0.0
    %868 = vmatprep.subr.mxu0 0.0
    %869 = vmatpush1.msra.mxu0 0.0
    %870 = vmatprep.subr.mxu0 0.0
    %871 = vmatpush1.msra.mxu0 0.0
    %872 = vmatprep.subr.mxu0 0.0
    %873 = vmatpush1.msra.mxu0 0.0
    %874 = vmatprep.subr.mxu0 0.0
    %875 = vmatpush1.msra.mxu0 0.0
    %876 = vmatprep.subr.mxu0 0.0
    %877 = vmatpush1.msra.mxu0 0.0
    %878 = vmatprep.subr.mxu0 0.0
    %879 = vmatpush1.msra.mxu0 0.0
    %880 = vmatprep.subr.mxu0 0.0
    %881 = vmatpush1.msra.mxu0 0.0
    %882 = vmatprep.subr.mxu0 0.0
    %883 = vmatpush1.msra.mxu0 0.0
    %884 = vmatprep.subr.mxu0 0.0
    %885 = vmatpush1.msra.mxu0 0.0
    %886 = vmatprep.subr.mxu0 0.0
    %887 = vmatpush1.msra.mxu0 0.0
    %888 = vmatprep.subr.mxu0 0.0
    %889 = vmatpush1.msra.mxu0 0.0
    %890 = vmatprep.subr.mxu0 0.0
    %891 = vmatpush1.msra.mxu0 0.0
    %892 = vmatprep.subr.mxu0 0.0
    %893 = vmatpush1.msra.mxu0 0.0
    %894 = vmatprep.subr.mxu0 0.0
    %895 = vmatpush1.msra.mxu0 0.0
    %896 = vmatprep.subr.mxu0 0.0
    %897 = vmatpush1.msra.mxu0 0.0
    %898 = vmatprep.subr.mxu0 0.0
    %899 = vmatpush1.msra.mxu0 0.0
    %900 = vmatprep.subr.mxu0 0.0
    %901 = vmatpush1.msra.mxu0 0.0
    %902 = vmatprep.subr.mxu0 0.0
    %903 = vmatpush1.msra.mxu0 0.0
    %904 = vmatprep.subr.mxu0 0.0
    %905 = vmatpush1.msra.mxu0 0.0
    %906 = vmatprep.mubr.f32.mxu0 0.0
    %907 = vmatmul.mubr.f32.gmra.mrb[0].mxu0 %v840
    %v908 = vpop.f32.mrb[0].mxu0
    %v909 = vadd.f32 0.0, %v908
    %v910 = vpop.f32.mrb[0].mxu0
    %911 = vdwg.mxu0
    %v913 = vrot.slane %v909, 4
    %v915 = vadd.f32 %v407, %v913
    %916 = vmatprep.subr.mxu0 0.0
    %917 = vmatpush1.msra.mxu0 %v578
    %918 = vmatprep.subr.mxu0 0.0
    %919 = vmatpush1.msra.mxu0 %v579
    %920 = vmatprep.subr.mxu0 0.0
    %921 = vmatpush1.msra.mxu0 %v580
    %922 = vmatprep.subr.mxu0 0.0
    %923 = vmatpush1.msra.mxu0 %v581
    %924 = vmatprep.subr.mxu0 0.0
    %925 = vmatpush1.msra.mxu0 0.0
    %926 = vmatprep.subr.mxu0 0.0
    %927 = vmatpush1.msra.mxu0 0.0
    %928 = vmatprep.subr.mxu0 0.0
    %929 = vmatpush1.msra.mxu0 0.0
    %930 = vmatprep.subr.mxu0 0.0
    %931 = vmatpush1.msra.mxu0 0.0
    %932 = vmatprep.subr.mxu0 0.0
    %933 = vmatpush1.msra.mxu0 0.0
    %934 = vmatprep.subr.mxu0 0.0
    %935 = vmatpush1.msra.mxu0 0.0
    %936 = vmatprep.subr.mxu0 0.0
    %937 = vmatpush1.msra.mxu0 0.0
    %938 = vmatprep.subr.mxu0 0.0
    %939 = vmatpush1.msra.mxu0 0.0
    %940 = vmatprep.subr.mxu0 0.0
    %941 = vmatpush1.msra.mxu0 0.0
    %942 = vmatprep.subr.mxu0 0.0
    %943 = vmatpush1.msra.mxu0 0.0
    %944 = vmatprep.subr.mxu0 0.0
    %945 = vmatpush1.msra.mxu0 0.0
    %946 = vmatprep.subr.mxu0 0.0
    %947 = vmatpush1.msra.mxu0 0.0
    %948 = vmatprep.subr.mxu0 0.0
    %949 = vmatpush1.msra.mxu0 0.0
    %950 = vmatprep.subr.mxu0 0.0
    %951 = vmatpush1.msra.mxu0 0.0
    %952 = vmatprep.subr.mxu0 0.0
    %953 = vmatpush1.msra.mxu0 0.0
    %954 = vmatprep.subr.mxu0 0.0
    %955 = vmatpush1.msra.mxu0 0.0
    %956 = vmatprep.subr.mxu0 0.0
    %957 = vmatpush1.msra.mxu0 0.0
    %958 = vmatprep.subr.mxu0 0.0
    %959 = vmatpush1.msra.mxu0 0.0
    %960 = vmatprep.subr.mxu0 0.0
    %961 = vmatpush1.msra.mxu0 0.0
    %962 = vmatprep.subr.mxu0 0.0
    %963 = vmatpush1.msra.mxu0 0.0
    %964 = vmatprep.subr.mxu0 0.0
    %965 = vmatpush1.msra.mxu0 0.0
    %966 = vmatprep.subr.mxu0 0.0
    %967 = vmatpush1.msra.mxu0 0.0
    %968 = vmatprep.subr.mxu0 0.0
    %969 = vmatpush1.msra.mxu0 0.0
    %970 = vmatprep.subr.mxu0 0.0
    %971 = vmatpush1.msra.mxu0 0.0
    %972 = vmatprep.subr.mxu0 0.0
    %973 = vmatpush1.msra.mxu0 0.0
    %974 = vmatprep.subr.mxu0 0.0
    %975 = vmatpush1.msra.mxu0 0.0
    %976 = vmatprep.subr.mxu0 0.0
    %977 = vmatpush1.msra.mxu0 0.0
    %978 = vmatprep.subr.mxu0 0.0
    %979 = vmatpush1.msra.mxu0 0.0
    %980 = vmatprep.mubr.f32.mxu0 0.0
    %981 = vmatmul.mubr.f32.gmra.mrb[0].mxu0 %v840
    %v982 = vpop.f32.mrb[0].mxu0
    %v983 = vadd.f32 0.0, %v982
    %v984 = vpop.f32.mrb[0].mxu0
    %985 = vdwg.mxu0
    %v987 = vrot.slane %v983, 4
    %v989 = vadd.f32 %v481, %v987
    %990 = vmatprep.subr.mxu0 0.0
    %991 = vmatpush1.msra.mxu0 %v583
    %992 = vmatprep.subr.mxu0 0.0
    %993 = vmatpush1.msra.mxu0 %v584
    %994 = vmatprep.subr.mxu0 0.0
    %995 = vmatpush1.msra.mxu0 %v585
    %996 = vmatprep.subr.mxu0 0.0
    %997 = vmatpush1.msra.mxu0 %v586
    %998 = vmatprep.subr.mxu0 0.0
    %999 = vmatpush1.msra.mxu0 0.0
    %1000 = vmatprep.subr.mxu0 0.0
    %1001 = vmatpush1.msra.mxu0 0.0
    %1002 = vmatprep.subr.mxu0 0.0
    %1003 = vmatpush1.msra.mxu0 0.0
    %1004 = vmatprep.subr.mxu0 0.0
    %1005 = vmatpush1.msra.mxu0 0.0
    %1006 = vmatprep.subr.mxu0 0.0
    %1007 = vmatpush1.msra.mxu0 0.0
    %1008 = vmatprep.subr.mxu0 0.0
    %1009 = vmatpush1.msra.mxu0 0.0
    %1010 = vmatprep.subr.mxu0 0.0
    %1011 = vmatpush1.msra.mxu0 0.0
    %1012 = vmatprep.subr.mxu0 0.0
    %1013 = vmatpush1.msra.mxu0 0.0
    %1014 = vmatprep.subr.mxu0 0.0
    %1015 = vmatpush1.msra.mxu0 0.0
    %1016 = vmatprep.subr.mxu0 0.0
    %1017 = vmatpush1.msra.mxu0 0.0
    %1018 = vmatprep.subr.mxu0 0.0
    %1019 = vmatpush1.msra.mxu0 0.0
    %1020 = vmatprep.subr.mxu0 0.0
    %1021 = vmatpush1.msra.mxu0 0.0
    %1022 = vmatprep.subr.mxu0 0.0
    %1023 = vmatpush1.msra.mxu0 0.0
    %1024 = vmatprep.subr.mxu0 0.0
    %1025 = vmatpush1.msra.mxu0 0.0
    %1026 = vmatprep.subr.mxu0 0.0
    %1027 = vmatpush1.msra.mxu0 0.0
    %1028 = vmatprep.subr.mxu0 0.0
    %1029 = vmatpush1.msra.mxu0 0.0
    %1030 = vmatprep.subr.mxu0 0.0
    %1031 = vmatpush1.msra.mxu0 0.0
    %1032 = vmatprep.subr.mxu0 0.0
    %1033 = vmatpush1.msra.mxu0 0.0
    %1034 = vmatprep.subr.mxu0 0.0
    %1035 = vmatpush1.msra.mxu0 0.0
    %1036 = vmatprep.subr.mxu0 0.0
    %1037 = vmatpush1.msra.mxu0 0.0
    %1038 = vmatprep.subr.mxu0 0.0
    %1039 = vmatpush1.msra.mxu0 0.0
    %1040 = vmatprep.subr.mxu0 0.0
    %1041 = vmatpush1.msra.mxu0 0.0
    %1042 = vmatprep.subr.mxu0 0.0
    %1043 = vmatpush1.msra.mxu0 0.0
    %1044 = vmatprep.subr.mxu0 0.0
    %1045 = vmatpush1.msra.mxu0 0.0
    %1046 = vmatprep.subr.mxu0 0.0
    %1047 = vmatpush1.msra.mxu0 0.0
    %1048 = vmatprep.subr.mxu0 0.0
    %1049 = vmatpush1.msra.mxu0 0.0
    %1050 = vmatprep.subr.mxu0 0.0
    %1051 = vmatpush1.msra.mxu0 0.0
    %1052 = vmatprep.subr.mxu0 0.0
    %1053 = vmatpush1.msra.mxu0 0.0
    %1054 = vmatprep.mubr.f32.mxu0 0.0
    %1055 = vmatmul.mubr.f32.gmra.mrb[0].mxu0 %v840
    %v1056 = vpop.f32.mrb[0].mxu0
    %v1057 = vadd.f32 %v600, %v1056
    %v1058 = vpop.f32.mrb[0].mxu0
    %1059 = vdwg.mxu0
    %v1060 = vxor.u32 %v915, 2147483648
    %v1061 = vmul.f32 %v1060, 1.442695
    %v1062 = vpow.pop %v1061
    %v1063 = vadd.f32 %v1062, 1.0
    %v1064 = vrcp.pop %v1063
    %v1065 = vmul.f32 1.0, %v1064
    %v1066 = vxor.u32 %v989, 2147483648
    %v1067 = vmul.f32 %v1066, 1.442695
    %v1068 = vpow.pop %v1067
    %v1069 = vadd.f32 %v1068, 1.0
    %v1070 = vrcp.pop %v1069
    %v1071 = vmul.f32 1.0, %v1070
    %v1073 = vrot.slane %v1057, 4
    %v1075 = vmul.f32 %v1065, %v1073
    %v1076 = vadd.f32 %v555, %v1075
    %v1077 = vtanh.pop %v1076
    %v1078 = vsub.f32 1.0, %v1071
    %v1079 = vmul.f32 %v1078, %v1077
    %v1080 = vrot.slane %v604, 4
    %v1082 = vmul.f32 %v1071, %v1080
    %v1083 = vadd.f32 %v1079, %v1082
    %v1085 = vsel %vm132, %v838, 0
    %1087 = vmatprep.subr.mxu0 0.0
    %1088 = vmatpush1.msra.mxu0 %v558
    %1089 = vmatprep.subr.mxu0 0.0
    %1090 = vmatpush1.msra.mxu0 %v559
    %1091 = vmatprep.subr.mxu0 0.0
    %1092 = vmatpush1.msra.mxu0 %v560
    %1093 = vmatprep.subr.mxu0 0.0
    %1094 = vmatpush1.msra.mxu0 %v561
    %1095 = vmatprep.subr.mxu0 0.0
    %1096 = vmatpush1.msra.mxu0 0.0
    %1097 = vmatprep.subr.mxu0 0.0
    %1098 = vmatpush1.msra.mxu0 0.0
    %1099 = vmatprep.subr.mxu0 0.0
    %1100 = vmatpush1.msra.mxu0 0.0
    %1101 = vmatprep.subr.mxu0 0.0
    %1102 = vmatpush1.msra.mxu0 0.0
    %1103 = vmatprep.subr.mxu0 0.0
    %1104 = vmatpush1.msra.mxu0 0.0
    %1105 = vmatprep.subr.mxu0 0.0
    %1106 = vmatpush1.msra.mxu0 0.0
    %1107 = vmatprep.subr.mxu0 0.0
    %1108 = vmatpush1.msra.mxu0 0.0
    %1109 = vmatprep.subr.mxu0 0.0
    %1110 = vmatpush1.msra.mxu0 0.0
    %1111 = vmatprep.subr.mxu0 0.0
    %1112 = vmatpush1.msra.mxu0 0.0
    %1113 = vmatprep.subr.mxu0 0.0
    %1114 = vmatpush1.msra.mxu0 0.0
    %1115 = vmatprep.subr.mxu0 0.0
    %1116 = vmatpush1.msra.mxu0 0.0
    %1117 = vmatprep.subr.mxu0 0.0
    %1118 = vmatpush1.msra.mxu0 0.0
    %1119 = vmatprep.subr.mxu0 0.0
    %1120 = vmatpush1.msra.mxu0 0.0
    %1121 = vmatprep.subr.mxu0 0.0
    %1122 = vmatpush1.msra.mxu0 0.0
    %1123 = vmatprep.subr.mxu0 0.0
    %1124 = vmatpush1.msra.mxu0 0.0
    %1125 = vmatprep.subr.mxu0 0.0
    %1126 = vmatpush1.msra.mxu0 0.0
    %1127 = vmatprep.subr.mxu0 0.0
    %1128 = vmatpush1.msra.mxu0 0.0
    %1129 = vmatprep.subr.mxu0 0.0
    %1130 = vmatpush1.msra.mxu0 0.0
    %1131 = vmatprep.subr.mxu0 0.0
    %1132 = vmatpush1.msra.mxu0 0.0
    %1133 = vmatprep.subr.mxu0 0.0
    %1134 = vmatpush1.msra.mxu0 0.0
    %1135 = vmatprep.subr.mxu0 0.0
    %1136 = vmatpush1.msra.mxu0 0.0
    %1137 = vmatprep.subr.mxu0 0.0
    %1138 = vmatpush1.msra.mxu0 0.0
    %1139 = vmatprep.subr.mxu0 0.0
    %1140 = vmatpush1.msra.mxu0 0.0
    %1141 = vmatprep.subr.mxu0 0.0
    %1142 = vmatpush1.msra.mxu0 0.0
    %1143 = vmatprep.subr.mxu0 0.0
    %1144 = vmatpush1.msra.mxu0 0.0
    %1145 = vmatprep.subr.mxu0 0.0
    %1146 = vmatpush1.msra.mxu0 0.0
    %1147 = vmatprep.subr.mxu0 0.0
    %1148 = vmatpush1.msra.mxu0 0.0
    %1149 = vmatprep.subr.mxu0 0.0
    %1150 = vmatpush1.msra.mxu0 0.0
    %1151 = vmatprep.mubr.f32.mxu0 0.0
    %1152 = vmatmul.mubr.f32.gmra.mrb[0].mxu0 %v1085
    %v1153 = vpop.f32.mrb[0].mxu0
    %v1154 = vadd.f32 0.0, %v1153
    %v1155 = vpop.f32.mrb[0].mxu0
    %1156 = vdwg.mxu0
    %v1158 = vrot.slane %v1154, 4
    %v1160 = vadd.f32 %v174, %v1158
    %1161 = vmatprep.subr.mxu0 0.0
    %1162 = vmatpush1.msra.mxu0 %v563
    %1163 = vmatprep.subr.mxu0 0.0
    %1164 = vmatpush1.msra.mxu0 %v564
    %1165 = vmatprep.subr.mxu0 0.0
    %1166 = vmatpush1.msra.mxu0 %v565
    %1167 = vmatprep.subr.mxu0 0.0
    %1168 = vmatpush1.msra.mxu0 %v566
    %1169 = vmatprep.subr.mxu0 0.0
    %1170 = vmatpush1.msra.mxu0 0.0
    %1171 = vmatprep.subr.mxu0 0.0
    %1172 = vmatpush1.msra.mxu0 0.0
    %1173 = vmatprep.subr.mxu0 0.0
    %1174 = vmatpush1.msra.mxu0 0.0
    %1175 = vmatprep.subr.mxu0 0.0
    %1176 = vmatpush1.msra.mxu0 0.0
    %1177 = vmatprep.subr.mxu0 0.0
    %1178 = vmatpush1.msra.mxu0 0.0
    %1179 = vmatprep.subr.mxu0 0.0
    %1180 = vmatpush1.msra.mxu0 0.0
    %1181 = vmatprep.subr.mxu0 0.0
    %1182 = vmatpush1.msra.mxu0 0.0
    %1183 = vmatprep.subr.mxu0 0.0
    %1184 = vmatpush1.msra.mxu0 0.0
    %1185 = vmatprep.subr.mxu0 0.0
    %1186 = vmatpush1.msra.mxu0 0.0
    %1187 = vmatprep.subr.mxu0 0.0
    %1188 = vmatpush1.msra.mxu0 0.0
    %1189 = vmatprep.subr.mxu0 0.0
    %1190 = vmatpush1.msra.mxu0 0.0
    %1191 = vmatprep.subr.mxu0 0.0
    %1192 = vmatpush1.msra.mxu0 0.0
    %1193 = vmatprep.subr.mxu0 0.0
    %1194 = vmatpush1.msra.mxu0 0.0
    %1195 = vmatprep.subr.mxu0 0.0
    %1196 = vmatpush1.msra.mxu0 0.0
    %1197 = vmatprep.subr.mxu0 0.0
    %1198 = vmatpush1.msra.mxu0 0.0
    %1199 = vmatprep.subr.mxu0 0.0
    %1200 = vmatpush1.msra.mxu0 0.0
    %1201 = vmatprep.subr.mxu0 0.0
    %1202 = vmatpush1.msra.mxu0 0.0
    %1203 = vmatprep.subr.mxu0 0.0
    %1204 = vmatpush1.msra.mxu0 0.0
    %1205 = vmatprep.subr.mxu0 0.0
    %1206 = vmatpush1.msra.mxu0 0.0
    %1207 = vmatprep.subr.mxu0 0.0
    %1208 = vmatpush1.msra.mxu0 0.0
    %1209 = vmatprep.subr.mxu0 0.0
    %1210 = vmatpush1.msra.mxu0 0.0
    %1211 = vmatprep.subr.mxu0 0.0
    %1212 = vmatpush1.msra.mxu0 0.0
    %1213 = vmatprep.subr.mxu0 0.0
    %1214 = vmatpush1.msra.mxu0 0.0
    %1215 = vmatprep.subr.mxu0 0.0
    %1216 = vmatpush1.msra.mxu0 0.0
    %1217 = vmatprep.subr.mxu0 0.0
    %1218 = vmatpush1.msra.mxu0 0.0
    %1219 = vmatprep.subr.mxu0 0.0
    %1220 = vmatpush1.msra.mxu0 0.0
    %1221 = vmatprep.subr.mxu0 0.0
    %1222 = vmatpush1.msra.mxu0 0.0
    %1223 = vmatprep.subr.mxu0 0.0
    %1224 = vmatpush1.msra.mxu0 0.0
    %1225 = vmatprep.mubr.f32.mxu0 0.0
    %1226 = vmatmul.mubr.f32.gmra.mrb[0].mxu0 %v1085
    %v1227 = vpop.f32.mrb[0].mxu0
    %v1228 = vadd.f32 0.0, %v1227
    %v1229 = vpop.f32.mrb[0].mxu0
    %1230 = vdwg.mxu0
    %v1232 = vrot.slane %v1228, 4
    %v1234 = vadd.f32 %v248, %v1232
    %1235 = vmatprep.subr.mxu0 0.0
    %1236 = vmatpush1.msra.mxu0 %v568
    %1237 = vmatprep.subr.mxu0 0.0
    %1238 = vmatpush1.msra.mxu0 %v569
    %1239 = vmatprep.subr.mxu0 0.0
    %1240 = vmatpush1.msra.mxu0 %v570
    %1241 = vmatprep.subr.mxu0 0.0
    %1242 = vmatpush1.msra.mxu0 %v571
    %1243 = vmatprep.subr.mxu0 0.0
    %1244 = vmatpush1.msra.mxu0 0.0
    %1245 = vmatprep.subr.mxu0 0.0
    %1246 = vmatpush1.msra.mxu0 0.0
    %1247 = vmatprep.subr.mxu0 0.0
    %1248 = vmatpush1.msra.mxu0 0.0
    %1249 = vmatprep.subr.mxu0 0.0
    %1250 = vmatpush1.msra.mxu0 0.0
    %1251 = vmatprep.subr.mxu0 0.0
    %1252 = vmatpush1.msra.mxu0 0.0
    %1253 = vmatprep.subr.mxu0 0.0
    %1254 = vmatpush1.msra.mxu0 0.0
    %1255 = vmatprep.subr.mxu0 0.0
    %1256 = vmatpush1.msra.mxu0 0.0
    %1257 = vmatprep.subr.mxu0 0.0
    %1258 = vmatpush1.msra.mxu0 0.0
    %1259 = vmatprep.subr.mxu0 0.0
    %1260 = vmatpush1.msra.mxu0 0.0
    %1261 = vmatprep.subr.mxu0 0.0
    %1262 = vmatpush1.msra.mxu0 0.0
    %1263 = vmatprep.subr.mxu0 0.0
    %1264 = vmatpush1.msra.mxu0 0.0
    %1265 = vmatprep.subr.mxu0 0.0
    %1266 = vmatpush1.msra.mxu0 0.0
    %1267 = vmatprep.subr.mxu0 0.0
    %1268 = vmatpush1.msra.mxu0 0.0
    %1269 = vmatprep.subr.mxu0 0.0
    %1270 = vmatpush1.msra.mxu0 0.0
    %1271 = vmatprep.subr.mxu0 0.0
    %1272 = vmatpush1.msra.mxu0 0.0
    %1273 = vmatprep.subr.mxu0 0.0
    %1274 = vmatpush1.msra.mxu0 0.0
    %1275 = vmatprep.subr.mxu0 0.0
    %1276 = vmatpush1.msra.mxu0 0.0
    %1277 = vmatprep.subr.mxu0 0.0
    %1278 = vmatpush1.msra.mxu0 0.0
    %1279 = vmatprep.subr.mxu0 0.0
    %1280 = vmatpush1.msra.mxu0 0.0
    %1281 = vmatprep.subr.mxu0 0.0
    %1282 = vmatpush1.msra.mxu0 0.0
    %1283 = vmatprep.subr.mxu0 0.0
    %1284 = vmatpush1.msra.mxu0 0.0
    %1285 = vmatprep.subr.mxu0 0.0
    %1286 = vmatpush1.msra.mxu0 0.0
    %1287 = vmatprep.subr.mxu0 0.0
    %1288 = vmatpush1.msra.mxu0 0.0
    %1289 = vmatprep.subr.mxu0 0.0
    %1290 = vmatpush1.msra.mxu0 0.0
    %1291 = vmatprep.subr.mxu0 0.0
    %1292 = vmatpush1.msra.mxu0 0.0
    %1293 = vmatprep.subr.mxu0 0.0
    %1294 = vmatpush1.msra.mxu0 0.0
    %1295 = vmatprep.subr.mxu0 0.0
    %1296 = vmatpush1.msra.mxu0 0.0
    %1297 = vmatprep.subr.mxu0 0.0
    %1298 = vmatpush1.msra.mxu0 0.0
    %1299 = vmatprep.mubr.f32.mxu0 0.0
    %1300 = vmatmul.mubr.f32.gmra.mrb[0].mxu0 %v1085
    %v1301 = vpop.f32.mrb[0].mxu0
    %v1302 = vadd.f32 %v592, %v1301
    %v1303 = vpop.f32.mrb[0].mxu0
    %1304 = vdwg.mxu0
    %v1305 = vxor.u32 %v1160, 2147483648
    %v1306 = vmul.f32 %v1305, 1.442695
    %v1307 = vpow.pop %v1306
    %v1308 = vadd.f32 %v1307, 1.0
    %v1309 = vrcp.pop %v1308
    %v1310 = vmul.f32 1.0, %v1309
    %v1311 = vxor.u32 %v1234, 2147483648
    %v1312 = vmul.f32 %v1311, 1.442695
    %v1313 = vpow.pop %v1312
    %v1314 = vadd.f32 %v1313, 1.0
    %v1315 = vrcp.pop %v1314
    %v1316 = vmul.f32 1.0, %v1315
    %v1318 = vrot.slane %v1302, 4
    %v1320 = vmul.f32 %v1310, %v1318
    %v1321 = vadd.f32 %v322, %v1320
    %v1322 = vtanh.pop %v1321
    %v1323 = vsub.f32 1.0, %v1316
    %v1324 = vmul.f32 %v1323, %v1322
    %v1325 = vrot.slane %v838, 4
    %v1327 = vmul.f32 %v1316, %v1325
    %v1328 = vadd.f32 %v1324, %v1327
    %v1330 = vrot.slane %v1083, 4
    %v1331 = vsel %vm132, %v1330, 0
    %1333 = vmatprep.subr.mxu0 0.0
    %1334 = vmatpush1.msra.mxu0 %v573
    %1335 = vmatprep.subr.mxu0 0.0
    %1336 = vmatpush1.msra.mxu0 %v574
    %1337 = vmatprep.subr.mxu0 0.0
    %1338 = vmatpush1.msra.mxu0 %v575
    %1339 = vmatprep.subr.mxu0 0.0
    %1340 = vmatpush1.msra.mxu0 %v576
    %1341 = vmatprep.subr.mxu0 0.0
    %1342 = vmatpush1.msra.mxu0 0.0
    %1343 = vmatprep.subr.mxu0 0.0
    %1344 = vmatpush1.msra.mxu0 0.0
    %1345 = vmatprep.subr.mxu0 0.0
    %1346 = vmatpush1.msra.mxu0 0.0
    %1347 = vmatprep.subr.mxu0 0.0
    %1348 = vmatpush1.msra.mxu0 0.0
    %1349 = vmatprep.subr.mxu0 0.0
    %1350 = vmatpush1.msra.mxu0 0.0
    %1351 = vmatprep.subr.mxu0 0.0
    %1352 = vmatpush1.msra.mxu0 0.0
    %1353 = vmatprep.subr.mxu0 0.0
    %1354 = vmatpush1.msra.mxu0 0.0
    %1355 = vmatprep.subr.mxu0 0.0
    %1356 = vmatpush1.msra.mxu0 0.0
    %1357 = vmatprep.subr.mxu0 0.0
    %1358 = vmatpush1.msra.mxu0 0.0
    %1359 = vmatprep.subr.mxu0 0.0
    %1360 = vmatpush1.msra.mxu0 0.0
    %1361 = vmatprep.subr.mxu0 0.0
    %1362 = vmatpush1.msra.mxu0 0.0
    %1363 = vmatprep.subr.mxu0 0.0
    %1364 = vmatpush1.msra.mxu0 0.0
    %1365 = vmatprep.subr.mxu0 0.0
    %1366 = vmatpush1.msra.mxu0 0.0
    %1367 = vmatprep.subr.mxu0 0.0
    %1368 = vmatpush1.msra.mxu0 0.0
    %1369 = vmatprep.subr.mxu0 0.0
    %1370 = vmatpush1.msra.mxu0 0.0
    %1371 = vmatprep.subr.mxu0 0.0
    %1372 = vmatpush1.msra.mxu0 0.0
    %1373 = vmatprep.subr.mxu0 0.0
    %1374 = vmatpush1.msra.mxu0 0.0
    %1375 = vmatprep.subr.mxu0 0.0
    %1376 = vmatpush1.msra.mxu0 0.0
    %1377 = vmatprep.subr.mxu0 0.0
    %1378 = vmatpush1.msra.mxu0 0.0
    %1379 = vmatprep.subr.mxu0 0.0
    %1380 = vmatpush1.msra.mxu0 0.0
    %1381 = vmatprep.subr.mxu0 0.0
    %1382 = vmatpush1.msra.mxu0 0.0
    %1383 = vmatprep.subr.mxu0 0.0
    %1384 = vmatpush1.msra.mxu0 0.0
    %1385 = vmatprep.subr.mxu0 0.0
    %1386 = vmatpush1.msra.mxu0 0.0
    %1387 = vmatprep.subr.mxu0 0.0
    %1388 = vmatpush1.msra.mxu0 0.0
    %1389 = vmatprep.subr.mxu0 0.0
    %1390 = vmatpush1.msra.mxu0 0.0
    %1391 = vmatprep.subr.mxu0 0.0
    %1392 = vmatpush1.msra.mxu0 0.0
    %1393 = vmatprep.subr.mxu0 0.0
    %1394 = vmatpush1.msra.mxu0 0.0
    %1395 = vmatprep.subr.mxu0 0.0
    %1396 = vmatpush1.msra.mxu0 0.0
    %1397 = vmatprep.mubr.f32.mxu0 0.0
    %1398 = vmatmul.mubr.f32.gmra.mrb[0].mxu0 %v1331
    %v1399 = vpop.f32.mrb[0].mxu0
    %v1400 = vadd.f32 0.0, %v1399
    %v1401 = vpop.f32.mrb[0].mxu0
    %1402 = vdwg.mxu0
    %v1403 = vadd.f32 %v407, %v1400
    %1404 = vmatprep.subr.mxu0 0.0
    %1405 = vmatpush1.msra.mxu0 %v578
    %1406 = vmatprep.subr.mxu0 0.0
    %1407 = vmatpush1.msra.mxu0 %v579
    %1408 = vmatprep.subr.mxu0 0.0
    %1409 = vmatpush1.msra.mxu0 %v580
    %1410 = vmatprep.subr.mxu0 0.0
    %1411 = vmatpush1.msra.mxu0 %v581
    %1412 = vmatprep.subr.mxu0 0.0
    %1413 = vmatpush1.msra.mxu0 0.0
    %1414 = vmatprep.subr.mxu0 0.0
    %1415 = vmatpush1.msra.mxu0 0.0
    %1416 = vmatprep.subr.mxu0 0.0
    %1417 = vmatpush1.msra.mxu0 0.0
    %1418 = vmatprep.subr.mxu0 0.0
    %1419 = vmatpush1.msra.mxu0 0.0
    %1420 = vmatprep.subr.mxu0 0.0
    %1421 = vmatpush1.msra.mxu0 0.0
    %1422 = vmatprep.subr.mxu0 0.0
    %1423 = vmatpush1.msra.mxu0 0.0
    %1424 = vmatprep.subr.mxu0 0.0
    %1425 = vmatpush1.msra.mxu0 0.0
    %1426 = vmatprep.subr.mxu0 0.0
    %1427 = vmatpush1.msra.mxu0 0.0
    %1428 = vmatprep.subr.mxu0 0.0
    %1429 = vmatpush1.msra.mxu0 0.0
    %1430 = vmatprep.subr.mxu0 0.0
    %1431 = vmatpush1.msra.mxu0 0.0
    %1432 = vmatprep.subr.mxu0 0.0
    %1433 = vmatpush1.msra.mxu0 0.0
    %1434 = vmatprep.subr.mxu0 0.0
    %1435 = vmatpush1.msra.mxu0 0.0
    %1436 = vmatprep.subr.mxu0 0.0
    %1437 = vmatpush1.msra.mxu0 0.0
    %1438 = vmatprep.subr.mxu0 0.0
    %1439 = vmatpush1.msra.mxu0 0.0
    %1440 = vmatprep.subr.mxu0 0.0
    %1441 = vmatpush1.msra.mxu0 0.0
    %1442 = vmatprep.subr.mxu0 0.0
    %1443 = vmatpush1.msra.mxu0 0.0
    %1444 = vmatprep.subr.mxu0 0.0
    %1445 = vmatpush1.msra.mxu0 0.0
    %1446 = vmatprep.subr.mxu0 0.0
    %1447 = vmatpush1.msra.mxu0 0.0
    %1448 = vmatprep.subr.mxu0 0.0
    %1449 = vmatpush1.msra.mxu0 0.0
    %1450 = vmatprep.subr.mxu0 0.0
    %1451 = vmatpush1.msra.mxu0 0.0
    %1452 = vmatprep.subr.mxu0 0.0
    %1453 = vmatpush1.msra.mxu0 0.0
    %1454 = vmatprep.subr.mxu0 0.0
    %1455 = vmatpush1.msra.mxu0 0.0
    %1456 = vmatprep.subr.mxu0 0.0
    %1457 = vmatpush1.msra.mxu0 0.0
    %1458 = vmatprep.subr.mxu0 0.0
    %1459 = vmatpush1.msra.mxu0 0.0
    %1460 = vmatprep.subr.mxu0 0.0
    %1461 = vmatpush1.msra.mxu0 0.0
    %1462 = vmatprep.subr.mxu0 0.0
    %1463 = vmatpush1.msra.mxu0 0.0
    %1464 = vmatprep.subr.mxu0 0.0
    %1465 = vmatpush1.msra.mxu0 0.0
    %1466 = vmatprep.subr.mxu0 0.0
    %1467 = vmatpush1.msra.mxu0 0.0
    %1468 = vmatprep.mubr.f32.mxu0 0.0
    %1469 = vmatmul.mubr.f32.gmra.mrb[0].mxu0 %v1331
    %v1470 = vpop.f32.mrb[0].mxu0
    %v1471 = vadd.f32 0.0, %v1470
    %v1472 = vpop.f32.mrb[0].mxu0
    %1473 = vdwg.mxu0
    %v1474 = vadd.f32 %v481, %v1471
    %1475 = vmatprep.subr.mxu0 0.0
    %1476 = vmatpush1.msra.mxu0 %v583
    %1477 = vmatprep.subr.mxu0 0.0
    %1478 = vmatpush1.msra.mxu0 %v584
    %1479 = vmatprep.subr.mxu0 0.0
    %1480 = vmatpush1.msra.mxu0 %v585
    %1481 = vmatprep.subr.mxu0 0.0
    %1482 = vmatpush1.msra.mxu0 %v586
    %1483 = vmatprep.subr.mxu0 0.0
    %1484 = vmatpush1.msra.mxu0 0.0
    %1485 = vmatprep.subr.mxu0 0.0
    %1486 = vmatpush1.msra.mxu0 0.0
    %1487 = vmatprep.subr.mxu0 0.0
    %1488 = vmatpush1.msra.mxu0 0.0
    %1489 = vmatprep.subr.mxu0 0.0
    %1490 = vmatpush1.msra.mxu0 0.0
    %1491 = vmatprep.subr.mxu0 0.0
    %1492 = vmatpush1.msra.mxu0 0.0
    %1493 = vmatprep.subr.mxu0 0.0
    %1494 = vmatpush1.msra.mxu0 0.0
    %1495 = vmatprep.subr.mxu0 0.0
    %1496 = vmatpush1.msra.mxu0 0.0
    %1497 = vmatprep.subr.mxu0 0.0
    %1498 = vmatpush1.msra.mxu0 0.0
    %1499 = vmatprep.subr.mxu0 0.0
    %1500 = vmatpush1.msra.mxu0 0.0
    %1501 = vmatprep.subr.mxu0 0.0
    %1502 = vmatpush1.msra.mxu0 0.0
    %1503 = vmatprep.subr.mxu0 0.0
    %1504 = vmatpush1.msra.mxu0 0.0
    %1505 = vmatprep.subr.mxu0 0.0
    %1506 = vmatpush1.msra.mxu0 0.0
    %1507 = vmatprep.subr.mxu0 0.0
    %1508 = vmatpush1.msra.mxu0 0.0
    %1509 = vmatprep.subr.mxu0 0.0
    %1510 = vmatpush1.msra.mxu0 0.0
    %1511 = vmatprep.subr.mxu0 0.0
    %1512 = vmatpush1.msra.mxu0 0.0
    %1513 = vmatprep.subr.mxu0 0.0
    %1514 = vmatpush1.msra.mxu0 0.0
    %1515 = vmatprep.subr.mxu0 0.0
    %1516 = vmatpush1.msra.mxu0 0.0
    %1517 = vmatprep.subr.mxu0 0.0
    %1518 = vmatpush1.msra.mxu0 0.0
    %1519 = vmatprep.subr.mxu0 0.0
    %1520 = vmatpush1.msra.mxu0 0.0
    %1521 = vmatprep.subr.mxu0 0.0
    %1522 = vmatpush1.msra.mxu0 0.0
    %1523 = vmatprep.subr.mxu0 0.0
    %1524 = vmatpush1.msra.mxu0 0.0
    %1525 = vmatprep.subr.mxu0 0.0
    %1526 = vmatpush1.msra.mxu0 0.0
    %1527 = vmatprep.subr.mxu0 0.0
    %1528 = vmatpush1.msra.mxu0 0.0
    %1529 = vmatprep.subr.mxu0 0.0
    %1530 = vmatpush1.msra.mxu0 0.0
    %1531 = vmatprep.subr.mxu0 0.0
    %1532 = vmatpush1.msra.mxu0 0.0
    %1533 = vmatprep.subr.mxu0 0.0
    %1534 = vmatpush1.msra.mxu0 0.0
    %1535 = vmatprep.subr.mxu0 0.0
    %1536 = vmatpush1.msra.mxu0 0.0
    %1537 = vmatprep.subr.mxu0 0.0
    %1538 = vmatpush1.msra.mxu0 0.0
    %1539 = vmatprep.mubr.f32.mxu0 0.0
    %1540 = vmatmul.mubr.f32.gmra.mrb[0].mxu0 %v1331
    %v1541 = vpop.f32.mrb[0].mxu0
    %v1542 = vadd.f32 %v600, %v1541
    %v1543 = vpop.f32.mrb[0].mxu0
    %1544 = vdwg.mxu0
    %v1545 = vxor.u32 %v1403, 2147483648
    %v1546 = vmul.f32 %v1545, 1.442695
    %v1547 = vpow.pop %v1546
    %v1548 = vadd.f32 %v1547, 1.0
    %v1549 = vrcp.pop %v1548
    %v1550 = vmul.f32 1.0, %v1549
    %v1551 = vxor.u32 %v1474, 2147483648
    %v1552 = vmul.f32 %v1551, 1.442695
    %v1553 = vpow.pop %v1552
    %v1554 = vadd.f32 %v1553, 1.0
    %v1555 = vrcp.pop %v1554
    %v1556 = vmul.f32 1.0, %v1555
    %v1557 = vmul.f32 %v1550, %v1542
    %v1558 = vadd.f32 %v555, %v1557
    %v1559 = vtanh.pop %v1558
    %v1560 = vsub.f32 1.0, %v1556
    %v1561 = vmul.f32 %v1560, %v1559
    %v1563 = vmul.f32 %v1556, %v1330
    %v1564 = vadd.f32 %v1561, %v1563
    %v1566 = vrot.slane %v1328, 4
    %v1567 = vsel %vm132, %v1566, 0
    %1569 = vmatprep.subr.mxu0 0.0
    %1570 = vmatpush1.msra.mxu0 %v558
    %1571 = vmatprep.subr.mxu0 0.0
    %1572 = vmatpush1.msra.mxu0 %v559
    %1573 = vmatprep.subr.mxu0 0.0
    %1574 = vmatpush1.msra.mxu0 %v560
    %1575 = vmatprep.subr.mxu0 0.0
    %1576 = vmatpush1.msra.mxu0 %v561
    %1577 = vmatprep.subr.mxu0 0.0
    %1578 = vmatpush1.msra.mxu0 0.0
    %1579 = vmatprep.subr.mxu0 0.0
    %1580 = vmatpush1.msra.mxu0 0.0
    %1581 = vmatprep.subr.mxu0 0.0
    %1582 = vmatpush1.msra.mxu0 0.0
    %1583 = vmatprep.subr.mxu0 0.0
    %1584 = vmatpush1.msra.mxu0 0.0
    %1585 = vmatprep.subr.mxu0 0.0
    %1586 = vmatpush1.msra.mxu0 0.0
    %1587 = vmatprep.subr.mxu0 0.0
    %1588 = vmatpush1.msra.mxu0 0.0
    %1589 = vmatprep.subr.mxu0 0.0
    %1590 = vmatpush1.msra.mxu0 0.0
    %1591 = vmatprep.subr.mxu0 0.0
    %1592 = vmatpush1.msra.mxu0 0.0
    %1593 = vmatprep.subr.mxu0 0.0
    %1594 = vmatpush1.msra.mxu0 0.0
    %1595 = vmatprep.subr.mxu0 0.0
    %1596 = vmatpush1.msra.mxu0 0.0
    %1597 = vmatprep.subr.mxu0 0.0
    %1598 = vmatpush1.msra.mxu0 0.0
    %1599 = vmatprep.subr.mxu0 0.0
    %1600 = vmatpush1.msra.mxu0 0.0
    %1601 = vmatprep.subr.mxu0 0.0
    %1602 = vmatpush1.msra.mxu0 0.0
    %1603 = vmatprep.subr.mxu0 0.0
    %1604 = vmatpush1.msra.mxu0 0.0
    %1605 = vmatprep.subr.mxu0 0.0
    %1606 = vmatpush1.msra.mxu0 0.0
    %1607 = vmatprep.subr.mxu0 0.0
    %1608 = vmatpush1.msra.mxu0 0.0
    %1609 = vmatprep.subr.mxu0 0.0
    %1610 = vmatpush1.msra.mxu0 0.0
    %1611 = vmatprep.subr.mxu0 0.0
    %1612 = vmatpush1.msra.mxu0 0.0
    %1613 = vmatprep.subr.mxu0 0.0
    %1614 = vmatpush1.msra.mxu0 0.0
    %1615 = vmatprep.subr.mxu0 0.0
    %1616 = vmatpush1.msra.mxu0 0.0
    %1617 = vmatprep.subr.mxu0 0.0
    %1618 = vmatpush1.msra.mxu0 0.0
    %1619 = vmatprep.subr.mxu0 0.0
    %1620 = vmatpush1.msra.mxu0 0.0
    %1621 = vmatprep.subr.mxu0 0.0
    %1622 = vmatpush1.msra.mxu0 0.0
    %1623 = vmatprep.subr.mxu0 0.0
    %1624 = vmatpush1.msra.mxu0 0.0
    %1625 = vmatprep.subr.mxu0 0.0
    %1626 = vmatpush1.msra.mxu0 0.0
    %1627 = vmatprep.subr.mxu0 0.0
    %1628 = vmatpush1.msra.mxu0 0.0
    %1629 = vmatprep.subr.mxu0 0.0
    %1630 = vmatpush1.msra.mxu0 0.0
    %1631 = vmatprep.subr.mxu0 0.0
    %1632 = vmatpush1.msra.mxu0 0.0
    %1633 = vmatprep.mubr.f32.mxu0 0.0
    %1634 = vmatmul.mubr.f32.gmra.mrb[0].mxu0 %v1567
    %v1635 = vpop.f32.mrb[0].mxu0
    %v1636 = vadd.f32 0.0, %v1635
    %v1637 = vpop.f32.mrb[0].mxu0
    %1638 = vdwg.mxu0
    %v1639 = vadd.f32 %v177, %v1636
    %1640 = vmatprep.subr.mxu0 0.0
    %1641 = vmatpush1.msra.mxu0 %v563
    %1642 = vmatprep.subr.mxu0 0.0
    %1643 = vmatpush1.msra.mxu0 %v564
    %1644 = vmatprep.subr.mxu0 0.0
    %1645 = vmatpush1.msra.mxu0 %v565
    %1646 = vmatprep.subr.mxu0 0.0
    %1647 = vmatpush1.msra.mxu0 %v566
    %1648 = vmatprep.subr.mxu0 0.0
    %1649 = vmatpush1.msra.mxu0 0.0
    %1650 = vmatprep.subr.mxu0 0.0
    %1651 = vmatpush1.msra.mxu0 0.0
    %1652 = vmatprep.subr.mxu0 0.0
    %1653 = vmatpush1.msra.mxu0 0.0
    %1654 = vmatprep.subr.mxu0 0.0
    %1655 = vmatpush1.msra.mxu0 0.0
    %1656 = vmatprep.subr.mxu0 0.0
    %1657 = vmatpush1.msra.mxu0 0.0
    %1658 = vmatprep.subr.mxu0 0.0
    %1659 = vmatpush1.msra.mxu0 0.0
    %1660 = vmatprep.subr.mxu0 0.0
    %1661 = vmatpush1.msra.mxu0 0.0
    %1662 = vmatprep.subr.mxu0 0.0
    %1663 = vmatpush1.msra.mxu0 0.0
    %1664 = vmatprep.subr.mxu0 0.0
    %1665 = vmatpush1.msra.mxu0 0.0
    %1666 = vmatprep.subr.mxu0 0.0
    %1667 = vmatpush1.msra.mxu0 0.0
    %1668 = vmatprep.subr.mxu0 0.0
    %1669 = vmatpush1.msra.mxu0 0.0
    %1670 = vmatprep.subr.mxu0 0.0
    %1671 = vmatpush1.msra.mxu0 0.0
    %1672 = vmatprep.subr.mxu0 0.0
    %1673 = vmatpush1.msra.mxu0 0.0
    %1674 = vmatprep.subr.mxu0 0.0
    %1675 = vmatpush1.msra.mxu0 0.0
    %1676 = vmatprep.subr.mxu0 0.0
    %1677 = vmatpush1.msra.mxu0 0.0
    %1678 = vmatprep.subr.mxu0 0.0
    %1679 = vmatpush1.msra.mxu0 0.0
    %1680 = vmatprep.subr.mxu0 0.0
    %1681 = vmatpush1.msra.mxu0 0.0
    %1682 = vmatprep.subr.mxu0 0.0
    %1683 = vmatpush1.msra.mxu0 0.0
    %1684 = vmatprep.subr.mxu0 0.0
    %1685 = vmatpush1.msra.mxu0 0.0
    %1686 = vmatprep.subr.mxu0 0.0
    %1687 = vmatpush1.msra.mxu0 0.0
    %1688 = vmatprep.subr.mxu0 0.0
    %1689 = vmatpush1.msra.mxu0 0.0
    %1690 = vmatprep.subr.mxu0 0.0
    %1691 = vmatpush1.msra.mxu0 0.0
    %1692 = vmatprep.subr.mxu0 0.0
    %1693 = vmatpush1.msra.mxu0 0.0
    %1694 = vmatprep.subr.mxu0 0.0
    %1695 = vmatpush1.msra.mxu0 0.0
    %1696 = vmatprep.subr.mxu0 0.0
    %1697 = vmatpush1.msra.mxu0 0.0
    %1698 = vmatprep.subr.mxu0 0.0
    %1699 = vmatpush1.msra.mxu0 0.0
    %1700 = vmatprep.subr.mxu0 0.0
    %1701 = vmatpush1.msra.mxu0 0.0
    %1702 = vmatprep.subr.mxu0 0.0
    %1703 = vmatpush1.msra.mxu0 0.0
    %1704 = vmatprep.mubr.f32.mxu0 0.0
    %1705 = vmatmul.mubr.f32.gmra.mrb[0].mxu0 %v1567
    %v1706 = vpop.f32.mrb[0].mxu0
    %v1707 = vadd.f32 0.0, %v1706
    %v1708 = vpop.f32.mrb[0].mxu0
    %1709 = vdwg.mxu0
    %v1710 = vadd.f32 %v251, %v1707
    %1711 = vmatprep.subr.mxu0 0.0
    %1712 = vmatpush1.msra.mxu0 %v568
    %1713 = vmatprep.subr.mxu0 0.0
    %1714 = vmatpush1.msra.mxu0 %v569
    %1715 = vmatprep.subr.mxu0 0.0
    %1716 = vmatpush1.msra.mxu0 %v570
    %1717 = vmatprep.subr.mxu0 0.0
    %1718 = vmatpush1.msra.mxu0 %v571
    %1719 = vmatprep.subr.mxu0 0.0
    %1720 = vmatpush1.msra.mxu0 0.0
    %1721 = vmatprep.subr.mxu0 0.0
    %1722 = vmatpush1.msra.mxu0 0.0
    %1723 = vmatprep.subr.mxu0 0.0
    %1724 = vmatpush1.msra.mxu0 0.0
    %1725 = vmatprep.subr.mxu0 0.0
    %1726 = vmatpush1.msra.mxu0 0.0
    %1727 = vmatprep.subr.mxu0 0.0
    %1728 = vmatpush1.msra.mxu0 0.0
    %1729 = vmatprep.subr.mxu0 0.0
    %1730 = vmatpush1.msra.mxu0 0.0
    %1731 = vmatprep.subr.mxu0 0.0
    %1732 = vmatpush1.msra.mxu0 0.0
    %1733 = vmatprep.subr.mxu0 0.0
    %1734 = vmatpush1.msra.mxu0 0.0
    %1735 = vmatprep.subr.mxu0 0.0
    %1736 = vmatpush1.msra.mxu0 0.0
    %1737 = vmatprep.subr.mxu0 0.0
    %1738 = vmatpush1.msra.mxu0 0.0
    %1739 = vmatprep.subr.mxu0 0.0
    %1740 = vmatpush1.msra.mxu0 0.0
    %1741 = vmatprep.subr.mxu0 0.0
    %1742 = vmatpush1.msra.mxu0 0.0
    %1743 = vmatprep.subr.mxu0 0.0
    %1744 = vmatpush1.msra.mxu0 0.0
    %1745 = vmatprep.subr.mxu0 0.0
    %1746 = vmatpush1.msra.mxu0 0.0
    %1747 = vmatprep.subr.mxu0 0.0
    %1748 = vmatpush1.msra.mxu0 0.0
    %1749 = vmatprep.subr.mxu0 0.0
    %1750 = vmatpush1.msra.mxu0 0.0
    %1751 = vmatprep.subr.mxu0 0.0
    %1752 = vmatpush1.msra.mxu0 0.0
    %1753 = vmatprep.subr.mxu0 0.0
    %1754 = vmatpush1.msra.mxu0 0.0
    %1755 = vmatprep.subr.mxu0 0.0
    %1756 = vmatpush1.msra.mxu0 0.0
    %1757 = vmatprep.subr.mxu0 0.0
    %1758 = vmatpush1.msra.mxu0 0.0
    %1759 = vmatprep.subr.mxu0 0.0
    %1760 = vmatpush1.msra.mxu0 0.0
    %1761 = vmatprep.subr.mxu0 0.0
    %1762 = vmatpush1.msra.mxu0 0.0
    %1763 = vmatprep.subr.mxu0 0.0
    %1764 = vmatpush1.msra.mxu0 0.0
    %1765 = vmatprep.subr.mxu0 0.0
    %1766 = vmatpush1.msra.mxu0 0.0
    %1767 = vmatprep.subr.mxu0 0.0
    %1768 = vmatpush1.msra.mxu0 0.0
    %1769 = vmatprep.subr.mxu0 0.0
    %1770 = vmatpush1.msra.mxu0 0.0
    %1771 = vmatprep.subr.mxu0 0.0
    %1772 = vmatpush1.msra.mxu0 0.0
    %1773 = vmatprep.subr.mxu0 0.0
    %1774 = vmatpush1.msra.mxu0 0.0
    %1775 = vmatprep.mubr.f32.mxu0 0.0
    %1776 = vmatmul.mubr.f32.gmra.mrb[0].mxu0 %v1567
    %v1777 = vpop.f32.mrb[0].mxu0
    %v1778 = vadd.f32 %v592, %v1777
    %v1779 = vpop.f32.mrb[0].mxu0
    %1780 = vdwg.mxu0
    %v1781 = vxor.u32 %v1639, 2147483648
    %v1782 = vmul.f32 %v1781, 1.442695
    %v1783 = vpow.pop %v1782
    %v1784 = vadd.f32 %v1783, 1.0
    %v1785 = vrcp.pop %v1784
    %v1786 = vmul.f32 1.0, %v1785
    %v1787 = vxor.u32 %v1710, 2147483648
    %v1788 = vmul.f32 %v1787, 1.442695
    %v1789 = vpow.pop %v1788
    %v1790 = vadd.f32 %v1789, 1.0
    %v1791 = vrcp.pop %v1790
    %v1792 = vmul.f32 1.0, %v1791
    %v1793 = vmul.f32 %v1786, %v1778
    %v1794 = vadd.f32 %v325, %v1793
    %v1795 = vtanh.pop %v1794
    %v1796 = vsub.f32 1.0, %v1792
    %v1797 = vmul.f32 %v1796, %v1795
    %v1799 = vmul.f32 %v1792, %v1566
    %v1800 = vadd.f32 %v1797, %v1799
    %v1802 = vsel %vm132, %v1564, 0
    %1804 = vmatprep.subr.mxu0 0.0
    %1805 = vmatpush1.msra.mxu0 %v573
    %1806 = vmatprep.subr.mxu0 0.0
    %1807 = vmatpush1.msra.mxu0 %v574
    %1808 = vmatprep.subr.mxu0 0.0
    %1809 = vmatpush1.msra.mxu0 %v575
    %1810 = vmatprep.subr.mxu0 0.0
    %1811 = vmatpush1.msra.mxu0 %v576
    %1812 = vmatprep.subr.mxu0 0.0
    %1813 = vmatpush1.msra.mxu0 0.0
    %1814 = vmatprep.subr.mxu0 0.0
    %1815 = vmatpush1.msra.mxu0 0.0
    %1816 = vmatprep.subr.mxu0 0.0
    %1817 = vmatpush1.msra.mxu0 0.0
    %1818 = vmatprep.subr.mxu0 0.0
    %1819 = vmatpush1.msra.mxu0 0.0
    %1820 = vmatprep.subr.mxu0 0.0
    %1821 = vmatpush1.msra.mxu0 0.0
    %1822 = vmatprep.subr.mxu0 0.0
    %1823 = vmatpush1.msra.mxu0 0.0
    %1824 = vmatprep.subr.mxu0 0.0
    %1825 = vmatpush1.msra.mxu0 0.0
    %1826 = vmatprep.subr.mxu0 0.0
    %1827 = vmatpush1.msra.mxu0 0.0
    %1828 = vmatprep.subr.mxu0 0.0
    %1829 = vmatpush1.msra.mxu0 0.0
    %1830 = vmatprep.subr.mxu0 0.0
    %1831 = vmatpush1.msra.mxu0 0.0
    %1832 = vmatprep.subr.mxu0 0.0
    %1833 = vmatpush1.msra.mxu0 0.0
    %1834 = vmatprep.subr.mxu0 0.0
    %1835 = vmatpush1.msra.mxu0 0.0
    %1836 = vmatprep.subr.mxu0 0.0
    %1837 = vmatpush1.msra.mxu0 0.0
    %1838 = vmatprep.subr.mxu0 0.0
    %1839 = vmatpush1.msra.mxu0 0.0
    %1840 = vmatprep.subr.mxu0 0.0
    %1841 = vmatpush1.msra.mxu0 0.0
    %1842 = vmatprep.subr.mxu0 0.0
    %1843 = vmatpush1.msra.mxu0 0.0
    %1844 = vmatprep.subr.mxu0 0.0
    %1845 = vmatpush1.msra.mxu0 0.0
    %1846 = vmatprep.subr.mxu0 0.0
    %1847 = vmatpush1.msra.mxu0 0.0
    %1848 = vmatprep.subr.mxu0 0.0
    %1849 = vmatpush1.msra.mxu0 0.0
    %1850 = vmatprep.subr.mxu0 0.0
    %1851 = vmatpush1.msra.mxu0 0.0
    %1852 = vmatprep.subr.mxu0 0.0
    %1853 = vmatpush1.msra.mxu0 0.0
    %1854 = vmatprep.subr.mxu0 0.0
    %1855 = vmatpush1.msra.mxu0 0.0
    %1856 = vmatprep.subr.mxu0 0.0
    %1857 = vmatpush1.msra.mxu0 0.0
    %1858 = vmatprep.subr.mxu0 0.0
    %1859 = vmatpush1.msra.mxu0 0.0
    %1860 = vmatprep.subr.mxu0 0.0
    %1861 = vmatpush1.msra.mxu0 0.0
    %1862 = vmatprep.subr.mxu0 0.0
    %1863 = vmatpush1.msra.mxu0 0.0
    %1864 = vmatprep.subr.mxu0 0.0
    %1865 = vmatpush1.msra.mxu0 0.0
    %1866 = vmatprep.subr.mxu0 0.0
    %1867 = vmatpush1.msra.mxu0 0.0
    %1868 = vmatprep.mubr.f32.mxu0 0.0
    %1869 = vmatmul.mubr.f32.gmra.mrb[0].mxu0 %v1802
    %v1870 = vpop.f32.mrb[0].mxu0
    %v1871 = vadd.f32 0.0, %v1870
    %v1872 = vpop.f32.mrb[0].mxu0
    %1873 = vdwg.mxu0
    %v1875 = vrot.slane %v1871, 4
    %v1877 = vadd.f32 %v404, %v1875
    %1878 = vmatprep.subr.mxu0 0.0
    %1879 = vmatpush1.msra.mxu0 %v578
    %1880 = vmatprep.subr.mxu0 0.0
    %1881 = vmatpush1.msra.mxu0 %v579
    %1882 = vmatprep.subr.mxu0 0.0
    %1883 = vmatpush1.msra.mxu0 %v580
    %1884 = vmatprep.subr.mxu0 0.0
    %1885 = vmatpush1.msra.mxu0 %v581
    %1886 = vmatprep.subr.mxu0 0.0
    %1887 = vmatpush1.msra.mxu0 0.0
    %1888 = vmatprep.subr.mxu0 0.0
    %1889 = vmatpush1.msra.mxu0 0.0
    %1890 = vmatprep.subr.mxu0 0.0
    %1891 = vmatpush1.msra.mxu0 0.0
    %1892 = vmatprep.subr.mxu0 0.0
    %1893 = vmatpush1.msra.mxu0 0.0
    %1894 = vmatprep.subr.mxu0 0.0
    %1895 = vmatpush1.msra.mxu0 0.0
    %1896 = vmatprep.subr.mxu0 0.0
    %1897 = vmatpush1.msra.mxu0 0.0
    %1898 = vmatprep.subr.mxu0 0.0
    %1899 = vmatpush1.msra.mxu0 0.0
    %1900 = vmatprep.subr.mxu0 0.0
    %1901 = vmatpush1.msra.mxu0 0.0
    %1902 = vmatprep.subr.mxu0 0.0
    %1903 = vmatpush1.msra.mxu0 0.0
    %1904 = vmatprep.subr.mxu0 0.0
    %1905 = vmatpush1.msra.mxu0 0.0
    %1906 = vmatprep.subr.mxu0 0.0
    %1907 = vmatpush1.msra.mxu0 0.0
    %1908 = vmatprep.subr.mxu0 0.0
    %1909 = vmatpush1.msra.mxu0 0.0
    %1910 = vmatprep.subr.mxu0 0.0
    %1911 = vmatpush1.msra.mxu0 0.0
    %1912 = vmatprep.subr.mxu0 0.0
    %1913 = vmatpush1.msra.mxu0 0.0
    %1914 = vmatprep.subr.mxu0 0.0
    %1915 = vmatpush1.msra.mxu0 0.0
    %1916 = vmatprep.subr.mxu0 0.0
    %1917 = vmatpush1.msra.mxu0 0.0
    %1918 = vmatprep.subr.mxu0 0.0
    %1919 = vmatpush1.msra.mxu0 0.0
    %1920 = vmatprep.subr.mxu0 0.0
    %1921 = vmatpush1.msra.mxu0 0.0
    %1922 = vmatprep.subr.mxu0 0.0
    %1923 = vmatpush1.msra.mxu0 0.0
    %1924 = vmatprep.subr.mxu0 0.0
    %1925 = vmatpush1.msra.mxu0 0.0
    %1926 = vmatprep.subr.mxu0 0.0
    %1927 = vmatpush1.msra.mxu0 0.0
    %1928 = vmatprep.subr.mxu0 0.0
    %1929 = vmatpush1.msra.mxu0 0.0
    %1930 = vmatprep.subr.mxu0 0.0
    %1931 = vmatpush1.msra.mxu0 0.0
    %1932 = vmatprep.subr.mxu0 0.0
    %1933 = vmatpush1.msra.mxu0 0.0
    %1934 = vmatprep.subr.mxu0 0.0
    %1935 = vmatpush1.msra.mxu0 0.0
    %1936 = vmatprep.subr.mxu0 0.0
    %1937 = vmatpush1.msra.mxu0 0.0
    %1938 = vmatprep.subr.mxu0 0.0
    %1939 = vmatpush1.msra.mxu0 0.0
    %1940 = vmatprep.subr.mxu0 0.0
    %1941 = vmatpush1.msra.mxu0 0.0
    %1942 = vmatprep.mubr.f32.mxu0 0.0
    %1943 = vmatmul.mubr.f32.gmra.mrb[0].mxu0 %v1802
    %v1944 = vpop.f32.mrb[0].mxu0
    %v1945 = vadd.f32 0.0, %v1944
    %v1946 = vpop.f32.mrb[0].mxu0
    %1947 = vdwg.mxu0
    %v1949 = vrot.slane %v1945, 4
    %v1951 = vadd.f32 %v478, %v1949
    %1952 = vmatprep.subr.mxu0 0.0
    %1953 = vmatpush1.msra.mxu0 %v583
    %1954 = vmatprep.subr.mxu0 0.0
    %1955 = vmatpush1.msra.mxu0 %v584
    %1956 = vmatprep.subr.mxu0 0.0
    %1957 = vmatpush1.msra.mxu0 %v585
    %1958 = vmatprep.subr.mxu0 0.0
    %1959 = vmatpush1.msra.mxu0 %v586
    %1960 = vmatprep.subr.mxu0 0.0
    %1961 = vmatpush1.msra.mxu0 0.0
    %1962 = vmatprep.subr.mxu0 0.0
    %1963 = vmatpush1.msra.mxu0 0.0
    %1964 = vmatprep.subr.mxu0 0.0
    %1965 = vmatpush1.msra.mxu0 0.0
    %1966 = vmatprep.subr.mxu0 0.0
    %1967 = vmatpush1.msra.mxu0 0.0
    %1968 = vmatprep.subr.mxu0 0.0
    %1969 = vmatpush1.msra.mxu0 0.0
    %1970 = vmatprep.subr.mxu0 0.0
    %1971 = vmatpush1.msra.mxu0 0.0
    %1972 = vmatprep.subr.mxu0 0.0
    %1973 = vmatpush1.msra.mxu0 0.0
    %1974 = vmatprep.subr.mxu0 0.0
    %1975 = vmatpush1.msra.mxu0 0.0
    %1976 = vmatprep.subr.mxu0 0.0
    %1977 = vmatpush1.msra.mxu0 0.0
    %1978 = vmatprep.subr.mxu0 0.0
    %1979 = vmatpush1.msra.mxu0 0.0
    %1980 = vmatprep.subr.mxu0 0.0
    %1981 = vmatpush1.msra.mxu0 0.0
    %1982 = vmatprep.subr.mxu0 0.0
    %1983 = vmatpush1.msra.mxu0 0.0
    %1984 = vmatprep.subr.mxu0 0.0
    %1985 = vmatpush1.msra.mxu0 0.0
    %1986 = vmatprep.subr.mxu0 0.0
    %1987 = vmatpush1.msra.mxu0 0.0
    %1988 = vmatprep.subr.mxu0 0.0
    %1989 = vmatpush1.msra.mxu0 0.0
    %1990 = vmatprep.subr.mxu0 0.0
    %1991 = vmatpush1.msra.mxu0 0.0
    %1992 = vmatprep.subr.mxu0 0.0
    %1993 = vmatpush1.msra.mxu0 0.0
    %1994 = vmatprep.subr.mxu0 0.0
    %1995 = vmatpush1.msra.mxu0 0.0
    %1996 = vmatprep.subr.mxu0 0.0
    %1997 = vmatpush1.msra.mxu0 0.0
    %1998 = vmatprep.subr.mxu0 0.0
    %1999 = vmatpush1.msra.mxu0 0.0
    %2000 = vmatprep.subr.mxu0 0.0
    %2001 = vmatpush1.msra.mxu0 0.0
    %2002 = vmatprep.subr.mxu0 0.0
    %2003 = vmatpush1.msra.mxu0 0.0
    %2004 = vmatprep.subr.mxu0 0.0
    %2005 = vmatpush1.msra.mxu0 0.0
    %2006 = vmatprep.subr.mxu0 0.0
    %2007 = vmatpush1.msra.mxu0 0.0
    %2008 = vmatprep.subr.mxu0 0.0
    %2009 = vmatpush1.msra.mxu0 0.0
    %2010 = vmatprep.subr.mxu0 0.0
    %2011 = vmatpush1.msra.mxu0 0.0
    %2012 = vmatprep.subr.mxu0 0.0
    %2013 = vmatpush1.msra.mxu0 0.0
    %2014 = vmatprep.subr.mxu0 0.0
    %2015 = vmatpush1.msra.mxu0 0.0
    %2016 = vmatprep.mubr.f32.mxu0 0.0
    %2017 = vmatmul.mubr.f32.gmra.mrb[0].mxu0 %v1802
    %v2018 = vpop.f32.mrb[0].mxu0
    %v2019 = vadd.f32 %v600, %v2018
    %v2020 = vpop.f32.mrb[0].mxu0
    %2021 = vdwg.mxu0
    %v2022 = vxor.u32 %v1877, 2147483648
    %v2023 = vmul.f32 %v2022, 1.442695
    %v2024 = vpow.pop %v2023
    %v2025 = vadd.f32 %v2024, 1.0
    %v2026 = vrcp.pop %v2025
    %v2027 = vmul.f32 1.0, %v2026
    %v2028 = vxor.u32 %v1951, 2147483648
    %v2029 = vmul.f32 %v2028, 1.442695
    %v2030 = vpow.pop %v2029
    %v2031 = vadd.f32 %v2030, 1.0
    %v2032 = vrcp.pop %v2031
    %v2033 = vmul.f32 1.0, %v2032
    %v2035 = vrot.slane %v2019, 4
    %v2037 = vmul.f32 %v2027, %v2035
    %v2038 = vadd.f32 %v552, %v2037
    %v2039 = vtanh.pop %v2038
    %v2040 = vsub.f32 1.0, %v2033
    %v2041 = vmul.f32 %v2040, %v2039
    %v2042 = vrot.slane %v1564, 4
    %v2044 = vmul.f32 %v2033, %v2042
    %v2045 = vadd.f32 %v2041, %v2044
    %v2047 = vsel %vm132, %v1800, 0
    %2049 = vmatprep.subr.mxu0 0.0
    %2050 = vmatpush1.msra.mxu0 %v558
    %2051 = vmatprep.subr.mxu0 0.0
    %2052 = vmatpush1.msra.mxu0 %v559
    %2053 = vmatprep.subr.mxu0 0.0
    %2054 = vmatpush1.msra.mxu0 %v560
    %2055 = vmatprep.subr.mxu0 0.0
    %2056 = vmatpush1.msra.mxu0 %v561
    %2057 = vmatprep.subr.mxu0 0.0
    %2058 = vmatpush1.msra.mxu0 0.0
    %2059 = vmatprep.subr.mxu0 0.0
    %2060 = vmatpush1.msra.mxu0 0.0
    %2061 = vmatprep.subr.mxu0 0.0
    %2062 = vmatpush1.msra.mxu0 0.0
    %2063 = vmatprep.subr.mxu0 0.0
    %2064 = vmatpush1.msra.mxu0 0.0
    %2065 = vmatprep.subr.mxu0 0.0
    %2066 = vmatpush1.msra.mxu0 0.0
    %2067 = vmatprep.subr.mxu0 0.0
    %2068 = vmatpush1.msra.mxu0 0.0
    %2069 = vmatprep.subr.mxu0 0.0
    %2070 = vmatpush1.msra.mxu0 0.0
    %2071 = vmatprep.subr.mxu0 0.0
    %2072 = vmatpush1.msra.mxu0 0.0
    %2073 = vmatprep.subr.mxu0 0.0
    %2074 = vmatpush1.msra.mxu0 0.0
    %2075 = vmatprep.subr.mxu0 0.0
    %2076 = vmatpush1.msra.mxu0 0.0
    %2077 = vmatprep.subr.mxu0 0.0
    %2078 = vmatpush1.msra.mxu0 0.0
    %2079 = vmatprep.subr.mxu0 0.0
    %2080 = vmatpush1.msra.mxu0 0.0
    %2081 = vmatprep.subr.mxu0 0.0
    %2082 = vmatpush1.msra.mxu0 0.0
    %2083 = vmatprep.subr.mxu0 0.0
    %2084 = vmatpush1.msra.mxu0 0.0
    %2085 = vmatprep.subr.mxu0 0.0
    %2086 = vmatpush1.msra.mxu0 0.0
    %2087 = vmatprep.subr.mxu0 0.0
    %2088 = vmatpush1.msra.mxu0 0.0
    %2089 = vmatprep.subr.mxu0 0.0
    %2090 = vmatpush1.msra.mxu0 0.0
    %2091 = vmatprep.subr.mxu0 0.0
    %2092 = vmatpush1.msra.mxu0 0.0
    %2093 = vmatprep.subr.mxu0 0.0
    %2094 = vmatpush1.msra.mxu0 0.0
    %2095 = vmatprep.subr.mxu0 0.0
    %2096 = vmatpush1.msra.mxu0 0.0
    %2097 = vmatprep.subr.mxu0 0.0
    %2098 = vmatpush1.msra.mxu0 0.0
    %2099 = vmatprep.subr.mxu0 0.0
    %2100 = vmatpush1.msra.mxu0 0.0
    %2101 = vmatprep.subr.mxu0 0.0
    %2102 = vmatpush1.msra.mxu0 0.0
    %2103 = vmatprep.subr.mxu0 0.0
    %2104 = vmatpush1.msra.mxu0 0.0
    %2105 = vmatprep.subr.mxu0 0.0
    %2106 = vmatpush1.msra.mxu0 0.0
    %2107 = vmatprep.subr.mxu0 0.0
    %2108 = vmatpush1.msra.mxu0 0.0
    %2109 = vmatprep.subr.mxu0 0.0
    %2110 = vmatpush1.msra.mxu0 0.0
    %2111 = vmatprep.subr.mxu0 0.0
    %2112 = vmatpush1.msra.mxu0 0.0
    %2113 = vmatprep.mubr.f32.mxu0 0.0
    %2114 = vmatmul.mubr.f32.gmra.mrb[0].mxu0 %v2047
    %v2115 = vpop.f32.mrb[0].mxu0
    %v2116 = vadd.f32 0.0, %v2115
    %v2117 = vpop.f32.mrb[0].mxu0
    %2118 = vdwg.mxu0
    %v2120 = vrot.slane %v2116, 4
    %v2122 = vadd.f32 %v177, %v2120
    %2123 = vmatprep.subr.mxu0 0.0
    %2124 = vmatpush1.msra.mxu0 %v563
    %2125 = vmatprep.subr.mxu0 0.0
    %2126 = vmatpush1.msra.mxu0 %v564
    %2127 = vmatprep.subr.mxu0 0.0
    %2128 = vmatpush1.msra.mxu0 %v565
    %2129 = vmatprep.subr.mxu0 0.0
    %2130 = vmatpush1.msra.mxu0 %v566
    %2131 = vmatprep.subr.mxu0 0.0
    %2132 = vmatpush1.msra.mxu0 0.0
    %2133 = vmatprep.subr.mxu0 0.0
    %2134 = vmatpush1.msra.mxu0 0.0
    %2135 = vmatprep.subr.mxu0 0.0
    %2136 = vmatpush1.msra.mxu0 0.0
    %2137 = vmatprep.subr.mxu0 0.0
    %2138 = vmatpush1.msra.mxu0 0.0
    %2139 = vmatprep.subr.mxu0 0.0
    %2140 = vmatpush1.msra.mxu0 0.0
    %2141 = vmatprep.subr.mxu0 0.0
    %2142 = vmatpush1.msra.mxu0 0.0
    %2143 = vmatprep.subr.mxu0 0.0
    %2144 = vmatpush1.msra.mxu0 0.0
    %2145 = vmatprep.subr.mxu0 0.0
    %2146 = vmatpush1.msra.mxu0 0.0
    %2147 = vmatprep.subr.mxu0 0.0
    %2148 = vmatpush1.msra.mxu0 0.0
    %2149 = vmatprep.subr.mxu0 0.0
    %2150 = vmatpush1.msra.mxu0 0.0
    %2151 = vmatprep.subr.mxu0 0.0
    %2152 = vmatpush1.msra.mxu0 0.0
    %2153 = vmatprep.subr.mxu0 0.0
    %2154 = vmatpush1.msra.mxu0 0.0
    %2155 = vmatprep.subr.mxu0 0.0
    %2156 = vmatpush1.msra.mxu0 0.0
    %2157 = vmatprep.subr.mxu0 0.0
    %2158 = vmatpush1.msra.mxu0 0.0
    %2159 = vmatprep.subr.mxu0 0.0
    %2160 = vmatpush1.msra.mxu0 0.0
    %2161 = vmatprep.subr.mxu0 0.0
    %2162 = vmatpush1.msra.mxu0 0.0
    %2163 = vmatprep.subr.mxu0 0.0
    %2164 = vmatpush1.msra.mxu0 0.0
    %2165 = vmatprep.subr.mxu0 0.0
    %2166 = vmatpush1.msra.mxu0 0.0
    %2167 = vmatprep.subr.mxu0 0.0
    %2168 = vmatpush1.msra.mxu0 0.0
    %2169 = vmatprep.subr.mxu0 0.0
    %2170 = vmatpush1.msra.mxu0 0.0
    %2171 = vmatprep.subr.mxu0 0.0
    %2172 = vmatpush1.msra.mxu0 0.0
    %2173 = vmatprep.subr.mxu0 0.0
    %2174 = vmatpush1.msra.mxu0 0.0
    %2175 = vmatprep.subr.mxu0 0.0
    %2176 = vmatpush1.msra.mxu0 0.0
    %2177 = vmatprep.subr.mxu0 0.0
    %2178 = vmatpush1.msra.mxu0 0.0
    %2179 = vmatprep.subr.mxu0 0.0
    %2180 = vmatpush1.msra.mxu0 0.0
    %2181 = vmatprep.subr.mxu0 0.0
    %2182 = vmatpush1.msra.mxu0 0.0
    %2183 = vmatprep.subr.mxu0 0.0
    %2184 = vmatpush1.msra.mxu0 0.0
    %2185 = vmatprep.subr.mxu0 0.0
    %2186 = vmatpush1.msra.mxu0 0.0
    %2187 = vmatprep.mubr.f32.mxu0 0.0
    %2188 = vmatmul.mubr.f32.gmra.mrb[0].mxu0 %v2047
    %v2189 = vpop.f32.mrb[0].mxu0
    %v2190 = vadd.f32 0.0, %v2189
    %v2191 = vpop.f32.mrb[0].mxu0
    %2192 = vdwg.mxu0
    %v2194 = vrot.slane %v2190, 4
    %v2196 = vadd.f32 %v251, %v2194
    %2197 = vmatprep.subr.mxu0 0.0
    %2198 = vmatpush1.msra.mxu0 %v568
    %2199 = vmatprep.subr.mxu0 0.0
    %2200 = vmatpush1.msra.mxu0 %v569
    %2201 = vmatprep.subr.mxu0 0.0
    %2202 = vmatpush1.msra.mxu0 %v570
    %2203 = vmatprep.subr.mxu0 0.0
    %2204 = vmatpush1.msra.mxu0 %v571
    %2205 = vmatprep.subr.mxu0 0.0
    %2206 = vmatpush1.msra.mxu0 0.0
    %2207 = vmatprep.subr.mxu0 0.0
    %2208 = vmatpush1.msra.mxu0 0.0
    %2209 = vmatprep.subr.mxu0 0.0
    %2210 = vmatpush1.msra.mxu0 0.0
    %2211 = vmatprep.subr.mxu0 0.0
    %2212 = vmatpush1.msra.mxu0 0.0
    %2213 = vmatprep.subr.mxu0 0.0
    %2214 = vmatpush1.msra.mxu0 0.0
    %2215 = vmatprep.subr.mxu0 0.0
    %2216 = vmatpush1.msra.mxu0 0.0
    %2217 = vmatprep.subr.mxu0 0.0
    %2218 = vmatpush1.msra.mxu0 0.0
    %2219 = vmatprep.subr.mxu0 0.0
    %2220 = vmatpush1.msra.mxu0 0.0
    %2221 = vmatprep.subr.mxu0 0.0
    %2222 = vmatpush1.msra.mxu0 0.0
    %2223 = vmatprep.subr.mxu0 0.0
    %2224 = vmatpush1.msra.mxu0 0.0
    %2225 = vmatprep.subr.mxu0 0.0
    %2226 = vmatpush1.msra.mxu0 0.0
    %2227 = vmatprep.subr.mxu0 0.0
    %2228 = vmatpush1.msra.mxu0 0.0
    %2229 = vmatprep.subr.mxu0 0.0
    %2230 = vmatpush1.msra.mxu0 0.0
    %2231 = vmatprep.subr.mxu0 0.0
    %2232 = vmatpush1.msra.mxu0 0.0
    %2233 = vmatprep.subr.mxu0 0.0
    %2234 = vmatpush1.msra.mxu0 0.0
    %2235 = vmatprep.subr.mxu0 0.0
    %2236 = vmatpush1.msra.mxu0 0.0
    %2237 = vmatprep.subr.mxu0 0.0
    %2238 = vmatpush1.msra.mxu0 0.0
    %2239 = vmatprep.subr.mxu0 0.0
    %2240 = vmatpush1.msra.mxu0 0.0
    %2241 = vmatprep.subr.mxu0 0.0
    %2242 = vmatpush1.msra.mxu0 0.0
    %2243 = vmatprep.subr.mxu0 0.0
    %2244 = vmatpush1.msra.mxu0 0.0
    %2245 = vmatprep.subr.mxu0 0.0
    %2246 = vmatpush1.msra.mxu0 0.0
    %2247 = vmatprep.subr.mxu0 0.0
    %2248 = vmatpush1.msra.mxu0 0.0
    %2249 = vmatprep.subr.mxu0 0.0
    %2250 = vmatpush1.msra.mxu0 0.0
    %2251 = vmatprep.subr.mxu0 0.0
    %2252 = vmatpush1.msra.mxu0 0.0
    %2253 = vmatprep.subr.mxu0 0.0
    %2254 = vmatpush1.msra.mxu0 0.0
    %2255 = vmatprep.subr.mxu0 0.0
    %2256 = vmatpush1.msra.mxu0 0.0
    %2257 = vmatprep.subr.mxu0 0.0
    %2258 = vmatpush1.msra.mxu0 0.0
    %2259 = vmatprep.subr.mxu0 0.0
    %2260 = vmatpush1.msra.mxu0 0.0
    %2261 = vmatprep.mubr.f32.mxu0 0.0
    %2262 = vmatmul.mubr.f32.gmra.mrb[0].mxu0 %v2047
    %v2263 = vpop.f32.mrb[0].mxu0
    %v2264 = vadd.f32 %v592, %v2263
    %v2265 = vpop.f32.mrb[0].mxu0
    %2266 = vdwg.mxu0
    %v2267 = vxor.u32 %v2122, 2147483648
    %v2268 = vmul.f32 %v2267, 1.442695
    %v2269 = vpow.pop %v2268
    %v2270 = vadd.f32 %v2269, 1.0
    %v2271 = vrcp.pop %v2270
    %v2272 = vmul.f32 1.0, %v2271
    %v2273 = vxor.u32 %v2196, 2147483648
    %v2274 = vmul.f32 %v2273, 1.442695
    %v2275 = vpow.pop %v2274
    %v2276 = vadd.f32 %v2275, 1.0
    %v2277 = vrcp.pop %v2276
    %v2278 = vmul.f32 1.0, %v2277
    %v2280 = vrot.slane %v2264, 4
    %v2282 = vmul.f32 %v2272, %v2280
    %v2283 = vadd.f32 %v325, %v2282
    %v2284 = vtanh.pop %v2283
    %v2285 = vsub.f32 1.0, %v2278
    %v2286 = vmul.f32 %v2285, %v2284
    %v2287 = vrot.slane %v1800, 4
    %v2289 = vmul.f32 %v2278, %v2287
    %v2290 = vadd.f32 %v2286, %v2289
    %v2292 = vrot.slane %v2045, 4
    %v2293 = vsel %vm132, %v2292, 0
    %2295 = vmatprep.subr.mxu0 0.0
    %2296 = vmatpush1.msra.mxu0 %v573
    %2297 = vmatprep.subr.mxu0 0.0
    %2298 = vmatpush1.msra.mxu0 %v574
    %2299 = vmatprep.subr.mxu0 0.0
    %2300 = vmatpush1.msra.mxu0 %v575
    %2301 = vmatprep.subr.mxu0 0.0
    %2302 = vmatpush1.msra.mxu0 %v576
    %2303 = vmatprep.subr.mxu0 0.0
    %2304 = vmatpush1.msra.mxu0 0.0
    %2305 = vmatprep.subr.mxu0 0.0
    %2306 = vmatpush1.msra.mxu0 0.0
    %2307 = vmatprep.subr.mxu0 0.0
    %2308 = vmatpush1.msra.mxu0 0.0
    %2309 = vmatprep.subr.mxu0 0.0
    %2310 = vmatpush1.msra.mxu0 0.0
    %2311 = vmatprep.subr.mxu0 0.0
    %2312 = vmatpush1.msra.mxu0 0.0
    %2313 = vmatprep.subr.mxu0 0.0
    %2314 = vmatpush1.msra.mxu0 0.0
    %2315 = vmatprep.subr.mxu0 0.0
    %2316 = vmatpush1.msra.mxu0 0.0
    %2317 = vmatprep.subr.mxu0 0.0
    %2318 = vmatpush1.msra.mxu0 0.0
    %2319 = vmatprep.subr.mxu0 0.0
    %2320 = vmatpush1.msra.mxu0 0.0
    %2321 = vmatprep.subr.mxu0 0.0
    %2322 = vmatpush1.msra.mxu0 0.0
    %2323 = vmatprep.subr.mxu0 0.0
    %2324 = vmatpush1.msra.mxu0 0.0
    %2325 = vmatprep.subr.mxu0 0.0
    %2326 = vmatpush1.msra.mxu0 0.0
    %2327 = vmatprep.subr.mxu0 0.0
    %2328 = vmatpush1.msra.mxu0 0.0
    %2329 = vmatprep.subr.mxu0 0.0
    %2330 = vmatpush1.msra.mxu0 0.0
    %2331 = vmatprep.subr.mxu0 0.0
    %2332 = vmatpush1.msra.mxu0 0.0
    %2333 = vmatprep.subr.mxu0 0.0
    %2334 = vmatpush1.msra.mxu0 0.0
    %2335 = vmatprep.subr.mxu0 0.0
    %2336 = vmatpush1.msra.mxu0 0.0
    %2337 = vmatprep.subr.mxu0 0.0
    %2338 = vmatpush1.msra.mxu0 0.0
    %2339 = vmatprep.subr.mxu0 0.0
    %2340 = vmatpush1.msra.mxu0 0.0
    %2341 = vmatprep.subr.mxu0 0.0
    %2342 = vmatpush1.msra.mxu0 0.0
    %2343 = vmatprep.subr.mxu0 0.0
    %2344 = vmatpush1.msra.mxu0 0.0
    %2345 = vmatprep.subr.mxu0 0.0
    %2346 = vmatpush1.msra.mxu0 0.0
    %2347 = vmatprep.subr.mxu0 0.0
    %2348 = vmatpush1.msra.mxu0 0.0
    %2349 = vmatprep.subr.mxu0 0.0
    %2350 = vmatpush1.msra.mxu0 0.0
    %2351 = vmatprep.subr.mxu0 0.0
    %2352 = vmatpush1.msra.mxu0 0.0
    %2353 = vmatprep.subr.mxu0 0.0
    %2354 = vmatpush1.msra.mxu0 0.0
    %2355 = vmatprep.subr.mxu0 0.0
    %2356 = vmatpush1.msra.mxu0 0.0
    %2357 = vmatprep.subr.mxu0 0.0
    %2358 = vmatpush1.msra.mxu0 0.0
    %2359 = vmatprep.mubr.f32.mxu0 0.0
    %2360 = vmatmul.mubr.f32.gmra.mrb[0].mxu0 %v2293
    %v2361 = vpop.f32.mrb[0].mxu0
    %v2362 = vadd.f32 0.0, %v2361
    %v2363 = vpop.f32.mrb[0].mxu0
    %2364 = vdwg.mxu0
    %v2365 = vadd.f32 %v404, %v2362
    %2366 = vmatprep.subr.mxu0 0.0
    %2367 = vmatpush1.msra.mxu0 %v578
    %2368 = vmatprep.subr.mxu0 0.0
    %2369 = vmatpush1.msra.mxu0 %v579
    %2370 = vmatprep.subr.mxu0 0.0
    %2371 = vmatpush1.msra.mxu0 %v580
    %2372 = vmatprep.subr.mxu0 0.0
    %2373 = vmatpush1.msra.mxu0 %v581
    %2374 = vmatprep.subr.mxu0 0.0
    %2375 = vmatpush1.msra.mxu0 0.0
    %2376 = vmatprep.subr.mxu0 0.0
    %2377 = vmatpush1.msra.mxu0 0.0
    %2378 = vmatprep.subr.mxu0 0.0
    %2379 = vmatpush1.msra.mxu0 0.0
    %2380 = vmatprep.subr.mxu0 0.0
    %2381 = vmatpush1.msra.mxu0 0.0
    %2382 = vmatprep.subr.mxu0 0.0
    %2383 = vmatpush1.msra.mxu0 0.0
    %2384 = vmatprep.subr.mxu0 0.0
    %2385 = vmatpush1.msra.mxu0 0.0
    %2386 = vmatprep.subr.mxu0 0.0
    %2387 = vmatpush1.msra.mxu0 0.0
    %2388 = vmatprep.subr.mxu0 0.0
    %2389 = vmatpush1.msra.mxu0 0.0
    %2390 = vmatprep.subr.mxu0 0.0
    %2391 = vmatpush1.msra.mxu0 0.0
    %2392 = vmatprep.subr.mxu0 0.0
    %2393 = vmatpush1.msra.mxu0 0.0
    %2394 = vmatprep.subr.mxu0 0.0
    %2395 = vmatpush1.msra.mxu0 0.0
    %2396 = vmatprep.subr.mxu0 0.0
    %2397 = vmatpush1.msra.mxu0 0.0
    %2398 = vmatprep.subr.mxu0 0.0
    %2399 = vmatpush1.msra.mxu0 0.0
    %2400 = vmatprep.subr.mxu0 0.0
    %2401 = vmatpush1.msra.mxu0 0.0
    %2402 = vmatprep.subr.mxu0 0.0
    %2403 = vmatpush1.msra.mxu0 0.0
    %2404 = vmatprep.subr.mxu0 0.0
    %2405 = vmatpush1.msra.mxu0 0.0
    %2406 = vmatprep.subr.mxu0 0.0
    %2407 = vmatpush1.msra.mxu0 0.0
    %2408 = vmatprep.subr.mxu0 0.0
    %2409 = vmatpush1.msra.mxu0 0.0
    %2410 = vmatprep.subr.mxu0 0.0
    %2411 = vmatpush1.msra.mxu0 0.0
    %2412 = vmatprep.subr.mxu0 0.0
    %2413 = vmatpush1.msra.mxu0 0.0
    %2414 = vmatprep.subr.mxu0 0.0
    %2415 = vmatpush1.msra.mxu0 0.0
    %2416 = vmatprep.subr.mxu0 0.0
    %2417 = vmatpush1.msra.mxu0 0.0
    %2418 = vmatprep.subr.mxu0 0.0
    %2419 = vmatpush1.msra.mxu0 0.0
    %2420 = vmatprep.subr.mxu0 0.0
    %2421 = vmatpush1.msra.mxu0 0.0
    %2422 = vmatprep.subr.mxu0 0.0
    %2423 = vmatpush1.msra.mxu0 0.0
    %2424 = vmatprep.subr.mxu0 0.0
    %2425 = vmatpush1.msra.mxu0 0.0
    %2426 = vmatprep.subr.mxu0 0.0
    %2427 = vmatpush1.msra.mxu0 0.0
    %2428 = vmatprep.subr.mxu0 0.0
    %2429 = vmatpush1.msra.mxu0 0.0
    %2430 = vmatprep.mubr.f32.mxu0 0.0
    %2431 = vmatmul.mubr.f32.gmra.mrb[0].mxu0 %v2293
    %v2432 = vpop.f32.mrb[0].mxu0
    %v2433 = vadd.f32 0.0, %v2432
    %v2434 = vpop.f32.mrb[0].mxu0
    %2435 = vdwg.mxu0
    %v2436 = vadd.f32 %v478, %v2433
    %2437 = vmatprep.subr.mxu0 0.0
    %2438 = vmatpush1.msra.mxu0 %v583
    %2439 = vmatprep.subr.mxu0 0.0
    %2440 = vmatpush1.msra.mxu0 %v584
    %2441 = vmatprep.subr.mxu0 0.0
    %2442 = vmatpush1.msra.mxu0 %v585
    %2443 = vmatprep.subr.mxu0 0.0
    %2444 = vmatpush1.msra.mxu0 %v586
    %2445 = vmatprep.subr.mxu0 0.0
    %2446 = vmatpush1.msra.mxu0 0.0
    %2447 = vmatprep.subr.mxu0 0.0
    %2448 = vmatpush1.msra.mxu0 0.0
    %2449 = vmatprep.subr.mxu0 0.0
    %2450 = vmatpush1.msra.mxu0 0.0
    %2451 = vmatprep.subr.mxu0 0.0
    %2452 = vmatpush1.msra.mxu0 0.0
    %2453 = vmatprep.subr.mxu0 0.0
    %2454 = vmatpush1.msra.mxu0 0.0
    %2455 = vmatprep.subr.mxu0 0.0
    %2456 = vmatpush1.msra.mxu0 0.0
    %2457 = vmatprep.subr.mxu0 0.0
    %2458 = vmatpush1.msra.mxu0 0.0
    %2459 = vmatprep.subr.mxu0 0.0
    %2460 = vmatpush1.msra.mxu0 0.0
    %2461 = vmatprep.subr.mxu0 0.0
    %2462 = vmatpush1.msra.mxu0 0.0
    %2463 = vmatprep.subr.mxu0 0.0
    %2464 = vmatpush1.msra.mxu0 0.0
    %2465 = vmatprep.subr.mxu0 0.0
    %2466 = vmatpush1.msra.mxu0 0.0
    %2467 = vmatprep.subr.mxu0 0.0
    %2468 = vmatpush1.msra.mxu0 0.0
    %2469 = vmatprep.subr.mxu0 0.0
    %2470 = vmatpush1.msra.mxu0 0.0
    %2471 = vmatprep.subr.mxu0 0.0
    %2472 = vmatpush1.msra.mxu0 0.0
    %2473 = vmatprep.subr.mxu0 0.0
    %2474 = vmatpush1.msra.mxu0 0.0
    %2475 = vmatprep.subr.mxu0 0.0
    %2476 = vmatpush1.msra.mxu0 0.0
    %2477 = vmatprep.subr.mxu0 0.0
    %2478 = vmatpush1.msra.mxu0 0.0
    %2479 = vmatprep.subr.mxu0 0.0
    %2480 = vmatpush1.msra.mxu0 0.0
    %2481 = vmatprep.subr.mxu0 0.0
    %2482 = vmatpush1.msra.mxu0 0.0
    %2483 = vmatprep.subr.mxu0 0.0
    %2484 = vmatpush1.msra.mxu0 0.0
    %2485 = vmatprep.subr.mxu0 0.0
    %2486 = vmatpush1.msra.mxu0 0.0
    %2487 = vmatprep.subr.mxu0 0.0
    %2488 = vmatpush1.msra.mxu0 0.0
    %2489 = vmatprep.subr.mxu0 0.0
    %2490 = vmatpush1.msra.mxu0 0.0
    %2491 = vmatprep.subr.mxu0 0.0
    %2492 = vmatpush1.msra.mxu0 0.0
    %2493 = vmatprep.subr.mxu0 0.0
    %2494 = vmatpush1.msra.mxu0 0.0
    %2495 = vmatprep.subr.mxu0 0.0
    %2496 = vmatpush1.msra.mxu0 0.0
    %2497 = vmatprep.subr.mxu0 0.0
    %2498 = vmatpush1.msra.mxu0 0.0
    %2499 = vmatprep.subr.mxu0 0.0
    %2500 = vmatpush1.msra.mxu0 0.0
    %2501 = vmatprep.mubr.f32.mxu0 0.0
    %2502 = vmatmul.mubr.f32.gmra.mrb[0].mxu0 %v2293
    %v2503 = vpop.f32.mrb[0].mxu0
    %v2504 = vadd.f32 %v600, %v2503
    %v2505 = vpop.f32.mrb[0].mxu0
    %2506 = vdwg.mxu0
    %v2507 = vxor.u32 %v2365, 2147483648
    %v2508 = vmul.f32 %v2507, 1.442695
    %v2509 = vpow.pop %v2508
    %v2510 = vadd.f32 %v2509, 1.0
    %v2511 = vrcp.pop %v2510
    %v2512 = vmul.f32 1.0, %v2511
    %v2513 = vxor.u32 %v2436, 2147483648
    %v2514 = vmul.f32 %v2513, 1.442695
    %v2515 = vpow.pop %v2514
    %v2516 = vadd.f32 %v2515, 1.0
    %v2517 = vrcp.pop %v2516
    %v2518 = vmul.f32 1.0, %v2517
    %v2519 = vmul.f32 %v2512, %v2504
    %v2520 = vadd.f32 %v552, %v2519
    %v2521 = vtanh.pop %v2520
    %v2522 = vsub.f32 1.0, %v2518
    %v2523 = vmul.f32 %v2522, %v2521
    %v2525 = vmul.f32 %v2518, %v2292
    %v2526 = vadd.f32 %v2523, %v2525
    %v2528 = vrot.slane %v2290, 4
    %v2529 = vsel %vm132, %v2528, 0
    %2531 = vmatprep.subr.mxu0 0.0
    %2532 = vmatpush1.msra.mxu0 %v558
    %2533 = vmatprep.subr.mxu0 0.0
    %2534 = vmatpush1.msra.mxu0 %v559
    %2535 = vmatprep.subr.mxu0 0.0
    %2536 = vmatpush1.msra.mxu0 %v560
    %2537 = vmatprep.subr.mxu0 0.0
    %2538 = vmatpush1.msra.mxu0 %v561
    %2539 = vmatprep.subr.mxu0 0.0
    %2540 = vmatpush1.msra.mxu0 0.0
    %2541 = vmatprep.subr.mxu0 0.0
    %2542 = vmatpush1.msra.mxu0 0.0
    %2543 = vmatprep.subr.mxu0 0.0
    %2544 = vmatpush1.msra.mxu0 0.0
    %2545 = vmatprep.subr.mxu0 0.0
    %2546 = vmatpush1.msra.mxu0 0.0
    %2547 = vmatprep.subr.mxu0 0.0
    %2548 = vmatpush1.msra.mxu0 0.0
    %2549 = vmatprep.subr.mxu0 0.0
    %2550 = vmatpush1.msra.mxu0 0.0
    %2551 = vmatprep.subr.mxu0 0.0
    %2552 = vmatpush1.msra.mxu0 0.0
    %2553 = vmatprep.subr.mxu0 0.0
    %2554 = vmatpush1.msra.mxu0 0.0
    %2555 = vmatprep.subr.mxu0 0.0
    %2556 = vmatpush1.msra.mxu0 0.0
    %2557 = vmatprep.subr.mxu0 0.0
    %2558 = vmatpush1.msra.mxu0 0.0
    %2559 = vmatprep.subr.mxu0 0.0
    %2560 = vmatpush1.msra.mxu0 0.0
    %2561 = vmatprep.subr.mxu0 0.0
    %2562 = vmatpush1.msra.mxu0 0.0
    %2563 = vmatprep.subr.mxu0 0.0
    %2564 = vmatpush1.msra.mxu0 0.0
    %2565 = vmatprep.subr.mxu0 0.0
    %2566 = vmatpush1.msra.mxu0 0.0
    %2567 = vmatprep.subr.mxu0 0.0
    %2568 = vmatpush1.msra.mxu0 0.0
    %2569 = vmatprep.subr.mxu0 0.0
    %2570 = vmatpush1.msra.mxu0 0.0
    %2571 = vmatprep.subr.mxu0 0.0
    %2572 = vmatpush1.msra.mxu0 0.0
    %2573 = vmatprep.subr.mxu0 0.0
    %2574 = vmatpush1.msra.mxu0 0.0
    %2575 = vmatprep.subr.mxu0 0.0
    %2576 = vmatpush1.msra.mxu0 0.0
    %2577 = vmatprep.subr.mxu0 0.0
    %2578 = vmatpush1.msra.mxu0 0.0
    %2579 = vmatprep.subr.mxu0 0.0
    %2580 = vmatpush1.msra.mxu0 0.0
    %2581 = vmatprep.subr.mxu0 0.0
    %2582 = vmatpush1.msra.mxu0 0.0
    %2583 = vmatprep.subr.mxu0 0.0
    %2584 = vmatpush1.msra.mxu0 0.0
    %2585 = vmatprep.subr.mxu0 0.0
    %2586 = vmatpush1.msra.mxu0 0.0
    %2587 = vmatprep.subr.mxu0 0.0
    %2588 = vmatpush1.msra.mxu0 0.0
    %2589 = vmatprep.subr.mxu0 0.0
    %2590 = vmatpush1.msra.mxu0 0.0
    %2591 = vmatprep.subr.mxu0 0.0
    %2592 = vmatpush1.msra.mxu0 0.0
    %2593 = vmatprep.subr.mxu0 0.0
    %2594 = vmatpush1.msra.mxu0 0.0
    %2595 = vmatprep.mubr.f32.mxu0 0.0
    %2596 = vmatmul.mubr.f32.gmra.mrb[0].mxu0 %v2529
    %v2597 = vpop.f32.mrb[0].mxu0
    %v2598 = vadd.f32 0.0, %v2597
    %v2599 = vpop.f32.mrb[0].mxu0
    %2600 = vdwg.mxu0
    %v2601 = vadd.f32 %v182, %v2598
    %2602 = vmatprep.subr.mxu0 0.0
    %2603 = vmatpush1.msra.mxu0 %v563
    %2604 = vmatprep.subr.mxu0 0.0
    %2605 = vmatpush1.msra.mxu0 %v564
    %2606 = vmatprep.subr.mxu0 0.0
    %2607 = vmatpush1.msra.mxu0 %v565
    %2608 = vmatprep.subr.mxu0 0.0
    %2609 = vmatpush1.msra.mxu0 %v566
    %2610 = vmatprep.subr.mxu0 0.0
    %2611 = vmatpush1.msra.mxu0 0.0
    %2612 = vmatprep.subr.mxu0 0.0
    %2613 = vmatpush1.msra.mxu0 0.0
    %2614 = vmatprep.subr.mxu0 0.0
    %2615 = vmatpush1.msra.mxu0 0.0
    %2616 = vmatprep.subr.mxu0 0.0
    %2617 = vmatpush1.msra.mxu0 0.0
    %2618 = vmatprep.subr.mxu0 0.0
    %2619 = vmatpush1.msra.mxu0 0.0
    %2620 = vmatprep.subr.mxu0 0.0
    %2621 = vmatpush1.msra.mxu0 0.0
    %2622 = vmatprep.subr.mxu0 0.0
    %2623 = vmatpush1.msra.mxu0 0.0
    %2624 = vmatprep.subr.mxu0 0.0
    %2625 = vmatpush1.msra.mxu0 0.0
    %2626 = vmatprep.subr.mxu0 0.0
    %2627 = vmatpush1.msra.mxu0 0.0
    %2628 = vmatprep.subr.mxu0 0.0
    %2629 = vmatpush1.msra.mxu0 0.0
    %2630 = vmatprep.subr.mxu0 0.0
    %2631 = vmatpush1.msra.mxu0 0.0
    %2632 = vmatprep.subr.mxu0 0.0
    %2633 = vmatpush1.msra.mxu0 0.0
    %2634 = vmatprep.subr.mxu0 0.0
    %2635 = vmatpush1.msra.mxu0 0.0
    %2636 = vmatprep.subr.mxu0 0.0
    %2637 = vmatpush1.msra.mxu0 0.0
    %2638 = vmatprep.subr.mxu0 0.0
    %2639 = vmatpush1.msra.mxu0 0.0
    %2640 = vmatprep.subr.mxu0 0.0
    %2641 = vmatpush1.msra.mxu0 0.0
    %2642 = vmatprep.subr.mxu0 0.0
    %2643 = vmatpush1.msra.mxu0 0.0
    %2644 = vmatprep.subr.mxu0 0.0
    %2645 = vmatpush1.msra.mxu0 0.0
    %2646 = vmatprep.subr.mxu0 0.0
    %2647 = vmatpush1.msra.mxu0 0.0
    %2648 = vmatprep.subr.mxu0 0.0
    %2649 = vmatpush1.msra.mxu0 0.0
    %2650 = vmatprep.subr.mxu0 0.0
    %2651 = vmatpush1.msra.mxu0 0.0
    %2652 = vmatprep.subr.mxu0 0.0
    %2653 = vmatpush1.msra.mxu0 0.0
    %2654 = vmatprep.subr.mxu0 0.0
    %2655 = vmatpush1.msra.mxu0 0.0
    %2656 = vmatprep.subr.mxu0 0.0
    %2657 = vmatpush1.msra.mxu0 0.0
    %2658 = vmatprep.subr.mxu0 0.0
    %2659 = vmatpush1.msra.mxu0 0.0
    %2660 = vmatprep.subr.mxu0 0.0
    %2661 = vmatpush1.msra.mxu0 0.0
    %2662 = vmatprep.subr.mxu0 0.0
    %2663 = vmatpush1.msra.mxu0 0.0
    %2664 = vmatprep.subr.mxu0 0.0
    %2665 = vmatpush1.msra.mxu0 0.0
    %2666 = vmatprep.mubr.f32.mxu0 0.0
    %2667 = vmatmul.mubr.f32.gmra.mrb[0].mxu0 %v2529
    %v2668 = vpop.f32.mrb[0].mxu0
    %v2669 = vadd.f32 0.0, %v2668
    %v2670 = vpop.f32.mrb[0].mxu0
    %2671 = vdwg.mxu0
    %v2672 = vadd.f32 %v256, %v2669
    %2673 = vmatprep.subr.mxu0 0.0
    %2674 = vmatpush1.msra.mxu0 %v568
    %2675 = vmatprep.subr.mxu0 0.0
    %2676 = vmatpush1.msra.mxu0 %v569
    %2677 = vmatprep.subr.mxu0 0.0
    %2678 = vmatpush1.msra.mxu0 %v570
    %2679 = vmatprep.subr.mxu0 0.0
    %2680 = vmatpush1.msra.mxu0 %v571
    %2681 = vmatprep.subr.mxu0 0.0
    %2682 = vmatpush1.msra.mxu0 0.0
    %2683 = vmatprep.subr.mxu0 0.0
    %2684 = vmatpush1.msra.mxu0 0.0
    %2685 = vmatprep.subr.mxu0 0.0
    %2686 = vmatpush1.msra.mxu0 0.0
    %2687 = vmatprep.subr.mxu0 0.0
    %2688 = vmatpush1.msra.mxu0 0.0
    %2689 = vmatprep.subr.mxu0 0.0
    %2690 = vmatpush1.msra.mxu0 0.0
    %2691 = vmatprep.subr.mxu0 0.0
    %2692 = vmatpush1.msra.mxu0 0.0
    %2693 = vmatprep.subr.mxu0 0.0
    %2694 = vmatpush1.msra.mxu0 0.0
    %2695 = vmatprep.subr.mxu0 0.0
    %2696 = vmatpush1.msra.mxu0 0.0
    %2697 = vmatprep.subr.mxu0 0.0
    %2698 = vmatpush1.msra.mxu0 0.0
    %2699 = vmatprep.subr.mxu0 0.0
    %2700 = vmatpush1.msra.mxu0 0.0
    %2701 = vmatprep.subr.mxu0 0.0
    %2702 = vmatpush1.msra.mxu0 0.0
    %2703 = vmatprep.subr.mxu0 0.0
    %2704 = vmatpush1.msra.mxu0 0.0
    %2705 = vmatprep.subr.mxu0 0.0
    %2706 = vmatpush1.msra.mxu0 0.0
    %2707 = vmatprep.subr.mxu0 0.0
    %2708 = vmatpush1.msra.mxu0 0.0
    %2709 = vmatprep.subr.mxu0 0.0
    %2710 = vmatpush1.msra.mxu0 0.0
    %2711 = vmatprep.subr.mxu0 0.0
    %2712 = vmatpush1.msra.mxu0 0.0
    %2713 = vmatprep.subr.mxu0 0.0
    %2714 = vmatpush1.msra.mxu0 0.0
    %2715 = vmatprep.subr.mxu0 0.0
    %2716 = vmatpush1.msra.mxu0 0.0
    %2717 = vmatprep.subr.mxu0 0.0
    %2718 = vmatpush1.msra.mxu0 0.0
    %2719 = vmatprep.subr.mxu0 0.0
    %2720 = vmatpush1.msra.mxu0 0.0
    %2721 = vmatprep.subr.mxu0 0.0
    %2722 = vmatpush1.msra.mxu0 0.0
    %2723 = vmatprep.subr.mxu0 0.0
    %2724 = vmatpush1.msra.mxu0 0.0
    %2725 = vmatprep.subr.mxu0 0.0
    %2726 = vmatpush1.msra.mxu0 0.0
    %2727 = vmatprep.subr.mxu0 0.0
    %2728 = vmatpush1.msra.mxu0 0.0
    %2729 = vmatprep.subr.mxu0 0.0
    %2730 = vmatpush1.msra.mxu0 0.0
    %2731 = vmatprep.subr.mxu0 0.0
    %2732 = vmatpush1.msra.mxu0 0.0
    %2733 = vmatprep.subr.mxu0 0.0
    %2734 = vmatpush1.msra.mxu0 0.0
    %2735 = vmatprep.subr.mxu0 0.0
    %2736 = vmatpush1.msra.mxu0 0.0
    %2737 = vmatprep.mubr.f32.mxu0 0.0
    %2738 = vmatmul.mubr.f32.gmra.mrb[0].mxu0 %v2529
    %v2739 = vpop.f32.mrb[0].mxu0
    %v2740 = vadd.f32 %v592, %v2739
    %v2741 = vpop.f32.mrb[0].mxu0
    %2742 = vdwg.mxu0
    %v2743 = vxor.u32 %v2601, 2147483648
    %v2744 = vmul.f32 %v2743, 1.442695
    %v2745 = vpow.pop %v2744
    %v2746 = vadd.f32 %v2745, 1.0
    %v2747 = vrcp.pop %v2746
    %v2748 = vmul.f32 1.0, %v2747
    %v2749 = vxor.u32 %v2672, 2147483648
    %v2750 = vmul.f32 %v2749, 1.442695
    %v2751 = vpow.pop %v2750
    %v2752 = vadd.f32 %v2751, 1.0
    %v2753 = vrcp.pop %v2752
    %v2754 = vmul.f32 1.0, %v2753
    %v2755 = vmul.f32 %v2748, %v2740
    %v2756 = vadd.f32 %v330, %v2755
    %v2757 = vtanh.pop %v2756
    %v2758 = vsub.f32 1.0, %v2754
    %v2759 = vmul.f32 %v2758, %v2757
    %v2761 = vmul.f32 %v2754, %v2528
    %v2762 = vadd.f32 %v2759, %v2761
    %v2764 = vsel %vm132, %v2526, 0
    %2766 = vmatprep.subr.mxu0 0.0
    %2767 = vmatpush1.msra.mxu0 %v573
    %2768 = vmatprep.subr.mxu0 0.0
    %2769 = vmatpush1.msra.mxu0 %v574
    %2770 = vmatprep.subr.mxu0 0.0
    %2771 = vmatpush1.msra.mxu0 %v575
    %2772 = vmatprep.subr.mxu0 0.0
    %2773 = vmatpush1.msra.mxu0 %v576
    %2774 = vmatprep.subr.mxu0 0.0
    %2775 = vmatpush1.msra.mxu0 0.0
    %2776 = vmatprep.subr.mxu0 0.0
    %2777 = vmatpush1.msra.mxu0 0.0
    %2778 = vmatprep.subr.mxu0 0.0
    %2779 = vmatpush1.msra.mxu0 0.0
    %2780 = vmatprep.subr.mxu0 0.0
    %2781 = vmatpush1.msra.mxu0 0.0
    %2782 = vmatprep.subr.mxu0 0.0
    %2783 = vmatpush1.msra.mxu0 0.0
    %2784 = vmatprep.subr.mxu0 0.0
    %2785 = vmatpush1.msra.mxu0 0.0
    %2786 = vmatprep.subr.mxu0 0.0
    %2787 = vmatpush1.msra.mxu0 0.0
    %2788 = vmatprep.subr.mxu0 0.0
    %2789 = vmatpush1.msra.mxu0 0.0
    %2790 = vmatprep.subr.mxu0 0.0
    %2791 = vmatpush1.msra.mxu0 0.0
    %2792 = vmatprep.subr.mxu0 0.0
    %2793 = vmatpush1.msra.mxu0 0.0
    %2794 = vmatprep.subr.mxu0 0.0
    %2795 = vmatpush1.msra.mxu0 0.0
    %2796 = vmatprep.subr.mxu0 0.0
    %2797 = vmatpush1.msra.mxu0 0.0
    %2798 = vmatprep.subr.mxu0 0.0
    %2799 = vmatpush1.msra.mxu0 0.0
    %2800 = vmatprep.subr.mxu0 0.0
    %2801 = vmatpush1.msra.mxu0 0.0
    %2802 = vmatprep.subr.mxu0 0.0
    %2803 = vmatpush1.msra.mxu0 0.0
    %2804 = vmatprep.subr.mxu0 0.0
    %2805 = vmatpush1.msra.mxu0 0.0
    %2806 = vmatprep.subr.mxu0 0.0
    %2807 = vmatpush1.msra.mxu0 0.0
    %2808 = vmatprep.subr.mxu0 0.0
    %2809 = vmatpush1.msra.mxu0 0.0
    %2810 = vmatprep.subr.mxu0 0.0
    %2811 = vmatpush1.msra.mxu0 0.0
    %2812 = vmatprep.subr.mxu0 0.0
    %2813 = vmatpush1.msra.mxu0 0.0
    %2814 = vmatprep.subr.mxu0 0.0
    %2815 = vmatpush1.msra.mxu0 0.0
    %2816 = vmatprep.subr.mxu0 0.0
    %2817 = vmatpush1.msra.mxu0 0.0
    %2818 = vmatprep.subr.mxu0 0.0
    %2819 = vmatpush1.msra.mxu0 0.0
    %2820 = vmatprep.subr.mxu0 0.0
    %2821 = vmatpush1.msra.mxu0 0.0
    %2822 = vmatprep.subr.mxu0 0.0
    %2823 = vmatpush1.msra.mxu0 0.0
    %2824 = vmatprep.subr.mxu0 0.0
    %2825 = vmatpush1.msra.mxu0 0.0
    %2826 = vmatprep.subr.mxu0 0.0
    %2827 = vmatpush1.msra.mxu0 0.0
    %2828 = vmatprep.subr.mxu0 0.0
    %2829 = vmatpush1.msra.mxu0 0.0
    %2830 = vmatprep.mubr.f32.mxu0 0.0
    %2831 = vmatmul.mubr.f32.gmra.mrb[0].mxu0 %v2764
    %v2832 = vpop.f32.mrb[0].mxu0
    %v2833 = vadd.f32 0.0, %v2832
    %v2834 = vpop.f32.mrb[0].mxu0
    %2835 = vdwg.mxu0
    %v2837 = vrot.slane %v2833, 4
    %v2839 = vadd.f32 %v399, %v2837
    %2840 = vmatprep.subr.mxu0 0.0
    %2841 = vmatpush1.msra.mxu0 %v578
    %2842 = vmatprep.subr.mxu0 0.0
    %2843 = vmatpush1.msra.mxu0 %v579
    %2844 = vmatprep.subr.mxu0 0.0
    %2845 = vmatpush1.msra.mxu0 %v580
    %2846 = vmatprep.subr.mxu0 0.0
    %2847 = vmatpush1.msra.mxu0 %v581
    %2848 = vmatprep.subr.mxu0 0.0
    %2849 = vmatpush1.msra.mxu0 0.0
    %2850 = vmatprep.subr.mxu0 0.0
    %2851 = vmatpush1.msra.mxu0 0.0
    %2852 = vmatprep.subr.mxu0 0.0
    %2853 = vmatpush1.msra.mxu0 0.0
    %2854 = vmatprep.subr.mxu0 0.0
    %2855 = vmatpush1.msra.mxu0 0.0
    %2856 = vmatprep.subr.mxu0 0.0
    %2857 = vmatpush1.msra.mxu0 0.0
    %2858 = vmatprep.subr.mxu0 0.0
    %2859 = vmatpush1.msra.mxu0 0.0
    %2860 = vmatprep.subr.mxu0 0.0
    %2861 = vmatpush1.msra.mxu0 0.0
    %2862 = vmatprep.subr.mxu0 0.0
    %2863 = vmatpush1.msra.mxu0 0.0
    %2864 = vmatprep.subr.mxu0 0.0
    %2865 = vmatpush1.msra.mxu0 0.0
    %2866 = vmatprep.subr.mxu0 0.0
    %2867 = vmatpush1.msra.mxu0 0.0
    %2868 = vmatprep.subr.mxu0 0.0
    %2869 = vmatpush1.msra.mxu0 0.0
    %2870 = vmatprep.subr.mxu0 0.0
    %2871 = vmatpush1.msra.mxu0 0.0
    %2872 = vmatprep.subr.mxu0 0.0
    %2873 = vmatpush1.msra.mxu0 0.0
    %2874 = vmatprep.subr.mxu0 0.0
    %2875 = vmatpush1.msra.mxu0 0.0
    %2876 = vmatprep.subr.mxu0 0.0
    %2877 = vmatpush1.msra.mxu0 0.0
    %2878 = vmatprep.subr.mxu0 0.0
    %2879 = vmatpush1.msra.mxu0 0.0
    %2880 = vmatprep.subr.mxu0 0.0
    %2881 = vmatpush1.msra.mxu0 0.0
    %2882 = vmatprep.subr.mxu0 0.0
    %2883 = vmatpush1.msra.mxu0 0.0
    %2884 = vmatprep.subr.mxu0 0.0
    %2885 = vmatpush1.msra.mxu0 0.0
    %2886 = vmatprep.subr.mxu0 0.0
    %2887 = vmatpush1.msra.mxu0 0.0
    %2888 = vmatprep.subr.mxu0 0.0
    %2889 = vmatpush1.msra.mxu0 0.0
    %2890 = vmatprep.subr.mxu0 0.0
    %2891 = vmatpush1.msra.mxu0 0.0
    %2892 = vmatprep.subr.mxu0 0.0
    %2893 = vmatpush1.msra.mxu0 0.0
    %2894 = vmatprep.subr.mxu0 0.0
    %2895 = vmatpush1.msra.mxu0 0.0
    %2896 = vmatprep.subr.mxu0 0.0
    %2897 = vmatpush1.msra.mxu0 0.0
    %2898 = vmatprep.subr.mxu0 0.0
    %2899 = vmatpush1.msra.mxu0 0.0
    %2900 = vmatprep.subr.mxu0 0.0
    %2901 = vmatpush1.msra.mxu0 0.0
    %2902 = vmatprep.subr.mxu0 0.0
    %2903 = vmatpush1.msra.mxu0 0.0
    %2904 = vmatprep.mubr.f32.mxu0 0.0
    %2905 = vmatmul.mubr.f32.gmra.mrb[0].mxu0 %v2764
    %v2906 = vpop.f32.mrb[0].mxu0
    %v2907 = vadd.f32 0.0, %v2906
    %v2908 = vpop.f32.mrb[0].mxu0
    %2909 = vdwg.mxu0
    %v2911 = vrot.slane %v2907, 4
    %v2913 = vadd.f32 %v473, %v2911
    %2914 = vmatprep.subr.mxu0 0.0
    %2915 = vmatpush1.msra.mxu0 %v583
    %2916 = vmatprep.subr.mxu0 0.0
    %2917 = vmatpush1.msra.mxu0 %v584
    %2918 = vmatprep.subr.mxu0 0.0
    %2919 = vmatpush1.msra.mxu0 %v585
    %2920 = vmatprep.subr.mxu0 0.0
    %2921 = vmatpush1.msra.mxu0 %v586
    %2922 = vmatprep.subr.mxu0 0.0
    %2923 = vmatpush1.msra.mxu0 0.0
    %2924 = vmatprep.subr.mxu0 0.0
    %2925 = vmatpush1.msra.mxu0 0.0
    %2926 = vmatprep.subr.mxu0 0.0
    %2927 = vmatpush1.msra.mxu0 0.0
    %2928 = vmatprep.subr.mxu0 0.0
    %2929 = vmatpush1.msra.mxu0 0.0
    %2930 = vmatprep.subr.mxu0 0.0
    %2931 = vmatpush1.msra.mxu0 0.0
    %2932 = vmatprep.subr.mxu0 0.0
    %2933 = vmatpush1.msra.mxu0 0.0
    %2934 = vmatprep.subr.mxu0 0.0
    %2935 = vmatpush1.msra.mxu0 0.0
    %2936 = vmatprep.subr.mxu0 0.0
    %2937 = vmatpush1.msra.mxu0 0.0
    %2938 = vmatprep.subr.mxu0 0.0
    %2939 = vmatpush1.msra.mxu0 0.0
    %2940 = vmatprep.subr.mxu0 0.0
    %2941 = vmatpush1.msra.mxu0 0.0
    %2942 = vmatprep.subr.mxu0 0.0
    %2943 = vmatpush1.msra.mxu0 0.0
    %2944 = vmatprep.subr.mxu0 0.0
    %2945 = vmatpush1.msra.mxu0 0.0
    %2946 = vmatprep.subr.mxu0 0.0
    %2947 = vmatpush1.msra.mxu0 0.0
    %2948 = vmatprep.subr.mxu0 0.0
    %2949 = vmatpush1.msra.mxu0 0.0
    %2950 = vmatprep.subr.mxu0 0.0
    %2951 = vmatpush1.msra.mxu0 0.0
    %2952 = vmatprep.subr.mxu0 0.0
    %2953 = vmatpush1.msra.mxu0 0.0
    %2954 = vmatprep.subr.mxu0 0.0
    %2955 = vmatpush1.msra.mxu0 0.0
    %2956 = vmatprep.subr.mxu0 0.0
    %2957 = vmatpush1.msra.mxu0 0.0
    %2958 = vmatprep.subr.mxu0 0.0
    %2959 = vmatpush1.msra.mxu0 0.0
    %2960 = vmatprep.subr.mxu0 0.0
    %2961 = vmatpush1.msra.mxu0 0.0
    %2962 = vmatprep.subr.mxu0 0.0
    %2963 = vmatpush1.msra.mxu0 0.0
    %2964 = vmatprep.subr.mxu0 0.0
    %2965 = vmatpush1.msra.mxu0 0.0
    %2966 = vmatprep.subr.mxu0 0.0
    %2967 = vmatpush1.msra.mxu0 0.0
    %2968 = vmatprep.subr.mxu0 0.0
    %2969 = vmatpush1.msra.mxu0 0.0
    %2970 = vmatprep.subr.mxu0 0.0
    %2971 = vmatpush1.msra.mxu0 0.0
    %2972 = vmatprep.subr.mxu0 0.0
    %2973 = vmatpush1.msra.mxu0 0.0
    %2974 = vmatprep.subr.mxu0 0.0
    %2975 = vmatpush1.msra.mxu0 0.0
    %2976 = vmatprep.subr.mxu0 0.0
    %2977 = vmatpush1.msra.mxu0 0.0
    %2978 = vmatprep.mubr.f32.mxu0 0.0
    %2979 = vmatmul.mubr.f32.gmra.mrb[0].mxu0 %v2764
    %v2980 = vpop.f32.mrb[0].mxu0
    %v2981 = vadd.f32 %v600, %v2980
    %v2982 = vpop.f32.mrb[0].mxu0
    %2983 = vdwg.mxu0
    %v2984 = vxor.u32 %v2839, 2147483648
    %v2985 = vmul.f32 %v2984, 1.442695
    %v2986 = vpow.pop %v2985
    %v2987 = vadd.f32 %v2986, 1.0
    %v2988 = vrcp.pop %v2987
    %v2989 = vmul.f32 1.0, %v2988
    %v2990 = vxor.u32 %v2913, 2147483648
    %v2991 = vmul.f32 %v2990, 1.442695
    %v2992 = vpow.pop %v2991
    %v2993 = vadd.f32 %v2992, 1.0
    %v2994 = vrcp.pop %v2993
    %v2995 = vmul.f32 1.0, %v2994
    %v2997 = vrot.slane %v2981, 4
    %v2999 = vmul.f32 %v2989, %v2997
    %v3000 = vadd.f32 %v547, %v2999
    %v3001 = vtanh.pop %v3000
    %v3002 = vsub.f32 1.0, %v2995
    %v3003 = vmul.f32 %v3002, %v3001
    %v3004 = vrot.slane %v2526, 4
    %v3006 = vmul.f32 %v2995, %v3004
    %v3007 = vadd.f32 %v3003, %v3006
    %v3009 = vsel %vm132, %v2762, 0
    %3011 = vmatprep.subr.mxu0 0.0
    %3012 = vmatpush1.msra.mxu0 %v558
    %3013 = vmatprep.subr.mxu0 0.0
    %3014 = vmatpush1.msra.mxu0 %v559
    %3015 = vmatprep.subr.mxu0 0.0
    %3016 = vmatpush1.msra.mxu0 %v560
    %3017 = vmatprep.subr.mxu0 0.0
    %3018 = vmatpush1.msra.mxu0 %v561
    %3019 = vmatprep.subr.mxu0 0.0
    %3020 = vmatpush1.msra.mxu0 0.0
    %3021 = vmatprep.subr.mxu0 0.0
    %3022 = vmatpush1.msra.mxu0 0.0
    %3023 = vmatprep.subr.mxu0 0.0
    %3024 = vmatpush1.msra.mxu0 0.0
    %3025 = vmatprep.subr.mxu0 0.0
    %3026 = vmatpush1.msra.mxu0 0.0
    %3027 = vmatprep.subr.mxu0 0.0
    %3028 = vmatpush1.msra.mxu0 0.0
    %3029 = vmatprep.subr.mxu0 0.0
    %3030 = vmatpush1.msra.mxu0 0.0
    %3031 = vmatprep.subr.mxu0 0.0
    %3032 = vmatpush1.msra.mxu0 0.0
    %3033 = vmatprep.subr.mxu0 0.0
    %3034 = vmatpush1.msra.mxu0 0.0
    %3035 = vmatprep.subr.mxu0 0.0
    %3036 = vmatpush1.msra.mxu0 0.0
    %3037 = vmatprep.subr.mxu0 0.0
    %3038 = vmatpush1.msra.mxu0 0.0
    %3039 = vmatprep.subr.mxu0 0.0
    %3040 = vmatpush1.msra.mxu0 0.0
    %3041 = vmatprep.subr.mxu0 0.0
    %3042 = vmatpush1.msra.mxu0 0.0
    %3043 = vmatprep.subr.mxu0 0.0
    %3044 = vmatpush1.msra.mxu0 0.0
    %3045 = vmatprep.subr.mxu0 0.0
    %3046 = vmatpush1.msra.mxu0 0.0
    %3047 = vmatprep.subr.mxu0 0.0
    %3048 = vmatpush1.msra.mxu0 0.0
    %3049 = vmatprep.subr.mxu0 0.0
    %3050 = vmatpush1.msra.mxu0 0.0
    %3051 = vmatprep.subr.mxu0 0.0
    %3052 = vmatpush1.msra.mxu0 0.0
    %3053 = vmatprep.subr.mxu0 0.0
    %3054 = vmatpush1.msra.mxu0 0.0
    %3055 = vmatprep.subr.mxu0 0.0
    %3056 = vmatpush1.msra.mxu0 0.0
    %3057 = vmatprep.subr.mxu0 0.0
    %3058 = vmatpush1.msra.mxu0 0.0
    %3059 = vmatprep.subr.mxu0 0.0
    %3060 = vmatpush1.msra.mxu0 0.0
    %3061 = vmatprep.subr.mxu0 0.0
    %3062 = vmatpush1.msra.mxu0 0.0
    %3063 = vmatprep.subr.mxu0 0.0
    %3064 = vmatpush1.msra.mxu0 0.0
    %3065 = vmatprep.subr.mxu0 0.0
    %3066 = vmatpush1.msra.mxu0 0.0
    %3067 = vmatprep.subr.mxu0 0.0
    %3068 = vmatpush1.msra.mxu0 0.0
    %3069 = vmatprep.subr.mxu0 0.0
    %3070 = vmatpush1.msra.mxu0 0.0
    %3071 = vmatprep.subr.mxu0 0.0
    %3072 = vmatpush1.msra.mxu0 0.0
    %3073 = vmatprep.subr.mxu0 0.0
    %3074 = vmatpush1.msra.mxu0 0.0
    %3075 = vmatprep.mubr.f32.mxu0 0.0
    %3076 = vmatmul.mubr.f32.gmra.mrb[0].mxu0 %v3009
    %v3077 = vpop.f32.mrb[0].mxu0
    %v3078 = vadd.f32 0.0, %v3077
    %v3079 = vpop.f32.mrb[0].mxu0
    %3080 = vdwg.mxu0
    %v3082 = vrot.slane %v3078, 4
    %v3084 = vadd.f32 %v182, %v3082
    %3085 = vmatprep.subr.mxu0 0.0
    %3086 = vmatpush1.msra.mxu0 %v563
    %3087 = vmatprep.subr.mxu0 0.0
    %3088 = vmatpush1.msra.mxu0 %v564
    %3089 = vmatprep.subr.mxu0 0.0
    %3090 = vmatpush1.msra.mxu0 %v565
    %3091 = vmatprep.subr.mxu0 0.0
    %3092 = vmatpush1.msra.mxu0 %v566
    %3093 = vmatprep.subr.mxu0 0.0
    %3094 = vmatpush1.msra.mxu0 0.0
    %3095 = vmatprep.subr.mxu0 0.0
    %3096 = vmatpush1.msra.mxu0 0.0
    %3097 = vmatprep.subr.mxu0 0.0
    %3098 = vmatpush1.msra.mxu0 0.0
    %3099 = vmatprep.subr.mxu0 0.0
    %3100 = vmatpush1.msra.mxu0 0.0
    %3101 = vmatprep.subr.mxu0 0.0
    %3102 = vmatpush1.msra.mxu0 0.0
    %3103 = vmatprep.subr.mxu0 0.0
    %3104 = vmatpush1.msra.mxu0 0.0
    %3105 = vmatprep.subr.mxu0 0.0
    %3106 = vmatpush1.msra.mxu0 0.0
    %3107 = vmatprep.subr.mxu0 0.0
    %3108 = vmatpush1.msra.mxu0 0.0
    %3109 = vmatprep.subr.mxu0 0.0
    %3110 = vmatpush1.msra.mxu0 0.0
    %3111 = vmatprep.subr.mxu0 0.0
    %3112 = vmatpush1.msra.mxu0 0.0
    %3113 = vmatprep.subr.mxu0 0.0
    %3114 = vmatpush1.msra.mxu0 0.0
    %3115 = vmatprep.subr.mxu0 0.0
    %3116 = vmatpush1.msra.mxu0 0.0
    %3117 = vmatprep.subr.mxu0 0.0
    %3118 = vmatpush1.msra.mxu0 0.0
    %3119 = vmatprep.subr.mxu0 0.0
    %3120 = vmatpush1.msra.mxu0 0.0
    %3121 = vmatprep.subr.mxu0 0.0
    %3122 = vmatpush1.msra.mxu0 0.0
    %3123 = vmatprep.subr.mxu0 0.0
    %3124 = vmatpush1.msra.mxu0 0.0
    %3125 = vmatprep.subr.mxu0 0.0
    %3126 = vmatpush1.msra.mxu0 0.0
    %3127 = vmatprep.subr.mxu0 0.0
    %3128 = vmatpush1.msra.mxu0 0.0
    %3129 = vmatprep.subr.mxu0 0.0
    %3130 = vmatpush1.msra.mxu0 0.0
    %3131 = vmatprep.subr.mxu0 0.0
    %3132 = vmatpush1.msra.mxu0 0.0
    %3133 = vmatprep.subr.mxu0 0.0
    %3134 = vmatpush1.msra.mxu0 0.0
    %3135 = vmatprep.subr.mxu0 0.0
    %3136 = vmatpush1.msra.mxu0 0.0
    %3137 = vmatprep.subr.mxu0 0.0
    %3138 = vmatpush1.msra.mxu0 0.0
    %3139 = vmatprep.subr.mxu0 0.0
    %3140 = vmatpush1.msra.mxu0 0.0
    %3141 = vmatprep.subr.mxu0 0.0
    %3142 = vmatpush1.msra.mxu0 0.0
    %3143 = vmatprep.subr.mxu0 0.0
    %3144 = vmatpush1.msra.mxu0 0.0
    %3145 = vmatprep.subr.mxu0 0.0
    %3146 = vmatpush1.msra.mxu0 0.0
    %3147 = vmatprep.subr.mxu0 0.0
    %3148 = vmatpush1.msra.mxu0 0.0
    %3149 = vmatprep.mubr.f32.mxu0 0.0
    %3150 = vmatmul.mubr.f32.gmra.mrb[0].mxu0 %v3009
    %v3151 = vpop.f32.mrb[0].mxu0
    %v3152 = vadd.f32 0.0, %v3151
    %v3153 = vpop.f32.mrb[0].mxu0
    %3154 = vdwg.mxu0
    %v3156 = vrot.slane %v3152, 4
    %v3158 = vadd.f32 %v256, %v3156
    %3159 = vmatprep.subr.mxu0 0.0
    %3160 = vmatpush1.msra.mxu0 %v568
    %3161 = vmatprep.subr.mxu0 0.0
    %3162 = vmatpush1.msra.mxu0 %v569
    %3163 = vmatprep.subr.mxu0 0.0
    %3164 = vmatpush1.msra.mxu0 %v570
    %3165 = vmatprep.subr.mxu0 0.0
    %3166 = vmatpush1.msra.mxu0 %v571
    %3167 = vmatprep.subr.mxu0 0.0
    %3168 = vmatpush1.msra.mxu0 0.0
    %3169 = vmatprep.subr.mxu0 0.0
    %3170 = vmatpush1.msra.mxu0 0.0
    %3171 = vmatprep.subr.mxu0 0.0
    %3172 = vmatpush1.msra.mxu0 0.0
    %3173 = vmatprep.subr.mxu0 0.0
    %3174 = vmatpush1.msra.mxu0 0.0
    %3175 = vmatprep.subr.mxu0 0.0
    %3176 = vmatpush1.msra.mxu0 0.0
    %3177 = vmatprep.subr.mxu0 0.0
    %3178 = vmatpush1.msra.mxu0 0.0
    %3179 = vmatprep.subr.mxu0 0.0
    %3180 = vmatpush1.msra.mxu0 0.0
    %3181 = vmatprep.subr.mxu0 0.0
    %3182 = vmatpush1.msra.mxu0 0.0
    %3183 = vmatprep.subr.mxu0 0.0
    %3184 = vmatpush1.msra.mxu0 0.0
    %3185 = vmatprep.subr.mxu0 0.0
    %3186 = vmatpush1.msra.mxu0 0.0
    %3187 = vmatprep.subr.mxu0 0.0
    %3188 = vmatpush1.msra.mxu0 0.0
    %3189 = vmatprep.subr.mxu0 0.0
    %3190 = vmatpush1.msra.mxu0 0.0
    %3191 = vmatprep.subr.mxu0 0.0
    %3192 = vmatpush1.msra.mxu0 0.0
    %3193 = vmatprep.subr.mxu0 0.0
    %3194 = vmatpush1.msra.mxu0 0.0
    %3195 = vmatprep.subr.mxu0 0.0
    %3196 = vmatpush1.msra.mxu0 0.0
    %3197 = vmatprep.subr.mxu0 0.0
    %3198 = vmatpush1.msra.mxu0 0.0
    %3199 = vmatprep.subr.mxu0 0.0
    %3200 = vmatpush1.msra.mxu0 0.0
    %3201 = vmatprep.subr.mxu0 0.0
    %3202 = vmatpush1.msra.mxu0 0.0
    %3203 = vmatprep.subr.mxu0 0.0
    %3204 = vmatpush1.msra.mxu0 0.0
    %3205 = vmatprep.subr.mxu0 0.0
    %3206 = vmatpush1.msra.mxu0 0.0
    %3207 = vmatprep.subr.mxu0 0.0
    %3208 = vmatpush1.msra.mxu0 0.0
    %3209 = vmatprep.subr.mxu0 0.0
    %3210 = vmatpush1.msra.mxu0 0.0
    %3211 = vmatprep.subr.mxu0 0.0
    %3212 = vmatpush1.msra.mxu0 0.0
    %3213 = vmatprep.subr.mxu0 0.0
    %3214 = vmatpush1.msra.mxu0 0.0
    %3215 = vmatprep.subr.mxu0 0.0
    %3216 = vmatpush1.msra.mxu0 0.0
    %3217 = vmatprep.subr.mxu0 0.0
    %3218 = vmatpush1.msra.mxu0 0.0
    %3219 = vmatprep.subr.mxu0 0.0
    %3220 = vmatpush1.msra.mxu0 0.0
    %3221 = vmatprep.subr.mxu0 0.0
    %3222 = vmatpush1.msra.mxu0 0.0
    %3223 = vmatprep.mubr.f32.mxu0 0.0
    %3224 = vmatmul.mubr.f32.gmra.mrb[0].mxu0 %v3009
    %v3225 = vpop.f32.mrb[0].mxu0
    %v3226 = vadd.f32 %v592, %v3225
    %v3227 = vpop.f32.mrb[0].mxu0
    %3228 = vdwg.mxu0
    %v3229 = vxor.u32 %v3084, 2147483648
    %v3230 = vmul.f32 %v3229, 1.442695
    %v3231 = vpow.pop %v3230
    %v3232 = vadd.f32 %v3231, 1.0
    %v3233 = vrcp.pop %v3232
    %v3234 = vmul.f32 1.0, %v3233
    %v3235 = vxor.u32 %v3158, 2147483648
    %v3236 = vmul.f32 %v3235, 1.442695
    %v3237 = vpow.pop %v3236
    %v3238 = vadd.f32 %v3237, 1.0
    %v3239 = vrcp.pop %v3238
    %v3240 = vmul.f32 1.0, %v3239
    %v3242 = vrot.slane %v3226, 4
    %v3244 = vmul.f32 %v3234, %v3242
    %v3245 = vadd.f32 %v330, %v3244
    %v3246 = vtanh.pop %v3245
    %v3247 = vsub.f32 1.0, %v3240
    %v3248 = vmul.f32 %v3247, %v3246
    %v3249 = vrot.slane %v2762, 4
    %v3251 = vmul.f32 %v3240, %v3249
    %v3252 = vadd.f32 %v3248, %v3251
    %v3254 = vrot.slane %v3007, 4
    %v3255 = vsel %vm132, %v3254, 0
    %3257 = vmatprep.subr.mxu0 0.0
    %3258 = vmatpush1.msra.mxu0 %v573
    %3259 = vmatprep.subr.mxu0 0.0
    %3260 = vmatpush1.msra.mxu0 %v574
    %3261 = vmatprep.subr.mxu0 0.0
    %3262 = vmatpush1.msra.mxu0 %v575
    %3263 = vmatprep.subr.mxu0 0.0
    %3264 = vmatpush1.msra.mxu0 %v576
    %3265 = vmatprep.subr.mxu0 0.0
    %3266 = vmatpush1.msra.mxu0 0.0
    %3267 = vmatprep.subr.mxu0 0.0
    %3268 = vmatpush1.msra.mxu0 0.0
    %3269 = vmatprep.subr.mxu0 0.0
    %3270 = vmatpush1.msra.mxu0 0.0
    %3271 = vmatprep.subr.mxu0 0.0
    %3272 = vmatpush1.msra.mxu0 0.0
    %3273 = vmatprep.subr.mxu0 0.0
    %3274 = vmatpush1.msra.mxu0 0.0
    %3275 = vmatprep.subr.mxu0 0.0
    %3276 = vmatpush1.msra.mxu0 0.0
    %3277 = vmatprep.subr.mxu0 0.0
    %3278 = vmatpush1.msra.mxu0 0.0
    %3279 = vmatprep.subr.mxu0 0.0
    %3280 = vmatpush1.msra.mxu0 0.0
    %3281 = vmatprep.subr.mxu0 0.0
    %3282 = vmatpush1.msra.mxu0 0.0
    %3283 = vmatprep.subr.mxu0 0.0
    %3284 = vmatpush1.msra.mxu0 0.0
    %3285 = vmatprep.subr.mxu0 0.0
    %3286 = vmatpush1.msra.mxu0 0.0
    %3287 = vmatprep.subr.mxu0 0.0
    %3288 = vmatpush1.msra.mxu0 0.0
    %3289 = vmatprep.subr.mxu0 0.0
    %3290 = vmatpush1.msra.mxu0 0.0
    %3291 = vmatprep.subr.mxu0 0.0
    %3292 = vmatpush1.msra.mxu0 0.0
    %3293 = vmatprep.subr.mxu0 0.0
    %3294 = vmatpush1.msra.mxu0 0.0
    %3295 = vmatprep.subr.mxu0 0.0
    %3296 = vmatpush1.msra.mxu0 0.0
    %3297 = vmatprep.subr.mxu0 0.0
    %3298 = vmatpush1.msra.mxu0 0.0
    %3299 = vmatprep.subr.mxu0 0.0
    %3300 = vmatpush1.msra.mxu0 0.0
    %3301 = vmatprep.subr.mxu0 0.0
    %3302 = vmatpush1.msra.mxu0 0.0
    %3303 = vmatprep.subr.mxu0 0.0
    %3304 = vmatpush1.msra.mxu0 0.0
    %3305 = vmatprep.subr.mxu0 0.0
    %3306 = vmatpush1.msra.mxu0 0.0
    %3307 = vmatprep.subr.mxu0 0.0
    %3308 = vmatpush1.msra.mxu0 0.0
    %3309 = vmatprep.subr.mxu0 0.0
    %3310 = vmatpush1.msra.mxu0 0.0
    %3311 = vmatprep.subr.mxu0 0.0
    %3312 = vmatpush1.msra.mxu0 0.0
    %3313 = vmatprep.subr.mxu0 0.0
    %3314 = vmatpush1.msra.mxu0 0.0
    %3315 = vmatprep.subr.mxu0 0.0
    %3316 = vmatpush1.msra.mxu0 0.0
    %3317 = vmatprep.subr.mxu0 0.0
    %3318 = vmatpush1.msra.mxu0 0.0
    %3319 = vmatprep.subr.mxu0 0.0
    %3320 = vmatpush1.msra.mxu0 0.0
    %3321 = vmatprep.mubr.f32.mxu0 0.0
    %3322 = vmatmul.mubr.f32.gmra.mrb[0].mxu0 %v3255
    %v3323 = vpop.f32.mrb[0].mxu0
    %v3324 = vadd.f32 0.0, %v3323
    %v3325 = vpop.f32.mrb[0].mxu0
    %3326 = vdwg.mxu0
    %v3327 = vadd.f32 %v399, %v3324
    %3328 = vmatprep.subr.mxu0 0.0
    %3329 = vmatpush1.msra.mxu0 %v578
    %3330 = vmatprep.subr.mxu0 0.0
    %3331 = vmatpush1.msra.mxu0 %v579
    %3332 = vmatprep.subr.mxu0 0.0
    %3333 = vmatpush1.msra.mxu0 %v580
    %3334 = vmatprep.subr.mxu0 0.0
    %3335 = vmatpush1.msra.mxu0 %v581
    %3336 = vmatprep.subr.mxu0 0.0
    %3337 = vmatpush1.msra.mxu0 0.0
    %3338 = vmatprep.subr.mxu0 0.0
    %3339 = vmatpush1.msra.mxu0 0.0
    %3340 = vmatprep.subr.mxu0 0.0
    %3341 = vmatpush1.msra.mxu0 0.0
    %3342 = vmatprep.subr.mxu0 0.0
    %3343 = vmatpush1.msra.mxu0 0.0
    %3344 = vmatprep.subr.mxu0 0.0
    %3345 = vmatpush1.msra.mxu0 0.0
    %3346 = vmatprep.subr.mxu0 0.0
    %3347 = vmatpush1.msra.mxu0 0.0
    %3348 = vmatprep.subr.mxu0 0.0
    %3349 = vmatpush1.msra.mxu0 0.0
    %3350 = vmatprep.subr.mxu0 0.0
    %3351 = vmatpush1.msra.mxu0 0.0
    %3352 = vmatprep.subr.mxu0 0.0
    %3353 = vmatpush1.msra.mxu0 0.0
    %3354 = vmatprep.subr.mxu0 0.0
    %3355 = vmatpush1.msra.mxu0 0.0
    %3356 = vmatprep.subr.mxu0 0.0
    %3357 = vmatpush1.msra.mxu0 0.0
    %3358 = vmatprep.subr.mxu0 0.0
    %3359 = vmatpush1.msra.mxu0 0.0
    %3360 = vmatprep.subr.mxu0 0.0
    %3361 = vmatpush1.msra.mxu0 0.0
    %3362 = vmatprep.subr.mxu0 0.0
    %3363 = vmatpush1.msra.mxu0 0.0
    %3364 = vmatprep.subr.mxu0 0.0
    %3365 = vmatpush1.msra.mxu0 0.0
    %3366 = vmatprep.subr.mxu0 0.0
    %3367 = vmatpush1.msra.mxu0 0.0
    %3368 = vmatprep.subr.mxu0 0.0
    %3369 = vmatpush1.msra.mxu0 0.0
    %3370 = vmatprep.subr.mxu0 0.0
    %3371 = vmatpush1.msra.mxu0 0.0
    %3372 = vmatprep.subr.mxu0 0.0
    %3373 = vmatpush1.msra.mxu0 0.0
    %3374 = vmatprep.subr.mxu0 0.0
    %3375 = vmatpush1.msra.mxu0 0.0
    %3376 = vmatprep.subr.mxu0 0.0
    %3377 = vmatpush1.msra.mxu0 0.0
    %3378 = vmatprep.subr.mxu0 0.0
    %3379 = vmatpush1.msra.mxu0 0.0
    %3380 = vmatprep.subr.mxu0 0.0
    %3381 = vmatpush1.msra.mxu0 0.0
    %3382 = vmatprep.subr.mxu0 0.0
    %3383 = vmatpush1.msra.mxu0 0.0
    %3384 = vmatprep.subr.mxu0 0.0
    %3385 = vmatpush1.msra.mxu0 0.0
    %3386 = vmatprep.subr.mxu0 0.0
    %3387 = vmatpush1.msra.mxu0 0.0
    %3388 = vmatprep.subr.mxu0 0.0
    %3389 = vmatpush1.msra.mxu0 0.0
    %3390 = vmatprep.subr.mxu0 0.0
    %3391 = vmatpush1.msra.mxu0 0.0
    %3392 = vmatprep.mubr.f32.mxu0 0.0
    %3393 = vmatmul.mubr.f32.gmra.mrb[0].mxu0 %v3255
    %v3394 = vpop.f32.mrb[0].mxu0
    %v3395 = vadd.f32 0.0, %v3394
    %v3396 = vpop.f32.mrb[0].mxu0
    %3397 = vdwg.mxu0
    %v3398 = vadd.f32 %v473, %v3395
    %3399 = vmatprep.subr.mxu0 0.0
    %3400 = vmatpush1.msra.mxu0 %v583
    %3401 = vmatprep.subr.mxu0 0.0
    %3402 = vmatpush1.msra.mxu0 %v584
    %3403 = vmatprep.subr.mxu0 0.0
    %3404 = vmatpush1.msra.mxu0 %v585
    %3405 = vmatprep.subr.mxu0 0.0
    %3406 = vmatpush1.msra.mxu0 %v586
    %3407 = vmatprep.subr.mxu0 0.0
    %3408 = vmatpush1.msra.mxu0 0.0
    %3409 = vmatprep.subr.mxu0 0.0
    %3410 = vmatpush1.msra.mxu0 0.0
    %3411 = vmatprep.subr.mxu0 0.0
    %3412 = vmatpush1.msra.mxu0 0.0
    %3413 = vmatprep.subr.mxu0 0.0
    %3414 = vmatpush1.msra.mxu0 0.0
    %3415 = vmatprep.subr.mxu0 0.0
    %3416 = vmatpush1.msra.mxu0 0.0
    %3417 = vmatprep.subr.mxu0 0.0
    %3418 = vmatpush1.msra.mxu0 0.0
    %3419 = vmatprep.subr.mxu0 0.0
    %3420 = vmatpush1.msra.mxu0 0.0
    %3421 = vmatprep.subr.mxu0 0.0
    %3422 = vmatpush1.msra.mxu0 0.0
    %3423 = vmatprep.subr.mxu0 0.0
    %3424 = vmatpush1.msra.mxu0 0.0
    %3425 = vmatprep.subr.mxu0 0.0
    %3426 = vmatpush1.msra.mxu0 0.0
    %3427 = vmatprep.subr.mxu0 0.0
    %3428 = vmatpush1.msra.mxu0 0.0
    %3429 = vmatprep.subr.mxu0 0.0
    %3430 = vmatpush1.msra.mxu0 0.0
    %3431 = vmatprep.subr.mxu0 0.0
    %3432 = vmatpush1.msra.mxu0 0.0
    %3433 = vmatprep.subr.mxu0 0.0
    %3434 = vmatpush1.msra.mxu0 0.0
    %3435 = vmatprep.subr.mxu0 0.0
    %3436 = vmatpush1.msra.mxu0 0.0
    %3437 = vmatprep.subr.mxu0 0.0
    %3438 = vmatpush1.msra.mxu0 0.0
    %3439 = vmatprep.subr.mxu0 0.0
    %3440 = vmatpush1.msra.mxu0 0.0
    %3441 = vmatprep.subr.mxu0 0.0
    %3442 = vmatpush1.msra.mxu0 0.0
    %3443 = vmatprep.subr.mxu0 0.0
    %3444 = vmatpush1.msra.mxu0 0.0
    %3445 = vmatprep.subr.mxu0 0.0
    %3446 = vmatpush1.msra.mxu0 0.0
    %3447 = vmatprep.subr.mxu0 0.0
    %3448 = vmatpush1.msra.mxu0 0.0
    %3449 = vmatprep.subr.mxu0 0.0
    %3450 = vmatpush1.msra.mxu0 0.0
    %3451 = vmatprep.subr.mxu0 0.0
    %3452 = vmatpush1.msra.mxu0 0.0
    %3453 = vmatprep.subr.mxu0 0.0
    %3454 = vmatpush1.msra.mxu0 0.0
    %3455 = vmatprep.subr.mxu0 0.0
    %3456 = vmatpush1.msra.mxu0 0.0
    %3457 = vmatprep.subr.mxu0 0.0
    %3458 = vmatpush1.msra.mxu0 0.0
    %3459 = vmatprep.subr.mxu0 0.0
    %3460 = vmatpush1.msra.mxu0 0.0
    %3461 = vmatprep.subr.mxu0 0.0
    %3462 = vmatpush1.msra.mxu0 0.0
    %3463 = vmatprep.mubr.f32.mxu0 0.0
    %3464 = vmatmul.mubr.f32.gmra.mrb[0].mxu0 %v3255
    %v3465 = vpop.f32.mrb[0].mxu0
    %v3466 = vadd.f32 %v600, %v3465
    %v3467 = vpop.f32.mrb[0].mxu0
    %3468 = vdwg.mxu0
    %v3469 = vxor.u32 %v3327, 2147483648
    %v3470 = vmul.f32 %v3469, 1.442695
    %v3471 = vpow.pop %v3470
    %v3472 = vadd.f32 %v3471, 1.0
    %v3473 = vrcp.pop %v3472
    %v3474 = vmul.f32 1.0, %v3473
    %v3475 = vxor.u32 %v3398, 2147483648
    %v3476 = vmul.f32 %v3475, 1.442695
    %v3477 = vpow.pop %v3476
    %v3478 = vadd.f32 %v3477, 1.0
    %v3479 = vrcp.pop %v3478
    %v3480 = vmul.f32 1.0, %v3479
    %v3481 = vmul.f32 %v3474, %v3466
    %v3482 = vadd.f32 %v547, %v3481
    %v3483 = vtanh.pop %v3482
    %v3484 = vsub.f32 1.0, %v3480
    %v3485 = vmul.f32 %v3484, %v3483
    %v3487 = vmul.f32 %v3480, %v3254
    %v3488 = vadd.f32 %v3485, %v3487
    %v3490 = vrot.slane %v3252, 4
    %v3491 = vsel %vm132, %v3490, 0
    %3493 = vmatprep.subr.mxu0 0.0
    %3494 = vmatpush1.msra.mxu0 %v558
    %3495 = vmatprep.subr.mxu0 0.0
    %3496 = vmatpush1.msra.mxu0 %v559
    %3497 = vmatprep.subr.mxu0 0.0
    %3498 = vmatpush1.msra.mxu0 %v560
    %3499 = vmatprep.subr.mxu0 0.0
    %3500 = vmatpush1.msra.mxu0 %v561
    %3501 = vmatprep.subr.mxu0 0.0
    %3502 = vmatpush1.msra.mxu0 0.0
    %3503 = vmatprep.subr.mxu0 0.0
    %3504 = vmatpush1.msra.mxu0 0.0
    %3505 = vmatprep.subr.mxu0 0.0
    %3506 = vmatpush1.msra.mxu0 0.0
    %3507 = vmatprep.subr.mxu0 0.0
    %3508 = vmatpush1.msra.mxu0 0.0
    %3509 = vmatprep.subr.mxu0 0.0
    %3510 = vmatpush1.msra.mxu0 0.0
    %3511 = vmatprep.subr.mxu0 0.0
    %3512 = vmatpush1.msra.mxu0 0.0
    %3513 = vmatprep.subr.mxu0 0.0
    %3514 = vmatpush1.msra.mxu0 0.0
    %3515 = vmatprep.subr.mxu0 0.0
    %3516 = vmatpush1.msra.mxu0 0.0
    %3517 = vmatprep.subr.mxu0 0.0
    %3518 = vmatpush1.msra.mxu0 0.0
    %3519 = vmatprep.subr.mxu0 0.0
    %3520 = vmatpush1.msra.mxu0 0.0
    %3521 = vmatprep.subr.mxu0 0.0
    %3522 = vmatpush1.msra.mxu0 0.0
    %3523 = vmatprep.subr.mxu0 0.0
    %3524 = vmatpush1.msra.mxu0 0.0
    %3525 = vmatprep.subr.mxu0 0.0
    %3526 = vmatpush1.msra.mxu0 0.0
    %3527 = vmatprep.subr.mxu0 0.0
    %3528 = vmatpush1.msra.mxu0 0.0
    %3529 = vmatprep.subr.mxu0 0.0
    %3530 = vmatpush1.msra.mxu0 0.0
    %3531 = vmatprep.subr.mxu0 0.0
    %3532 = vmatpush1.msra.mxu0 0.0
    %3533 = vmatprep.subr.mxu0 0.0
    %3534 = vmatpush1.msra.mxu0 0.0
    %3535 = vmatprep.subr.mxu0 0.0
    %3536 = vmatpush1.msra.mxu0 0.0
    %3537 = vmatprep.subr.mxu0 0.0
    %3538 = vmatpush1.msra.mxu0 0.0
    %3539 = vmatprep.subr.mxu0 0.0
    %3540 = vmatpush1.msra.mxu0 0.0
    %3541 = vmatprep.subr.mxu0 0.0
    %3542 = vmatpush1.msra.mxu0 0.0
    %3543 = vmatprep.subr.mxu0 0.0
    %3544 = vmatpush1.msra.mxu0 0.0
    %3545 = vmatprep.subr.mxu0 0.0
    %3546 = vmatpush1.msra.mxu0 0.0
    %3547 = vmatprep.subr.mxu0 0.0
    %3548 = vmatpush1.msra.mxu0 0.0
    %3549 = vmatprep.subr.mxu0 0.0
    %3550 = vmatpush1.msra.mxu0 0.0
    %3551 = vmatprep.subr.mxu0 0.0
    %3552 = vmatpush1.msra.mxu0 0.0
    %3553 = vmatprep.subr.mxu0 0.0
    %3554 = vmatpush1.msra.mxu0 0.0
    %3555 = vmatprep.subr.mxu0 0.0
    %3556 = vmatpush1.msra.mxu0 0.0
    %3557 = vmatprep.mubr.f32.mxu0 0.0
    %3558 = vmatmul.mubr.f32.gmra.mrb[0].mxu0 %v3491
    %v3559 = vpop.f32.mrb[0].mxu0
    %v3560 = vadd.f32 0.0, %v3559
    %v3561 = vpop.f32.mrb[0].mxu0
    %3562 = vdwg.mxu0
    %v3563 = vadd.f32 %v185, %v3560
    %3564 = vmatprep.subr.mxu0 0.0
    %3565 = vmatpush1.msra.mxu0 %v563
    %3566 = vmatprep.subr.mxu0 0.0
    %3567 = vmatpush1.msra.mxu0 %v564
    %3568 = vmatprep.subr.mxu0 0.0
    %3569 = vmatpush1.msra.mxu0 %v565
    %3570 = vmatprep.subr.mxu0 0.0
    %3571 = vmatpush1.msra.mxu0 %v566
    %3572 = vmatprep.subr.mxu0 0.0
    %3573 = vmatpush1.msra.mxu0 0.0
    %3574 = vmatprep.subr.mxu0 0.0
    %3575 = vmatpush1.msra.mxu0 0.0
    %3576 = vmatprep.subr.mxu0 0.0
    %3577 = vmatpush1.msra.mxu0 0.0
    %3578 = vmatprep.subr.mxu0 0.0
    %3579 = vmatpush1.msra.mxu0 0.0
    %3580 = vmatprep.subr.mxu0 0.0
    %3581 = vmatpush1.msra.mxu0 0.0
    %3582 = vmatprep.subr.mxu0 0.0
    %3583 = vmatpush1.msra.mxu0 0.0
    %3584 = vmatprep.subr.mxu0 0.0
    %3585 = vmatpush1.msra.mxu0 0.0
    %3586 = vmatprep.subr.mxu0 0.0
    %3587 = vmatpush1.msra.mxu0 0.0
    %3588 = vmatprep.subr.mxu0 0.0
    %3589 = vmatpush1.msra.mxu0 0.0
    %3590 = vmatprep.subr.mxu0 0.0
    %3591 = vmatpush1.msra.mxu0 0.0
    %3592 = vmatprep.subr.mxu0 0.0
    %3593 = vmatpush1.msra.mxu0 0.0
    %3594 = vmatprep.subr.mxu0 0.0
    %3595 = vmatpush1.msra.mxu0 0.0
    %3596 = vmatprep.subr.mxu0 0.0
    %3597 = vmatpush1.msra.mxu0 0.0
    %3598 = vmatprep.subr.mxu0 0.0
    %3599 = vmatpush1.msra.mxu0 0.0
    %3600 = vmatprep.subr.mxu0 0.0
    %3601 = vmatpush1.msra.mxu0 0.0
    %3602 = vmatprep.subr.mxu0 0.0
    %3603 = vmatpush1.msra.mxu0 0.0
    %3604 = vmatprep.subr.mxu0 0.0
    %3605 = vmatpush1.msra.mxu0 0.0
    %3606 = vmatprep.subr.mxu0 0.0
    %3607 = vmatpush1.msra.mxu0 0.0
    %3608 = vmatprep.subr.mxu0 0.0
    %3609 = vmatpush1.msra.mxu0 0.0
    %3610 = vmatprep.subr.mxu0 0.0
    %3611 = vmatpush1.msra.mxu0 0.0
    %3612 = vmatprep.subr.mxu0 0.0
    %3613 = vmatpush1.msra.mxu0 0.0
    %3614 = vmatprep.subr.mxu0 0.0
    %3615 = vmatpush1.msra.mxu0 0.0
    %3616 = vmatprep.subr.mxu0 0.0
    %3617 = vmatpush1.msra.mxu0 0.0
    %3618 = vmatprep.subr.mxu0 0.0
    %3619 = vmatpush1.msra.mxu0 0.0
    %3620 = vmatprep.subr.mxu0 0.0
    %3621 = vmatpush1.msra.mxu0 0.0
    %3622 = vmatprep.subr.mxu0 0.0
    %3623 = vmatpush1.msra.mxu0 0.0
    %3624 = vmatprep.subr.mxu0 0.0
    %3625 = vmatpush1.msra.mxu0 0.0
    %3626 = vmatprep.subr.mxu0 0.0
    %3627 = vmatpush1.msra.mxu0 0.0
    %3628 = vmatprep.mubr.f32.mxu0 0.0
    %3629 = vmatmul.mubr.f32.gmra.mrb[0].mxu0 %v3491
    %v3630 = vpop.f32.mrb[0].mxu0
    %v3631 = vadd.f32 0.0, %v3630
    %v3632 = vpop.f32.mrb[0].mxu0
    %3633 = vdwg.mxu0
    %v3634 = vadd.f32 %v259, %v3631
    %3635 = vmatprep.subr.mxu0 0.0
    %3636 = vmatpush1.msra.mxu0 %v568
    %3637 = vmatprep.subr.mxu0 0.0
    %3638 = vmatpush1.msra.mxu0 %v569
    %3639 = vmatprep.subr.mxu0 0.0
    %3640 = vmatpush1.msra.mxu0 %v570
    %3641 = vmatprep.subr.mxu0 0.0
    %3642 = vmatpush1.msra.mxu0 %v571
    %3643 = vmatprep.subr.mxu0 0.0
    %3644 = vmatpush1.msra.mxu0 0.0
    %3645 = vmatprep.subr.mxu0 0.0
    %3646 = vmatpush1.msra.mxu0 0.0
    %3647 = vmatprep.subr.mxu0 0.0
    %3648 = vmatpush1.msra.mxu0 0.0
    %3649 = vmatprep.subr.mxu0 0.0
    %3650 = vmatpush1.msra.mxu0 0.0
    %3651 = vmatprep.subr.mxu0 0.0
    %3652 = vmatpush1.msra.mxu0 0.0
    %3653 = vmatprep.subr.mxu0 0.0
    %3654 = vmatpush1.msra.mxu0 0.0
    %3655 = vmatprep.subr.mxu0 0.0
    %3656 = vmatpush1.msra.mxu0 0.0
    %3657 = vmatprep.subr.mxu0 0.0
    %3658 = vmatpush1.msra.mxu0 0.0
    %3659 = vmatprep.subr.mxu0 0.0
    %3660 = vmatpush1.msra.mxu0 0.0
    %3661 = vmatprep.subr.mxu0 0.0
    %3662 = vmatpush1.msra.mxu0 0.0
    %3663 = vmatprep.subr.mxu0 0.0
    %3664 = vmatpush1.msra.mxu0 0.0
    %3665 = vmatprep.subr.mxu0 0.0
    %3666 = vmatpush1.msra.mxu0 0.0
    %3667 = vmatprep.subr.mxu0 0.0
    %3668 = vmatpush1.msra.mxu0 0.0
    %3669 = vmatprep.subr.mxu0 0.0
    %3670 = vmatpush1.msra.mxu0 0.0
    %3671 = vmatprep.subr.mxu0 0.0
    %3672 = vmatpush1.msra.mxu0 0.0
    %3673 = vmatprep.subr.mxu0 0.0
    %3674 = vmatpush1.msra.mxu0 0.0
    %3675 = vmatprep.subr.mxu0 0.0
    %3676 = vmatpush1.msra.mxu0 0.0
    %3677 = vmatprep.subr.mxu0 0.0
    %3678 = vmatpush1.msra.mxu0 0.0
    %3679 = vmatprep.subr.mxu0 0.0
    %3680 = vmatpush1.msra.mxu0 0.0
    %3681 = vmatprep.subr.mxu0 0.0
    %3682 = vmatpush1.msra.mxu0 0.0
    %3683 = vmatprep.subr.mxu0 0.0
    %3684 = vmatpush1.msra.mxu0 0.0
    %3685 = vmatprep.subr.mxu0 0.0
    %3686 = vmatpush1.msra.mxu0 0.0
    %3687 = vmatprep.subr.mxu0 0.0
    %3688 = vmatpush1.msra.mxu0 0.0
    %3689 = vmatprep.subr.mxu0 0.0
    %3690 = vmatpush1.msra.mxu0 0.0
    %3691 = vmatprep.subr.mxu0 0.0
    %3692 = vmatpush1.msra.mxu0 0.0
    %3693 = vmatprep.subr.mxu0 0.0
    %3694 = vmatpush1.msra.mxu0 0.0
    %3695 = vmatprep.subr.mxu0 0.0
    %3696 = vmatpush1.msra.mxu0 0.0
    %3697 = vmatprep.subr.mxu0 0.0
    %3698 = vmatpush1.msra.mxu0 0.0
    %3699 = vmatprep.mubr.f32.mxu0 0.0
    %3700 = vmatmul.mubr.f32.gmra.mrb[0].mxu0 %v3491
    %v3701 = vpop.f32.mrb[0].mxu0
    %v3702 = vadd.f32 %v592, %v3701
    %v3703 = vpop.f32.mrb[0].mxu0
    %3704 = vdwg.mxu0
    %v3705 = vxor.u32 %v3563, 2147483648
    %v3706 = vmul.f32 %v3705, 1.442695
    %v3707 = vpow.pop %v3706
    %v3708 = vadd.f32 %v3707, 1.0
    %v3709 = vrcp.pop %v3708
    %v3710 = vmul.f32 1.0, %v3709
    %v3711 = vxor.u32 %v3634, 2147483648
    %v3712 = vmul.f32 %v3711, 1.442695
    %v3713 = vpow.pop %v3712
    %v3714 = vadd.f32 %v3713, 1.0
    %v3715 = vrcp.pop %v3714
    %v3716 = vmul.f32 1.0, %v3715
    %v3717 = vmul.f32 %v3710, %v3702
    %v3718 = vadd.f32 %v333, %v3717
    %v3719 = vtanh.pop %v3718
    %v3720 = vsub.f32 1.0, %v3716
    %v3721 = vmul.f32 %v3720, %v3719
    %v3723 = vmul.f32 %v3716, %v3490
    %v3724 = vadd.f32 %v3721, %v3723
    %v3726 = vsel %vm132, %v3488, 0
    %3728 = vmatprep.subr.mxu0 0.0
    %3729 = vmatpush1.msra.mxu0 %v573
    %3730 = vmatprep.subr.mxu0 0.0
    %3731 = vmatpush1.msra.mxu0 %v574
    %3732 = vmatprep.subr.mxu0 0.0
    %3733 = vmatpush1.msra.mxu0 %v575
    %3734 = vmatprep.subr.mxu0 0.0
    %3735 = vmatpush1.msra.mxu0 %v576
    %3736 = vmatprep.subr.mxu0 0.0
    %3737 = vmatpush1.msra.mxu0 0.0
    %3738 = vmatprep.subr.mxu0 0.0
    %3739 = vmatpush1.msra.mxu0 0.0
    %3740 = vmatprep.subr.mxu0 0.0
    %3741 = vmatpush1.msra.mxu0 0.0
    %3742 = vmatprep.subr.mxu0 0.0
    %3743 = vmatpush1.msra.mxu0 0.0
    %3744 = vmatprep.subr.mxu0 0.0
    %3745 = vmatpush1.msra.mxu0 0.0
    %3746 = vmatprep.subr.mxu0 0.0
    %3747 = vmatpush1.msra.mxu0 0.0
    %3748 = vmatprep.subr.mxu0 0.0
    %3749 = vmatpush1.msra.mxu0 0.0
    %3750 = vmatprep.subr.mxu0 0.0
    %3751 = vmatpush1.msra.mxu0 0.0
    %3752 = vmatprep.subr.mxu0 0.0
    %3753 = vmatpush1.msra.mxu0 0.0
    %3754 = vmatprep.subr.mxu0 0.0
    %3755 = vmatpush1.msra.mxu0 0.0
    %3756 = vmatprep.subr.mxu0 0.0
    %3757 = vmatpush1.msra.mxu0 0.0
    %3758 = vmatprep.subr.mxu0 0.0
    %3759 = vmatpush1.msra.mxu0 0.0
    %3760 = vmatprep.subr.mxu0 0.0
    %3761 = vmatpush1.msra.mxu0 0.0
    %3762 = vmatprep.subr.mxu0 0.0
    %3763 = vmatpush1.msra.mxu0 0.0
    %3764 = vmatprep.subr.mxu0 0.0
    %3765 = vmatpush1.msra.mxu0 0.0
    %3766 = vmatprep.subr.mxu0 0.0
    %3767 = vmatpush1.msra.mxu0 0.0
    %3768 = vmatprep.subr.mxu0 0.0
    %3769 = vmatpush1.msra.mxu0 0.0
    %3770 = vmatprep.subr.mxu0 0.0
    %3771 = vmatpush1.msra.mxu0 0.0
    %3772 = vmatprep.subr.mxu0 0.0
    %3773 = vmatpush1.msra.mxu0 0.0
    %3774 = vmatprep.subr.mxu0 0.0
    %3775 = vmatpush1.msra.mxu0 0.0
    %3776 = vmatprep.subr.mxu0 0.0
    %3777 = vmatpush1.msra.mxu0 0.0
    %3778 = vmatprep.subr.mxu0 0.0
    %3779 = vmatpush1.msra.mxu0 0.0
    %3780 = vmatprep.subr.mxu0 0.0
    %3781 = vmatpush1.msra.mxu0 0.0
    %3782 = vmatprep.subr.mxu0 0.0
    %3783 = vmatpush1.msra.mxu0 0.0
    %3784 = vmatprep.subr.mxu0 0.0
    %3785 = vmatpush1.msra.mxu0 0.0
    %3786 = vmatprep.subr.mxu0 0.0
    %3787 = vmatpush1.msra.mxu0 0.0
    %3788 = vmatprep.subr.mxu0 0.0
    %3789 = vmatpush1.msra.mxu0 0.0
    %3790 = vmatprep.subr.mxu0 0.0
    %3791 = vmatpush1.msra.mxu0 0.0
    %3792 = vmatprep.mubr.f32.mxu0 0.0
    %3793 = vmatmul.mubr.f32.gmra.mrb[0].mxu0 %v3726
    %v3794 = vpop.f32.mrb[0].mxu0
    %v3795 = vadd.f32 0.0, %v3794
    %v3796 = vpop.f32.mrb[0].mxu0
    %3797 = vdwg.mxu0
    %v3799 = vrot.slane %v3795, 4
    %v3801 = vadd.f32 %v396, %v3799
    %3802 = vmatprep.subr.mxu0 0.0
    %3803 = vmatpush1.msra.mxu0 %v578
    %3804 = vmatprep.subr.mxu0 0.0
    %3805 = vmatpush1.msra.mxu0 %v579
    %3806 = vmatprep.subr.mxu0 0.0
    %3807 = vmatpush1.msra.mxu0 %v580
    %3808 = vmatprep.subr.mxu0 0.0
    %3809 = vmatpush1.msra.mxu0 %v581
    %3810 = vmatprep.subr.mxu0 0.0
    %3811 = vmatpush1.msra.mxu0 0.0
    %3812 = vmatprep.subr.mxu0 0.0
    %3813 = vmatpush1.msra.mxu0 0.0
    %3814 = vmatprep.subr.mxu0 0.0
    %3815 = vmatpush1.msra.mxu0 0.0
    %3816 = vmatprep.subr.mxu0 0.0
    %3817 = vmatpush1.msra.mxu0 0.0
    %3818 = vmatprep.subr.mxu0 0.0
    %3819 = vmatpush1.msra.mxu0 0.0
    %3820 = vmatprep.subr.mxu0 0.0
    %3821 = vmatpush1.msra.mxu0 0.0
    %3822 = vmatprep.subr.mxu0 0.0
    %3823 = vmatpush1.msra.mxu0 0.0
    %3824 = vmatprep.subr.mxu0 0.0
    %3825 = vmatpush1.msra.mxu0 0.0
    %3826 = vmatprep.subr.mxu0 0.0
    %3827 = vmatpush1.msra.mxu0 0.0
    %3828 = vmatprep.subr.mxu0 0.0
    %3829 = vmatpush1.msra.mxu0 0.0
    %3830 = vmatprep.subr.mxu0 0.0
    %3831 = vmatpush1.msra.mxu0 0.0
    %3832 = vmatprep.subr.mxu0 0.0
    %3833 = vmatpush1.msra.mxu0 0.0
    %3834 = vmatprep.subr.mxu0 0.0
    %3835 = vmatpush1.msra.mxu0 0.0
    %3836 = vmatprep.subr.mxu0 0.0
    %3837 = vmatpush1.msra.mxu0 0.0
    %3838 = vmatprep.subr.mxu0 0.0
    %3839 = vmatpush1.msra.mxu0 0.0
    %3840 = vmatprep.subr.mxu0 0.0
    %3841 = vmatpush1.msra.mxu0 0.0
    %3842 = vmatprep.subr.mxu0 0.0
    %3843 = vmatpush1.msra.mxu0 0.0
    %3844 = vmatprep.subr.mxu0 0.0
    %3845 = vmatpush1.msra.mxu0 0.0
    %3846 = vmatprep.subr.mxu0 0.0
    %3847 = vmatpush1.msra.mxu0 0.0
    %3848 = vmatprep.subr.mxu0 0.0
    %3849 = vmatpush1.msra.mxu0 0.0
    %3850 = vmatprep.subr.mxu0 0.0
    %3851 = vmatpush1.msra.mxu0 0.0
    %3852 = vmatprep.subr.mxu0 0.0
    %3853 = vmatpush1.msra.mxu0 0.0
    %3854 = vmatprep.subr.mxu0 0.0
    %3855 = vmatpush1.msra.mxu0 0.0
    %3856 = vmatprep.subr.mxu0 0.0
    %3857 = vmatpush1.msra.mxu0 0.0
    %3858 = vmatprep.subr.mxu0 0.0
    %3859 = vmatpush1.msra.mxu0 0.0
    %3860 = vmatprep.subr.mxu0 0.0
    %3861 = vmatpush1.msra.mxu0 0.0
    %3862 = vmatprep.subr.mxu0 0.0
    %3863 = vmatpush1.msra.mxu0 0.0
    %3864 = vmatprep.subr.mxu0 0.0
    %3865 = vmatpush1.msra.mxu0 0.0
    %3866 = vmatprep.mubr.f32.mxu0 0.0
    %3867 = vmatmul.mubr.f32.gmra.mrb[0].mxu0 %v3726
    %v3868 = vpop.f32.mrb[0].mxu0
    %v3869 = vadd.f32 0.0, %v3868
    %v3870 = vpop.f32.mrb[0].mxu0
    %3871 = vdwg.mxu0
    %v3873 = vrot.slane %v3869, 4
    %v3875 = vadd.f32 %v470, %v3873
    %3876 = vmatprep.subr.mxu0 0.0
    %3877 = vmatpush1.msra.mxu0 %v583
    %3878 = vmatprep.subr.mxu0 0.0
    %3879 = vmatpush1.msra.mxu0 %v584
    %3880 = vmatprep.subr.mxu0 0.0
    %3881 = vmatpush1.msra.mxu0 %v585
    %3882 = vmatprep.subr.mxu0 0.0
    %3883 = vmatpush1.msra.mxu0 %v586
    %3884 = vmatprep.subr.mxu0 0.0
    %3885 = vmatpush1.msra.mxu0 0.0
    %3886 = vmatprep.subr.mxu0 0.0
    %3887 = vmatpush1.msra.mxu0 0.0
    %3888 = vmatprep.subr.mxu0 0.0
    %3889 = vmatpush1.msra.mxu0 0.0
    %3890 = vmatprep.subr.mxu0 0.0
    %3891 = vmatpush1.msra.mxu0 0.0
    %3892 = vmatprep.subr.mxu0 0.0
    %3893 = vmatpush1.msra.mxu0 0.0
    %3894 = vmatprep.subr.mxu0 0.0
    %3895 = vmatpush1.msra.mxu0 0.0
    %3896 = vmatprep.subr.mxu0 0.0
    %3897 = vmatpush1.msra.mxu0 0.0
    %3898 = vmatprep.subr.mxu0 0.0
    %3899 = vmatpush1.msra.mxu0 0.0
    %3900 = vmatprep.subr.mxu0 0.0
    %3901 = vmatpush1.msra.mxu0 0.0
    %3902 = vmatprep.subr.mxu0 0.0
    %3903 = vmatpush1.msra.mxu0 0.0
    %3904 = vmatprep.subr.mxu0 0.0
    %3905 = vmatpush1.msra.mxu0 0.0
    %3906 = vmatprep.subr.mxu0 0.0
    %3907 = vmatpush1.msra.mxu0 0.0
    %3908 = vmatprep.subr.mxu0 0.0
    %3909 = vmatpush1.msra.mxu0 0.0
    %3910 = vmatprep.subr.mxu0 0.0
    %3911 = vmatpush1.msra.mxu0 0.0
    %3912 = vmatprep.subr.mxu0 0.0
    %3913 = vmatpush1.msra.mxu0 0.0
    %3914 = vmatprep.subr.mxu0 0.0
    %3915 = vmatpush1.msra.mxu0 0.0
    %3916 = vmatprep.subr.mxu0 0.0
    %3917 = vmatpush1.msra.mxu0 0.0
    %3918 = vmatprep.subr.mxu0 0.0
    %3919 = vmatpush1.msra.mxu0 0.0
    %3920 = vmatprep.subr.mxu0 0.0
    %3921 = vmatpush1.msra.mxu0 0.0
    %3922 = vmatprep.subr.mxu0 0.0
    %3923 = vmatpush1.msra.mxu0 0.0
    %3924 = vmatprep.subr.mxu0 0.0
    %3925 = vmatpush1.msra.mxu0 0.0
    %3926 = vmatprep.subr.mxu0 0.0
    %3927 = vmatpush1.msra.mxu0 0.0
    %3928 = vmatprep.subr.mxu0 0.0
    %3929 = vmatpush1.msra.mxu0 0.0
    %3930 = vmatprep.subr.mxu0 0.0
    %3931 = vmatpush1.msra.mxu0 0.0
    %3932 = vmatprep.subr.mxu0 0.0
    %3933 = vmatpush1.msra.mxu0 0.0
    %3934 = vmatprep.subr.mxu0 0.0
    %3935 = vmatpush1.msra.mxu0 0.0
    %3936 = vmatprep.subr.mxu0 0.0
    %3937 = vmatpush1.msra.mxu0 0.0
    %3938 = vmatprep.subr.mxu0 0.0
    %3939 = vmatpush1.msra.mxu0 0.0
    %3940 = vmatprep.mubr.f32.mxu0 0.0
    %3941 = vmatmul.mubr.f32.gmra.mrb[0].mxu0 %v3726
    %v3942 = vpop.f32.mrb[0].mxu0
    %v3943 = vadd.f32 %v600, %v3942
    %v3944 = vpop.f32.mrb[0].mxu0
    %3945 = vdwg.mxu0
    %v3946 = vxor.u32 %v3801, 2147483648
    %v3947 = vmul.f32 %v3946, 1.442695
    %v3948 = vpow.pop %v3947
    %v3949 = vadd.f32 %v3948, 1.0
    %v3950 = vrcp.pop %v3949
    %v3951 = vmul.f32 1.0, %v3950
    %v3952 = vxor.u32 %v3875, 2147483648
    %v3953 = vmul.f32 %v3952, 1.442695
    %v3954 = vpow.pop %v3953
    %v3955 = vadd.f32 %v3954, 1.0
    %v3956 = vrcp.pop %v3955
    %v3957 = vmul.f32 1.0, %v3956
    %v3959 = vrot.slane %v3943, 4
    %v3961 = vmul.f32 %v3951, %v3959
    %v3962 = vadd.f32 %v544, %v3961
    %v3963 = vtanh.pop %v3962
    %v3964 = vsub.f32 1.0, %v3957
    %v3965 = vmul.f32 %v3964, %v3963
    %v3966 = vrot.slane %v3488, 4
    %v3968 = vmul.f32 %v3957, %v3966
    %v3969 = vadd.f32 %v3965, %v3968
    %v3971 = vsel %vm132, %v3724, 0
    %3973 = vmatprep.subr.mxu0 0.0
    %3974 = vmatpush1.msra.mxu0 %v558
    %3975 = vmatprep.subr.mxu0 0.0
    %3976 = vmatpush1.msra.mxu0 %v559
    %3977 = vmatprep.subr.mxu0 0.0
    %3978 = vmatpush1.msra.mxu0 %v560
    %3979 = vmatprep.subr.mxu0 0.0
    %3980 = vmatpush1.msra.mxu0 %v561
    %3981 = vmatprep.subr.mxu0 0.0
    %3982 = vmatpush1.msra.mxu0 0.0
    %3983 = vmatprep.subr.mxu0 0.0
    %3984 = vmatpush1.msra.mxu0 0.0
    %3985 = vmatprep.subr.mxu0 0.0
    %3986 = vmatpush1.msra.mxu0 0.0
    %3987 = vmatprep.subr.mxu0 0.0
    %3988 = vmatpush1.msra.mxu0 0.0
    %3989 = vmatprep.subr.mxu0 0.0
    %3990 = vmatpush1.msra.mxu0 0.0
    %3991 = vmatprep.subr.mxu0 0.0
    %3992 = vmatpush1.msra.mxu0 0.0
    %3993 = vmatprep.subr.mxu0 0.0
    %3994 = vmatpush1.msra.mxu0 0.0
    %3995 = vmatprep.subr.mxu0 0.0
    %3996 = vmatpush1.msra.mxu0 0.0
    %3997 = vmatprep.subr.mxu0 0.0
    %3998 = vmatpush1.msra.mxu0 0.0
    %3999 = vmatprep.subr.mxu0 0.0
    %4000 = vmatpush1.msra.mxu0 0.0
    %4001 = vmatprep.subr.mxu0 0.0
    %4002 = vmatpush1.msra.mxu0 0.0
    %4003 = vmatprep.subr.mxu0 0.0
    %4004 = vmatpush1.msra.mxu0 0.0
    %4005 = vmatprep.subr.mxu0 0.0
    %4006 = vmatpush1.msra.mxu0 0.0
    %4007 = vmatprep.subr.mxu0 0.0
    %4008 = vmatpush1.msra.mxu0 0.0
    %4009 = vmatprep.subr.mxu0 0.0
    %4010 = vmatpush1.msra.mxu0 0.0
    %4011 = vmatprep.subr.mxu0 0.0
    %4012 = vmatpush1.msra.mxu0 0.0
    %4013 = vmatprep.subr.mxu0 0.0
    %4014 = vmatpush1.msra.mxu0 0.0
    %4015 = vmatprep.subr.mxu0 0.0
    %4016 = vmatpush1.msra.mxu0 0.0
    %4017 = vmatprep.subr.mxu0 0.0
    %4018 = vmatpush1.msra.mxu0 0.0
    %4019 = vmatprep.subr.mxu0 0.0
    %4020 = vmatpush1.msra.mxu0 0.0
    %4021 = vmatprep.subr.mxu0 0.0
    %4022 = vmatpush1.msra.mxu0 0.0
    %4023 = vmatprep.subr.mxu0 0.0
    %4024 = vmatpush1.msra.mxu0 0.0
    %4025 = vmatprep.subr.mxu0 0.0
    %4026 = vmatpush1.msra.mxu0 0.0
    %4027 = vmatprep.subr.mxu0 0.0
    %4028 = vmatpush1.msra.mxu0 0.0
    %4029 = vmatprep.subr.mxu0 0.0
    %4030 = vmatpush1.msra.mxu0 0.0
    %4031 = vmatprep.subr.mxu0 0.0
    %4032 = vmatpush1.msra.mxu0 0.0
    %4033 = vmatprep.subr.mxu0 0.0
    %4034 = vmatpush1.msra.mxu0 0.0
    %4035 = vmatprep.subr.mxu0 0.0
    %4036 = vmatpush1.msra.mxu0 0.0
    %4037 = vmatprep.mubr.f32.mxu0 0.0
    %4038 = vmatmul.mubr.f32.gmra.mrb[0].mxu0 %v3971
    %v4039 = vpop.f32.mrb[0].mxu0
    %v4040 = vadd.f32 0.0, %v4039
    %v4041 = vpop.f32.mrb[0].mxu0
    %4042 = vdwg.mxu0
    %v4044 = vrot.slane %v4040, 4
    %v4046 = vadd.f32 %v185, %v4044
    %4047 = vmatprep.subr.mxu0 0.0
    %4048 = vmatpush1.msra.mxu0 %v563
    %4049 = vmatprep.subr.mxu0 0.0
    %4050 = vmatpush1.msra.mxu0 %v564
    %4051 = vmatprep.subr.mxu0 0.0
    %4052 = vmatpush1.msra.mxu0 %v565
    %4053 = vmatprep.subr.mxu0 0.0
    %4054 = vmatpush1.msra.mxu0 %v566
    %4055 = vmatprep.subr.mxu0 0.0
    %4056 = vmatpush1.msra.mxu0 0.0
    %4057 = vmatprep.subr.mxu0 0.0
    %4058 = vmatpush1.msra.mxu0 0.0
    %4059 = vmatprep.subr.mxu0 0.0
    %4060 = vmatpush1.msra.mxu0 0.0
    %4061 = vmatprep.subr.mxu0 0.0
    %4062 = vmatpush1.msra.mxu0 0.0
    %4063 = vmatprep.subr.mxu0 0.0
    %4064 = vmatpush1.msra.mxu0 0.0
    %4065 = vmatprep.subr.mxu0 0.0
    %4066 = vmatpush1.msra.mxu0 0.0
    %4067 = vmatprep.subr.mxu0 0.0
    %4068 = vmatpush1.msra.mxu0 0.0
    %4069 = vmatprep.subr.mxu0 0.0
    %4070 = vmatpush1.msra.mxu0 0.0
    %4071 = vmatprep.subr.mxu0 0.0
    %4072 = vmatpush1.msra.mxu0 0.0
    %4073 = vmatprep.subr.mxu0 0.0
    %4074 = vmatpush1.msra.mxu0 0.0
    %4075 = vmatprep.subr.mxu0 0.0
    %4076 = vmatpush1.msra.mxu0 0.0
    %4077 = vmatprep.subr.mxu0 0.0
    %4078 = vmatpush1.msra.mxu0 0.0
    %4079 = vmatprep.subr.mxu0 0.0
    %4080 = vmatpush1.msra.mxu0 0.0
    %4081 = vmatprep.subr.mxu0 0.0
    %4082 = vmatpush1.msra.mxu0 0.0
    %4083 = vmatprep.subr.mxu0 0.0
    %4084 = vmatpush1.msra.mxu0 0.0
    %4085 = vmatprep.subr.mxu0 0.0
    %4086 = vmatpush1.msra.mxu0 0.0
    %4087 = vmatprep.subr.mxu0 0.0
    %4088 = vmatpush1.msra.mxu0 0.0
    %4089 = vmatprep.subr.mxu0 0.0
    %4090 = vmatpush1.msra.mxu0 0.0
    %4091 = vmatprep.subr.mxu0 0.0
    %4092 = vmatpush1.msra.mxu0 0.0
    %4093 = vmatprep.subr.mxu0 0.0
    %4094 = vmatpush1.msra.mxu0 0.0
    %4095 = vmatprep.subr.mxu0 0.0
    %4096 = vmatpush1.msra.mxu0 0.0
    %4097 = vmatprep.subr.mxu0 0.0
    %4098 = vmatpush1.msra.mxu0 0.0
    %4099 = vmatprep.subr.mxu0 0.0
    %4100 = vmatpush1.msra.mxu0 0.0
    %4101 = vmatprep.subr.mxu0 0.0
    %4102 = vmatpush1.msra.mxu0 0.0
    %4103 = vmatprep.subr.mxu0 0.0
    %4104 = vmatpush1.msra.mxu0 0.0
    %4105 = vmatprep.subr.mxu0 0.0
    %4106 = vmatpush1.msra.mxu0 0.0
    %4107 = vmatprep.subr.mxu0 0.0
    %4108 = vmatpush1.msra.mxu0 0.0
    %4109 = vmatprep.subr.mxu0 0.0
    %4110 = vmatpush1.msra.mxu0 0.0
    %4111 = vmatprep.mubr.f32.mxu0 0.0
    %4112 = vmatmul.mubr.f32.gmra.mrb[0].mxu0 %v3971
    %v4113 = vpop.f32.mrb[0].mxu0
    %v4114 = vadd.f32 0.0, %v4113
    %v4115 = vpop.f32.mrb[0].mxu0
    %4116 = vdwg.mxu0
    %v4118 = vrot.slane %v4114, 4
    %v4120 = vadd.f32 %v259, %v4118
    %4121 = vmatprep.subr.mxu0 0.0
    %4122 = vmatpush1.msra.mxu0 %v568
    %4123 = vmatprep.subr.mxu0 0.0
    %4124 = vmatpush1.msra.mxu0 %v569
    %4125 = vmatprep.subr.mxu0 0.0
    %4126 = vmatpush1.msra.mxu0 %v570
    %4127 = vmatprep.subr.mxu0 0.0
    %4128 = vmatpush1.msra.mxu0 %v571
    %4129 = vmatprep.subr.mxu0 0.0
    %4130 = vmatpush1.msra.mxu0 0.0
    %4131 = vmatprep.subr.mxu0 0.0
    %4132 = vmatpush1.msra.mxu0 0.0
    %4133 = vmatprep.subr.mxu0 0.0
    %4134 = vmatpush1.msra.mxu0 0.0
    %4135 = vmatprep.subr.mxu0 0.0
    %4136 = vmatpush1.msra.mxu0 0.0
    %4137 = vmatprep.subr.mxu0 0.0
    %4138 = vmatpush1.msra.mxu0 0.0
    %4139 = vmatprep.subr.mxu0 0.0
    %4140 = vmatpush1.msra.mxu0 0.0
    %4141 = vmatprep.subr.mxu0 0.0
    %4142 = vmatpush1.msra.mxu0 0.0
    %4143 = vmatprep.subr.mxu0 0.0
    %4144 = vmatpush1.msra.mxu0 0.0
    %4145 = vmatprep.subr.mxu0 0.0
    %4146 = vmatpush1.msra.mxu0 0.0
    %4147 = vmatprep.subr.mxu0 0.0
    %4148 = vmatpush1.msra.mxu0 0.0
    %4149 = vmatprep.subr.mxu0 0.0
    %4150 = vmatpush1.msra.mxu0 0.0
    %4151 = vmatprep.subr.mxu0 0.0
    %4152 = vmatpush1.msra.mxu0 0.0
    %4153 = vmatprep.subr.mxu0 0.0
    %4154 = vmatpush1.msra.mxu0 0.0
    %4155 = vmatprep.subr.mxu0 0.0
    %4156 = vmatpush1.msra.mxu0 0.0
    %4157 = vmatprep.subr.mxu0 0.0
    %4158 = vmatpush1.msra.mxu0 0.0
    %4159 = vmatprep.subr.mxu0 0.0
    %4160 = vmatpush1.msra.mxu0 0.0
    %4161 = vmatprep.subr.mxu0 0.0
    %4162 = vmatpush1.msra.mxu0 0.0
    %4163 = vmatprep.subr.mxu0 0.0
    %4164 = vmatpush1.msra.mxu0 0.0
    %4165 = vmatprep.subr.mxu0 0.0
    %4166 = vmatpush1.msra.mxu0 0.0
    %4167 = vmatprep.subr.mxu0 0.0
    %4168 = vmatpush1.msra.mxu0 0.0
    %4169 = vmatprep.subr.mxu0 0.0
    %4170 = vmatpush1.msra.mxu0 0.0
    %4171 = vmatprep.subr.mxu0 0.0
    %4172 = vmatpush1.msra.mxu0 0.0
    %4173 = vmatprep.subr.mxu0 0.0
    %4174 = vmatpush1.msra.mxu0 0.0
    %4175 = vmatprep.subr.mxu0 0.0
    %4176 = vmatpush1.msra.mxu0 0.0
    %4177 = vmatprep.subr.mxu0 0.0
    %4178 = vmatpush1.msra.mxu0 0.0
    %4179 = vmatprep.subr.mxu0 0.0
    %4180 = vmatpush1.msra.mxu0 0.0
    %4181 = vmatprep.subr.mxu0 0.0
    %4182 = vmatpush1.msra.mxu0 0.0
    %4183 = vmatprep.subr.mxu0 0.0
    %4184 = vmatpush1.msra.mxu0 0.0
    %4185 = vmatprep.mubr.f32.mxu0 0.0
    %4186 = vmatmul.mubr.f32.gmra.mrb[0].mxu0 %v3971
    %v4187 = vpop.f32.mrb[0].mxu0
    %v4188 = vadd.f32 %v592, %v4187
    %v4189 = vpop.f32.mrb[0].mxu0
    %4190 = vdwg.mxu0
    %v4191 = vxor.u32 %v4046, 2147483648
    %v4192 = vmul.f32 %v4191, 1.442695
    %v4193 = vpow.pop %v4192
    %v4194 = vadd.f32 %v4193, 1.0
    %v4195 = vrcp.pop %v4194
    %v4196 = vmul.f32 1.0, %v4195
    %v4197 = vxor.u32 %v4120, 2147483648
    %v4198 = vmul.f32 %v4197, 1.442695
    %v4199 = vpow.pop %v4198
    %v4200 = vadd.f32 %v4199, 1.0
    %v4201 = vrcp.pop %v4200
    %v4202 = vmul.f32 1.0, %v4201
    %v4204 = vrot.slane %v4188, 4
    %v4206 = vmul.f32 %v4196, %v4204
    %v4207 = vadd.f32 %v333, %v4206
    %v4208 = vtanh.pop %v4207
    %v4209 = vsub.f32 1.0, %v4202
    %v4210 = vmul.f32 %v4209, %v4208
    %v4211 = vrot.slane %v3724, 4
    %v4213 = vmul.f32 %v4202, %v4211
    %v4214 = vadd.f32 %v4210, %v4213
    %v4216 = vrot.slane %v3969, 4
    %v4217 = vsel %vm132, %v4216, 0
    %4219 = vmatprep.subr.mxu0 0.0
    %4220 = vmatpush1.msra.mxu0 %v573
    %4221 = vmatprep.subr.mxu0 0.0
    %4222 = vmatpush1.msra.mxu0 %v574
    %4223 = vmatprep.subr.mxu0 0.0
    %4224 = vmatpush1.msra.mxu0 %v575
    %4225 = vmatprep.subr.mxu0 0.0
    %4226 = vmatpush1.msra.mxu0 %v576
    %4227 = vmatprep.subr.mxu0 0.0
    %4228 = vmatpush1.msra.mxu0 0.0
    %4229 = vmatprep.subr.mxu0 0.0
    %4230 = vmatpush1.msra.mxu0 0.0
    %4231 = vmatprep.subr.mxu0 0.0
    %4232 = vmatpush1.msra.mxu0 0.0
    %4233 = vmatprep.subr.mxu0 0.0
    %4234 = vmatpush1.msra.mxu0 0.0
    %4235 = vmatprep.subr.mxu0 0.0
    %4236 = vmatpush1.msra.mxu0 0.0
    %4237 = vmatprep.subr.mxu0 0.0
    %4238 = vmatpush1.msra.mxu0 0.0
    %4239 = vmatprep.subr.mxu0 0.0
    %4240 = vmatpush1.msra.mxu0 0.0
    %4241 = vmatprep.subr.mxu0 0.0
    %4242 = vmatpush1.msra.mxu0 0.0
    %4243 = vmatprep.subr.mxu0 0.0
    %4244 = vmatpush1.msra.mxu0 0.0
    %4245 = vmatprep.subr.mxu0 0.0
    %4246 = vmatpush1.msra.mxu0 0.0
    %4247 = vmatprep.subr.mxu0 0.0
    %4248 = vmatpush1.msra.mxu0 0.0
    %4249 = vmatprep.subr.mxu0 0.0
    %4250 = vmatpush1.msra.mxu0 0.0
    %4251 = vmatprep.subr.mxu0 0.0
    %4252 = vmatpush1.msra.mxu0 0.0
    %4253 = vmatprep.subr.mxu0 0.0
    %4254 = vmatpush1.msra.mxu0 0.0
    %4255 = vmatprep.subr.mxu0 0.0
    %4256 = vmatpush1.msra.mxu0 0.0
    %4257 = vmatprep.subr.mxu0 0.0
    %4258 = vmatpush1.msra.mxu0 0.0
    %4259 = vmatprep.subr.mxu0 0.0
    %4260 = vmatpush1.msra.mxu0 0.0
    %4261 = vmatprep.subr.mxu0 0.0
    %4262 = vmatpush1.msra.mxu0 0.0
    %4263 = vmatprep.subr.mxu0 0.0
    %4264 = vmatpush1.msra.mxu0 0.0
    %4265 = vmatprep.subr.mxu0 0.0
    %4266 = vmatpush1.msra.mxu0 0.0
    %4267 = vmatprep.subr.mxu0 0.0
    %4268 = vmatpush1.msra.mxu0 0.0
    %4269 = vmatprep.subr.mxu0 0.0
    %4270 = vmatpush1.msra.mxu0 0.0
    %4271 = vmatprep.subr.mxu0 0.0
    %4272 = vmatpush1.msra.mxu0 0.0
    %4273 = vmatprep.subr.mxu0 0.0
    %4274 = vmatpush1.msra.mxu0 0.0
    %4275 = vmatprep.subr.mxu0 0.0
    %4276 = vmatpush1.msra.mxu0 0.0
    %4277 = vmatprep.subr.mxu0 0.0
    %4278 = vmatpush1.msra.mxu0 0.0
    %4279 = vmatprep.subr.mxu0 0.0
    %4280 = vmatpush1.msra.mxu0 0.0
    %4281 = vmatprep.subr.mxu0 0.0
    %4282 = vmatpush1.msra.mxu0 0.0
    %4283 = vmatprep.mubr.f32.mxu0 0.0
    %4284 = vmatmul.mubr.f32.gmra.mrb[0].mxu0 %v4217
    %v4285 = vpop.f32.mrb[0].mxu0
    %v4286 = vadd.f32 0.0, %v4285
    %v4287 = vpop.f32.mrb[0].mxu0
    %4288 = vdwg.mxu0
    %v4289 = vadd.f32 %v396, %v4286
    %4290 = vmatprep.subr.mxu0 0.0
    %4291 = vmatpush1.msra.mxu0 %v578
    %4292 = vmatprep.subr.mxu0 0.0
    %4293 = vmatpush1.msra.mxu0 %v579
    %4294 = vmatprep.subr.mxu0 0.0
    %4295 = vmatpush1.msra.mxu0 %v580
    %4296 = vmatprep.subr.mxu0 0.0
    %4297 = vmatpush1.msra.mxu0 %v581
    %4298 = vmatprep.subr.mxu0 0.0
    %4299 = vmatpush1.msra.mxu0 0.0
    %4300 = vmatprep.subr.mxu0 0.0
    %4301 = vmatpush1.msra.mxu0 0.0
    %4302 = vmatprep.subr.mxu0 0.0
    %4303 = vmatpush1.msra.mxu0 0.0
    %4304 = vmatprep.subr.mxu0 0.0
    %4305 = vmatpush1.msra.mxu0 0.0
    %4306 = vmatprep.subr.mxu0 0.0
    %4307 = vmatpush1.msra.mxu0 0.0
    %4308 = vmatprep.subr.mxu0 0.0
    %4309 = vmatpush1.msra.mxu0 0.0
    %4310 = vmatprep.subr.mxu0 0.0
    %4311 = vmatpush1.msra.mxu0 0.0
    %4312 = vmatprep.subr.mxu0 0.0
    %4313 = vmatpush1.msra.mxu0 0.0
    %4314 = vmatprep.subr.mxu0 0.0
    %4315 = vmatpush1.msra.mxu0 0.0
    %4316 = vmatprep.subr.mxu0 0.0
    %4317 = vmatpush1.msra.mxu0 0.0
    %4318 = vmatprep.subr.mxu0 0.0
    %4319 = vmatpush1.msra.mxu0 0.0
    %4320 = vmatprep.subr.mxu0 0.0
    %4321 = vmatpush1.msra.mxu0 0.0
    %4322 = vmatprep.subr.mxu0 0.0
    %4323 = vmatpush1.msra.mxu0 0.0
    %4324 = vmatprep.subr.mxu0 0.0
    %4325 = vmatpush1.msra.mxu0 0.0
    %4326 = vmatprep.subr.mxu0 0.0
    %4327 = vmatpush1.msra.mxu0 0.0
    %4328 = vmatprep.subr.mxu0 0.0
    %4329 = vmatpush1.msra.mxu0 0.0
    %4330 = vmatprep.subr.mxu0 0.0
    %4331 = vmatpush1.msra.mxu0 0.0
    %4332 = vmatprep.subr.mxu0 0.0
    %4333 = vmatpush1.msra.mxu0 0.0
    %4334 = vmatprep.subr.mxu0 0.0
    %4335 = vmatpush1.msra.mxu0 0.0
    %4336 = vmatprep.subr.mxu0 0.0
    %4337 = vmatpush1.msra.mxu0 0.0
    %4338 = vmatprep.subr.mxu0 0.0
    %4339 = vmatpush1.msra.mxu0 0.0
    %4340 = vmatprep.subr.mxu0 0.0
    %4341 = vmatpush1.msra.mxu0 0.0
    %4342 = vmatprep.subr.mxu0 0.0
    %4343 = vmatpush1.msra.mxu0 0.0
    %4344 = vmatprep.subr.mxu0 0.0
    %4345 = vmatpush1.msra.mxu0 0.0
    %4346 = vmatprep.subr.mxu0 0.0
    %4347 = vmatpush1.msra.mxu0 0.0
    %4348 = vmatprep.subr.mxu0 0.0
    %4349 = vmatpush1.msra.mxu0 0.0
    %4350 = vmatprep.subr.mxu0 0.0
    %4351 = vmatpush1.msra.mxu0 0.0
    %4352 = vmatprep.subr.mxu0 0.0
    %4353 = vmatpush1.msra.mxu0 0.0
    %4354 = vmatprep.mubr.f32.mxu0 0.0
    %4355 = vmatmul.mubr.f32.gmra.mrb[0].mxu0 %v4217
    %v4356 = vpop.f32.mrb[0].mxu0
    %v4357 = vadd.f32 0.0, %v4356
    %v4358 = vpop.f32.mrb[0].mxu0
    %4359 = vdwg.mxu0
    %v4360 = vadd.f32 %v470, %v4357
    %4361 = vmatprep.subr.mxu0 0.0
    %4362 = vmatpush1.msra.mxu0 %v583
    %4363 = vmatprep.subr.mxu0 0.0
    %4364 = vmatpush1.msra.mxu0 %v584
    %4365 = vmatprep.subr.mxu0 0.0
    %4366 = vmatpush1.msra.mxu0 %v585
    %4367 = vmatprep.subr.mxu0 0.0
    %4368 = vmatpush1.msra.mxu0 %v586
    %4369 = vmatprep.subr.mxu0 0.0
    %4370 = vmatpush1.msra.mxu0 0.0
    %4371 = vmatprep.subr.mxu0 0.0
    %4372 = vmatpush1.msra.mxu0 0.0
    %4373 = vmatprep.subr.mxu0 0.0
    %4374 = vmatpush1.msra.mxu0 0.0
    %4375 = vmatprep.subr.mxu0 0.0
    %4376 = vmatpush1.msra.mxu0 0.0
    %4377 = vmatprep.subr.mxu0 0.0
    %4378 = vmatpush1.msra.mxu0 0.0
    %4379 = vmatprep.subr.mxu0 0.0
    %4380 = vmatpush1.msra.mxu0 0.0
    %4381 = vmatprep.subr.mxu0 0.0
    %4382 = vmatpush1.msra.mxu0 0.0
    %4383 = vmatprep.subr.mxu0 0.0
    %4384 = vmatpush1.msra.mxu0 0.0
    %4385 = vmatprep.subr.mxu0 0.0
    %4386 = vmatpush1.msra.mxu0 0.0
    %4387 = vmatprep.subr.mxu0 0.0
    %4388 = vmatpush1.msra.mxu0 0.0
    %4389 = vmatprep.subr.mxu0 0.0
    %4390 = vmatpush1.msra.mxu0 0.0
    %4391 = vmatprep.subr.mxu0 0.0
    %4392 = vmatpush1.msra.mxu0 0.0
    %4393 = vmatprep.subr.mxu0 0.0
    %4394 = vmatpush1.msra.mxu0 0.0
    %4395 = vmatprep.subr.mxu0 0.0
    %4396 = vmatpush1.msra.mxu0 0.0
    %4397 = vmatprep.subr.mxu0 0.0
    %4398 = vmatpush1.msra.mxu0 0.0
    %4399 = vmatprep.subr.mxu0 0.0
    %4400 = vmatpush1.msra.mxu0 0.0
    %4401 = vmatprep.subr.mxu0 0.0
    %4402 = vmatpush1.msra.mxu0 0.0
    %4403 = vmatprep.subr.mxu0 0.0
    %4404 = vmatpush1.msra.mxu0 0.0
    %4405 = vmatprep.subr.mxu0 0.0
    %4406 = vmatpush1.msra.mxu0 0.0
    %4407 = vmatprep.subr.mxu0 0.0
    %4408 = vmatpush1.msra.mxu0 0.0
    %4409 = vmatprep.subr.mxu0 0.0
    %4410 = vmatpush1.msra.mxu0 0.0
    %4411 = vmatprep.subr.mxu0 0.0
    %4412 = vmatpush1.msra.mxu0 0.0
    %4413 = vmatprep.subr.mxu0 0.0
    %4414 = vmatpush1.msra.mxu0 0.0
    %4415 = vmatprep.subr.mxu0 0.0
    %4416 = vmatpush1.msra.mxu0 0.0
    %4417 = vmatprep.subr.mxu0 0.0
    %4418 = vmatpush1.msra.mxu0 0.0
    %4419 = vmatprep.subr.mxu0 0.0
    %4420 = vmatpush1.msra.mxu0 0.0
    %4421 = vmatprep.subr.mxu0 0.0
    %4422 = vmatpush1.msra.mxu0 0.0
    %4423 = vmatprep.subr.mxu0 0.0
    %4424 = vmatpush1.msra.mxu0 0.0
    %4425 = vmatprep.mubr.f32.mxu0 0.0
    %4426 = vmatmul.mubr.f32.gmra.mrb[0].mxu0 %v4217
    %v4427 = vpop.f32.mrb[0].mxu0
    %v4428 = vadd.f32 %v600, %v4427
    %v4429 = vpop.f32.mrb[0].mxu0
    %4430 = vdwg.mxu0
    %v4431 = vxor.u32 %v4289, 2147483648
    %v4432 = vmul.f32 %v4431, 1.442695
    %v4433 = vpow.pop %v4432
    %v4434 = vadd.f32 %v4433, 1.0
    %v4435 = vrcp.pop %v4434
    %v4436 = vmul.f32 1.0, %v4435
    %v4437 = vxor.u32 %v4360, 2147483648
    %v4438 = vmul.f32 %v4437, 1.442695
    %v4439 = vpow.pop %v4438
    %v4440 = vadd.f32 %v4439, 1.0
    %v4441 = vrcp.pop %v4440
    %v4442 = vmul.f32 1.0, %v4441
    %v4443 = vmul.f32 %v4436, %v4428
    %v4444 = vadd.f32 %v544, %v4443
    %v4445 = vtanh.pop %v4444
    %v4446 = vsub.f32 1.0, %v4442
    %v4447 = vmul.f32 %v4446, %v4445
    %v4449 = vmul.f32 %v4442, %v4216
    %v4450 = vadd.f32 %v4447, %v4449
    %v4452 = vrot.slane %v4450, 4
    %v4454 = vadd.f32 %v4214, %v4452
    %v4455 = vld [vmem:[%s6] sm:$0xff]
    %v4456 = vld [vmem:[%s6 + $0x8] sm:$0xff]
    %v4457 = vld [vmem:[%s6 + $0x10] sm:$0xff]
    %v4458 = vld [vmem:[%s6 + $0x18] sm:$0xff]
    %v4459 = vld [vmem:[#allocation8] sm:$0xff]
    %v4460 = vld [vmem:[#allocation8 + $0x8] sm:$0xff]
    %v4461 = vld [vmem:[#allocation8 + $0x10] sm:$0xff]
    %v4462 = vld [vmem:[#allocation8 + $0x18] sm:$0xff]
    %v4464 = vrot.slane %v4454, 6
    %v4465 = vsel %vm132, %v4464, 0
    %4467 = vmatprep.subr.mxu0 0.0
    %4468 = vmatpush1.msra.mxu0 %v4459
    %4469 = vmatprep.subr.mxu0 0.0
    %4470 = vmatpush1.msra.mxu0 %v4460
    %4471 = vmatprep.subr.mxu0 0.0
    %4472 = vmatpush1.msra.mxu0 %v4461
    %4473 = vmatprep.subr.mxu0 0.0
    %4474 = vmatpush1.msra.mxu0 %v4462
    %4475 = vmatprep.subr.mxu0 0.0
    %4476 = vmatpush1.msra.mxu0 0.0
    %4477 = vmatprep.subr.mxu0 0.0
    %4478 = vmatpush1.msra.mxu0 0.0
    %4479 = vmatprep.subr.mxu0 0.0
    %4480 = vmatpush1.msra.mxu0 0.0
    %4481 = vmatprep.subr.mxu0 0.0
    %4482 = vmatpush1.msra.mxu0 0.0
    %4483 = vmatprep.subr.mxu0 0.0
    %4484 = vmatpush1.msra.mxu0 0.0
    %4485 = vmatprep.subr.mxu0 0.0
    %4486 = vmatpush1.msra.mxu0 0.0
    %4487 = vmatprep.subr.mxu0 0.0
    %4488 = vmatpush1.msra.mxu0 0.0
    %4489 = vmatprep.subr.mxu0 0.0
    %4490 = vmatpush1.msra.mxu0 0.0
    %4491 = vmatprep.subr.mxu0 0.0
    %4492 = vmatpush1.msra.mxu0 0.0
    %4493 = vmatprep.subr.mxu0 0.0
    %4494 = vmatpush1.msra.mxu0 0.0
    %4495 = vmatprep.subr.mxu0 0.0
    %4496 = vmatpush1.msra.mxu0 0.0
    %4497 = vmatprep.subr.mxu0 0.0
    %4498 = vmatpush1.msra.mxu0 0.0
    %4499 = vmatprep.subr.mxu0 0.0
    %4500 = vmatpush1.msra.mxu0 0.0
    %4501 = vmatprep.subr.mxu0 0.0
    %4502 = vmatpush1.msra.mxu0 0.0
    %4503 = vmatprep.subr.mxu0 0.0
    %4504 = vmatpush1.msra.mxu0 0.0
    %4505 = vmatprep.subr.mxu0 0.0
    %4506 = vmatpush1.msra.mxu0 0.0
    %4507 = vmatprep.subr.mxu0 0.0
    %4508 = vmatpush1.msra.mxu0 0.0
    %4509 = vmatprep.subr.mxu0 0.0
    %4510 = vmatpush1.msra.mxu0 0.0
    %4511 = vmatprep.subr.mxu0 0.0
    %4512 = vmatpush1.msra.mxu0 0.0
    %4513 = vmatprep.subr.mxu0 0.0
    %4514 = vmatpush1.msra.mxu0 0.0
    %4515 = vmatprep.subr.mxu0 0.0
    %4516 = vmatpush1.msra.mxu0 0.0
    %4517 = vmatprep.subr.mxu0 0.0
    %4518 = vmatpush1.msra.mxu0 0.0
    %4519 = vmatprep.subr.mxu0 0.0
    %4520 = vmatpush1.msra.mxu0 0.0
    %4521 = vmatprep.subr.mxu0 0.0
    %4522 = vmatpush1.msra.mxu0 0.0
    %4523 = vmatprep.subr.mxu0 0.0
    %4524 = vmatpush1.msra.mxu0 0.0
    %4525 = vmatprep.subr.mxu0 0.0
    %4526 = vmatpush1.msra.mxu0 0.0
    %4527 = vmatprep.subr.mxu0 0.0
    %4528 = vmatpush1.msra.mxu0 0.0
    %4529 = vmatprep.subr.mxu0 0.0
    %4530 = vmatpush1.msra.mxu0 0.0
    %4531 = vmatprep.mubr.f32.mxu0 0.0
    %4532 = vmatmul.mubr.f32.gmra.mrb[0].mxu0 %v4465
    %v4533 = vpop.f32.mrb[0].mxu0
    %v4534 = vadd.f32 0.0, %v4533
    %v4535 = vpop.f32.mrb[0].mxu0
    %4536 = vdwg.mxu0
    %v4537 = vrot.slane %v4454, 4
    %v4538 = vsel %vm132, %v4537, 0
    %4540 = vmatprep.subr.mxu0 0.0
    %4541 = vmatpush1.msra.mxu0 %v4455
    %4542 = vmatprep.subr.mxu0 0.0
    %4543 = vmatpush1.msra.mxu0 %v4456
    %4544 = vmatprep.subr.mxu0 0.0
    %4545 = vmatpush1.msra.mxu0 %v4457
    %4546 = vmatprep.subr.mxu0 0.0
    %4547 = vmatpush1.msra.mxu0 %v4458
    %4548 = vmatprep.subr.mxu0 0.0
    %4549 = vmatpush1.msra.mxu0 0.0
    %4550 = vmatprep.subr.mxu0 0.0
    %4551 = vmatpush1.msra.mxu0 0.0
    %4552 = vmatprep.subr.mxu0 0.0
    %4553 = vmatpush1.msra.mxu0 0.0
    %4554 = vmatprep.subr.mxu0 0.0
    %4555 = vmatpush1.msra.mxu0 0.0
    %4556 = vmatprep.subr.mxu0 0.0
    %4557 = vmatpush1.msra.mxu0 0.0
    %4558 = vmatprep.subr.mxu0 0.0
    %4559 = vmatpush1.msra.mxu0 0.0
    %4560 = vmatprep.subr.mxu0 0.0
    %4561 = vmatpush1.msra.mxu0 0.0
    %4562 = vmatprep.subr.mxu0 0.0
    %4563 = vmatpush1.msra.mxu0 0.0
    %4564 = vmatprep.subr.mxu0 0.0
    %4565 = vmatpush1.msra.mxu0 0.0
    %4566 = vmatprep.subr.mxu0 0.0
    %4567 = vmatpush1.msra.mxu0 0.0
    %4568 = vmatprep.subr.mxu0 0.0
    %4569 = vmatpush1.msra.mxu0 0.0
    %4570 = vmatprep.subr.mxu0 0.0
    %4571 = vmatpush1.msra.mxu0 0.0
    %4572 = vmatprep.subr.mxu0 0.0
    %4573 = vmatpush1.msra.mxu0 0.0
    %4574 = vmatprep.subr.mxu0 0.0
    %4575 = vmatpush1.msra.mxu0 0.0
    %4576 = vmatprep.subr.mxu0 0.0
    %4577 = vmatpush1.msra.mxu0 0.0
    %4578 = vmatprep.subr.mxu0 0.0
    %4579 = vmatpush1.msra.mxu0 0.0
    %4580 = vmatprep.subr.mxu0 0.0
    %4581 = vmatpush1.msra.mxu0 0.0
    %4582 = vmatprep.subr.mxu0 0.0
    %4583 = vmatpush1.msra.mxu0 0.0
    %4584 = vmatprep.subr.mxu0 0.0
    %4585 = vmatpush1.msra.mxu0 0.0
    %4586 = vmatprep.subr.mxu0 0.0
    %4587 = vmatpush1.msra.mxu0 0.0
    %4588 = vmatprep.subr.mxu0 0.0
    %4589 = vmatpush1.msra.mxu0 0.0
    %4590 = vmatprep.subr.mxu0 0.0
    %4591 = vmatpush1.msra.mxu0 0.0
    %4592 = vmatprep.subr.mxu0 0.0
    %4593 = vmatpush1.msra.mxu0 0.0
    %4594 = vmatprep.subr.mxu0 0.0
    %4595 = vmatpush1.msra.mxu0 0.0
    %4596 = vmatprep.subr.mxu0 0.0
    %4597 = vmatpush1.msra.mxu0 0.0
    %4598 = vmatprep.subr.mxu0 0.0
    %4599 = vmatpush1.msra.mxu0 0.0
    %4600 = vmatprep.subr.mxu0 0.0
    %4601 = vmatpush1.msra.mxu0 0.0
    %4602 = vmatprep.subr.mxu0 0.0
    %4603 = vmatpush1.msra.mxu0 0.0
    %4604 = vmatprep.mubr.f32.mxu0 0.0
    %4605 = vmatmul.mubr.f32.gmra.mrb[0].mxu0 %v4538
    %v4606 = vpop.f32.mrb[0].mxu0
    %v4607 = vadd.f32 %v4534, %v4606
    %v4608 = vpop.f32.mrb[0].mxu0
    %4609 = vdwg.mxu0
    %v4610 = vld [vmem:[%s8] sm:$0x1]
    %v4612 = vlaneseq
    %v4613 = vshrl.u32 %v4612, 7
    %v4614 = vsub.s32 0, %v4613
    %v4615 = vrot.slane %v4610, %v4614
    %v4617 = vadd.f32 %v4607, %v4615
    %v4618 = vmax.f32 %v4617, 0.0
    %v4619 = vld [vmem:[%s9] sm:$0xff]
    %v4620 = vld [vmem:[%s9 + $0x8] sm:$0xff]
    %v4621 = vld [vmem:[%s9 + $0x10] sm:$0xff]
    %v4622 = vld [vmem:[%s9 + $0x18] sm:$0xff]
    %v4623 = vld [vmem:[%s10] sm:$0x1]
    %v4625 = vlaneseq
    %v4626 = vshrl.u32 %v4625, 7
    %v4627 = vsub.s32 0, %v4626
    %v4628 = vrot.slane %v4623, %v4627
    %v4631 = vsel %vm132, %v4618, 0
    %4633 = vmatprep.subr.mxu0 0.0
    %4634 = vmatpush1.msra.mxu0 %v4619
    %4635 = vmatprep.subr.mxu0 0.0
    %4636 = vmatpush1.msra.mxu0 %v4620
    %4637 = vmatprep.subr.mxu0 0.0
    %4638 = vmatpush1.msra.mxu0 %v4621
    %4639 = vmatprep.subr.mxu0 0.0
    %4640 = vmatpush1.msra.mxu0 %v4622
    %4641 = vmatprep.subr.mxu0 0.0
    %4642 = vmatpush1.msra.mxu0 0.0
    %4643 = vmatprep.subr.mxu0 0.0
    %4644 = vmatpush1.msra.mxu0 0.0
    %4645 = vmatprep.subr.mxu0 0.0
    %4646 = vmatpush1.msra.mxu0 0.0
    %4647 = vmatprep.subr.mxu0 0.0
    %4648 = vmatpush1.msra.mxu0 0.0
    %4649 = vmatprep.subr.mxu0 0.0
    %4650 = vmatpush1.msra.mxu0 0.0
    %4651 = vmatprep.subr.mxu0 0.0
    %4652 = vmatpush1.msra.mxu0 0.0
    %4653 = vmatprep.subr.mxu0 0.0
    %4654 = vmatpush1.msra.mxu0 0.0
    %4655 = vmatprep.subr.mxu0 0.0
    %4656 = vmatpush1.msra.mxu0 0.0
    %4657 = vmatprep.subr.mxu0 0.0
    %4658 = vmatpush1.msra.mxu0 0.0
    %4659 = vmatprep.subr.mxu0 0.0
    %4660 = vmatpush1.msra.mxu0 0.0
    %4661 = vmatprep.subr.mxu0 0.0
    %4662 = vmatpush1.msra.mxu0 0.0
    %4663 = vmatprep.subr.mxu0 0.0
    %4664 = vmatpush1.msra.mxu0 0.0
    %4665 = vmatprep.subr.mxu0 0.0
    %4666 = vmatpush1.msra.mxu0 0.0
    %4667 = vmatprep.subr.mxu0 0.0
    %4668 = vmatpush1.msra.mxu0 0.0
    %4669 = vmatprep.subr.mxu0 0.0
    %4670 = vmatpush1.msra.mxu0 0.0
    %4671 = vmatprep.subr.mxu0 0.0
    %4672 = vmatpush1.msra.mxu0 0.0
    %4673 = vmatprep.subr.mxu0 0.0
    %4674 = vmatpush1.msra.mxu0 0.0
    %4675 = vmatprep.subr.mxu0 0.0
    %4676 = vmatpush1.msra.mxu0 0.0
    %4677 = vmatprep.subr.mxu0 0.0
    %4678 = vmatpush1.msra.mxu0 0.0
    %4679 = vmatprep.subr.mxu0 0.0
    %4680 = vmatpush1.msra.mxu0 0.0
    %4681 = vmatprep.subr.mxu0 0.0
    %4682 = vmatpush1.msra.mxu0 0.0
    %4683 = vmatprep.subr.mxu0 0.0
    %4684 = vmatpush1.msra.mxu0 0.0
    %4685 = vmatprep.subr.mxu0 0.0
    %4686 = vmatpush1.msra.mxu0 0.0
    %4687 = vmatprep.subr.mxu0 0.0
    %4688 = vmatpush1.msra.mxu0 0.0
    %4689 = vmatprep.subr.mxu0 0.0
    %4690 = vmatpush1.msra.mxu0 0.0
    %4691 = vmatprep.subr.mxu0 0.0
    %4692 = vmatpush1.msra.mxu0 0.0
    %4693 = vmatprep.subr.mxu0 0.0
    %4694 = vmatpush1.msra.mxu0 0.0
    %4695 = vmatprep.subr.mxu0 0.0
    %4696 = vmatpush1.msra.mxu0 0.0
    %4697 = vmatprep.mubr.f32.mxu0 0.0
    %4698 = vmatmul.mubr.f32.gmra.mrb[0].mxu0 %v4631
    %v4699 = vpop.f32.mrb[0].mxu0
    %v4700 = vadd.f32 %v4628, %v4699
    %v4701 = vpop.f32.mrb[0].mxu0
    %4702 = vdwg.mxu0
    %vm4703 = vcmask 17408
    %4704 = vst.msk [vmem:[#allocation10] sm:$0x3] %vm4703, %v4700
    // Predicated region
    $region62: #{tpu_custom_call.1} parent=1 // pred_check
      _
    $region63: #{tpu_custom_call.1} parent=1 // pred_check_branch
      %4706 = sbr.rel (0) target = $region65
    $region64: #{tpu_custom_call.1} parent=1 // pred_region
      %s4708 = ssub.s32 32, 32
      %4709 = vsyncadd [#allocation4], %s4708
      %s4711 = sshll.u32 [#allocation10], 4
      %s4712 = int_to_ptr.vmem [resolvable:$true] %s4711
      %4714 = dma.vmem_to_hbm [thread:$0]  %s4712, 32, %s11, [#allocation4]
    $region65: #{tpu_custom_call.1} parent=1 // pred_fallthru
      _
    // Predicated region
    $region66: #{tpu_custom_call.1} parent=1 // pred_check
      _
    $region67: #{tpu_custom_call.1} parent=1 // pred_check_branch
      %4716 = sbr.rel (0) target = $region69
    $region68: #{tpu_custom_call.1} parent=1 // pred_region
      %4717 = dma.done [#allocation4], 32
    $region69: #{tpu_custom_call.1} parent=1 // pred_fallthru
      _
    %4718 = vsyncpa [#allocation3], 1
    %4719 = vsyncpa [#allocation6], 1
    %4720 = vsyncpa [#allocation9], 1
    %4721 = vsyncpa [#allocation4], 1

</llo_original>
